<compile_context>
chip_gen: v7x
topology: tpu7x:2x2x1
jax: 0.10.0
libtpu: 0.0.40
codegen_flags: <defaults>
</compile_context>

<pallas_src>
import math

import jax
import jax.numpy as jnp
from jax.experimental import pallas as pl
from jax.experimental.pallas import tpu as pltpu


_NEG_BIG = -1000000000.0  # matches the PyTorch module's (1 - mask) * -1e9


# --------------------------------------------------------------------------
# VMEM budgeting (generation-aware)
# --------------------------------------------------------------------------
def _tpu_vmem_budgets():
    """Returns (per-step tile budget, vmem_limit cap) in bytes."""
    cap = 64 << 20  # conservative default (v7x per-TC physical VMEM)
    try:
        info = pltpu.get_tpu_info()
        cap = int(getattr(info, "vmem_capacity_bytes", cap)) or cap
    except Exception:
        pass
    # Working-set budget used to pick tile sizes: ~16 MiB on v7x (64 MiB VMEM),
    # 32 MiB on v5e/v6e (128 MiB VMEM).
    budget = max(12 << 20, min(cap // 4, 32 << 20))
    # Never request all of physical VMEM: leave >=16 MiB headroom for compiler
    # scratch / spill buffers; always >= 32 MiB so v5e's 16 MiB scoped default
    # is overridden.
    limit_cap = max(32 << 20, cap - (16 << 20))
    return budget, limit_cap


def _full_step_bytes(hb, tq, lk, dk, dv, isz, osz, has_mask, need_aux):
    per = hb * tq * dk * isz              # q tile
    per += hb * lk * (dk + dv) * isz      # k + v (resident across q tiles)
    if has_mask:
        per += tq * lk                    # int8 mask tile
    per += hb * tq * dv * osz             # output tile
    if need_aux:
        per += hb * tq * lk * (osz + 4)   # attn_prob + attn (f32) tiles
    return 2 * per                        # double-buffered pipeline


def _flash_step_bytes(hb, tq, tkv, dk, dv, isz, osz, has_mask):
    per = hb * tq * dk * isz
    per += hb * tkv * (dk + dv) * isz
    if has_mask:
        per += tq * tkv
    per += hb * tq * dv * osz
    scratch = hb * tq * (dv + 2) * 4      # m, l, acc (f32, single-buffered)
    return 2 * per + scratch


_Q_CANDS = (2048, 1024, 512, 256, 128, 64, 32)


def _choose_block_q(lq, fits):
    cands = sorted({lq} | {c for c in _Q_CANDS if c < lq and lq % c == 0},
                   reverse=True)
    for tq in cands:
        if fits(tq):
            return tq
    return cands[-1]


def _choose_block_kv(lk):
    # Single pass for moderate Lk; otherwise bound intermediates to <=1024 keys.
    if lk <= 1024:
        return lk
    for c in (1024, 512, 256, 128):
        if lk % c == 0:
            return c
    return lk


def _choose_block_h(h, dk, dv):
    d = min(dk, dv)
    if d >= 128:
        return 1
    target = min(h, 8, max(1, 128 // d))
    hb = 1
    for c in range(1, target + 1):
        if h % c == 0:
            hb = c
    return hb


def _sublane_mult(itemsize):
    return {4: 8, 2: 16, 1: 32}.get(itemsize, 8)


# --------------------------------------------------------------------------
# Kernels
# --------------------------------------------------------------------------
def _make_full_kernel(inv_temp, has_mask, need_aux, mm_dtype):
    """Single pass over Lk; materializes attn / attn_prob (need_weights=True)."""

    def kernel(*refs):
        i = 3
        q_ref, k_ref, v_ref = refs[0], refs[1], refs[2]
        mask_ref = None
        if has_mask:
            mask_ref = refs[i]
            i += 1
        out_ref = refs[i]
        i += 1
        prob_ref = attn_ref = None
        if need_aux:
            prob_ref, attn_ref = refs[i], refs[i + 1]

        q = q_ref[0] * inv_temp          # (Hb, TQ, Dk)
        k = k_ref[0]                     # (Hb, Lk, Dk)
        v = v_ref[0]                     # (Hb, Lk, Dv)
        if mm_dtype is not None:
            q = q.astype(mm_dtype)
            k = k.astype(mm_dtype)

        # scores = (q / temperature) @ k^T, contracting the head dim on the MXU
        # (batched over Hb heads, no k.T relayout).
        s = jnp.einsum("hqd,hkd->hqk", q, k,
                       preferred_element_type=jnp.float32)   # (Hb, TQ, Lk) f32

        if has_mask:
            keep = (mask_ref[0] != 0)[None]           # (1, TQ, Lk), bcast over heads
            s = jnp.where(keep, s, s + _NEG_BIG)      # == s + (1-mask)*-1e9 for 0/1 mask

        if need_aux:
            attn_ref[0] = s                           # torch `attn` (post-mask f32 logits)

        # numerically stable softmax over Lk
        s_max = jnp.max(s, axis=-1, keepdims=True)
        p = jnp.exp(s - s_max)
        denom = jnp.sum(p, axis=-1, keepdims=True)
        p = p * pl.reciprocal(denom, approx=True)     # EUP vrcp, off the VPU path

        p_store = p.astype(v.dtype)                   # torch casts probs to v.dtype
        if need_aux:
            prob_ref[0] = p_store                     # torch `attn_prob`
        # TODO(synk): nn.Dropout(attn_dropout) is identity in eval mode; training-time
        # dropout (pltpu.prng_random_bits based) is intentionally not applied here.

        if mm_dtype is not None:
            p_mm = p.astype(mm_dtype)
            v_mm = v.astype(mm_dtype)
        else:
            p_mm, v_mm = p_store, v
        out_ref[0] = jnp.einsum("hqk,hkd->hqd", p_mm, v_mm,
                                preferred_element_type=jnp.float32
                                ).astype(out_ref.dtype)

    return kernel


def _make_flash_kernel(inv_temp, has_mask, mm_dtype):
    """KV-tiled online-softmax kernel (need_weights=False fast path)."""

    def kernel(*refs):
        i = 3
        q_ref, k_ref, v_ref = refs[0], refs[1], refs[2]
        mask_ref = None
        if has_mask:
            mask_ref = refs[i]
            i += 1
        out_ref = refs[i]
        m_sc, l_sc, acc_sc = refs[i + 1], refs[i + 2], refs[i + 3]

        kv = pl.program_id(3)

        @pl.when(kv == 0)
        def _():
            m_sc[...] = jnp.full_like(m_sc, -jnp.inf)
            l_sc[...] = jnp.zeros_like(l_sc)
            acc_sc[...] = jnp.zeros_like(acc_sc)

        q = q_ref[0] * inv_temp          # (Hb, TQ, Dk)
        k = k_ref[0]                     # (Hb, TKV, Dk)
        v = v_ref[0]                     # (Hb, TKV, Dv)
        if mm_dtype is not None:
            q = q.astype(mm_dtype)
            k = k.astype(mm_dtype)

        s = jnp.einsum("hqd,hkd->hqk", q, k,
                       preferred_element_type=jnp.float32)   # (Hb, TQ, TKV)

        if has_mask:
            keep = (mask_ref[0] != 0)[None]
            s = jnp.where(keep, s, s + _NEG_BIG)

        m_prev = m_sc[...]
        m_new = jnp.maximum(m_prev, jnp.max(s, axis=-1, keepdims=True))
        alpha = jnp.exp(m_prev - m_new)
        p = jnp.exp(s - m_new)
        l_sc[...] = alpha * l_sc[...] + jnp.sum(p, axis=-1, keepdims=True)

        pv_dtype = mm_dtype if mm_dtype is not None else v.dtype
        acc_sc[...] = alpha * acc_sc[...] + jnp.einsum(
            "hqk,hkd->hqd", p.astype(pv_dtype), v.astype(pv_dtype),
            preferred_element_type=jnp.float32)
        m_sc[...] = m_new

        @pl.when(kv == pl.num_programs(3) - 1)
        def _():
            out_ref[0] = (acc_sc[...] * pl.reciprocal(l_sc[...], approx=True)
                          ).astype(out_ref.dtype)

    return kernel


# --------------------------------------------------------------------------
# Wrapper
# --------------------------------------------------------------------------
def scaled_dot_product_attention(q, k, v, mask=None, temperature=1.0, *,
                                 need_weights=True, block_q=None, block_kv=None,
                                 block_h=None, mm_dtype=None):
    """q:[B,H,Lq,Dk]  k:[B,H,Lk,Dk]  v:[B,H,Lk,Dv]  mask:[B,Lq,Lk] (nonzero = keep).

    Returns (output, (attn_prob, attn)) like the PyTorch module. With
    need_weights=False the Lq*Lk side outputs are skipped and a KV-tiled
    online-softmax kernel is used (output-only, flash-style).
    `mm_dtype=jnp.bfloat16` optionally runs the MXU matmuls in bf16 with f32
    accumulation.
    """
    B, H, Lq, Dk = q.shape
    Lk = k.shape[2]
    Dv = v.shape[3]
    has_mask = mask is not None

    isz = jnp.dtype(q.dtype).itemsize
    osz = jnp.dtype(v.dtype).itemsize

    budget, limit_cap = _tpu_vmem_budgets()

    hb = block_h if block_h is not None else _choose_block_h(H, Dk, Dv)
    assert H % hb == 0, "block_h must divide H"

    operands = [q, k, v]
    if has_mask:
        # Accept int8 masks directly; only convert other dtypes (one pass).
        # NOTE: for purely causal masks, generating the mask in-kernel from
        # broadcasted_iota would remove this DMA entirely.
        mask_i8 = mask if mask.dtype == jnp.int8 else (mask != 0).astype(jnp.int8)
        operands.append(mask_i8)

    # minimum sublane multiple for a user-supplied block_q
    req = max(_sublane_mult(isz), _sublane_mult(osz))
    if has_mask:
        req = max(req, 32)   # int8 mask tile => (32, 128) tiling

    inv_temp = 1.0 / float(temperature)

    if need_weights:
        # ---------------- full kernel: materialize attn / attn_prob ----------------
        if block_q is None:
            block_q = _choose_block_q(
                Lq, lambda tq: _full_step_bytes(hb, tq, Lk, Dk, Dv, isz, osz,
                                                has_mask, True) <= budget)
        if block_q != Lq:
            assert Lq % block_q == 0, "block_q must divide Lq"
            assert block_q % req == 0, "block_q violates TPU tiling constraints"
        nq = Lq // block_q

        est = _full_step_bytes(hb, block_q, Lk, Dk, Dv, isz, osz, has_mask, True)
        vmem_limit = int(min(max(est + (8 << 20), 32 << 20), limit_cap))

        kernel = _make_full_kernel(inv_temp, has_mask, True, mm_dtype)
        grid = (B, H // hb, nq)

        in_specs = [
            pl.BlockSpec((1, hb, block_q, Dk), lambda b, h, qi: (b, h, qi, 0)),  # q
            pl.BlockSpec((1, hb, Lk, Dk), lambda b, h, qi: (b, h, 0, 0)),        # k (resident)
            pl.BlockSpec((1, hb, Lk, Dv), lambda b, h, qi: (b, h, 0, 0)),        # v (resident)
        ]
        if has_mask:
            in_specs.append(
                pl.BlockSpec((1, block_q, Lk), lambda b, h, qi: (b, qi, 0)))     # mask

        out_shape = (
            jax.ShapeDtypeStruct((B, H, Lq, Dv), v.dtype),       # output
            jax.ShapeDtypeStruct((B, H, Lq, Lk), v.dtype),       # attn_prob
            jax.ShapeDtypeStruct((B, H, Lq, Lk), jnp.float32),   # attn (post-mask logits)
        )
        out_specs = (
            pl.BlockSpec((1, hb, block_q, Dv), lambda b, h, qi: (b, h, qi, 0)),
            pl.BlockSpec((1, hb, block_q, Lk), lambda b, h, qi: (b, h, qi, 0)),
            pl.BlockSpec((1, hb, block_q, Lk), lambda b, h, qi: (b, h, qi, 0)),
        )

        output, attn_prob, attn = pl.pallas_call(
            kernel,
            out_shape=out_shape,
            grid=grid,
            in_specs=in_specs,
            out_specs=out_specs,
            compiler_params=pltpu.CompilerParams(
                # innermost q-tile axis stays "arbitrary" so K/V residency is
                # preserved under megacore sharding; B/H give the parallelism.
                dimension_semantics=("parallel", "parallel", "arbitrary"),
                vmem_limit_bytes=vmem_limit,
            ),
        )(*operands)
        return output, (attn_prob, attn)

    # ---------------- flash kernel: KV-tiled online softmax, output only ----------------
    if block_kv is None:
        block_kv = _choose_block_kv(Lk)
    if block_kv != Lk:
        assert Lk % block_kv == 0, "block_kv must divide Lk"
        assert block_kv % 128 == 0, "block_kv must be a multiple of 128 (lane dim)"
    nkv = Lk // block_kv

    if block_q is None:
        block_q = _choose_block_q(
            Lq, lambda tq: _flash_step_bytes(hb, tq, block_kv, Dk, Dv, isz, osz,
                                             has_mask) <= budget)
    if block_q != Lq:
        assert Lq % block_q == 0, "block_q must divide Lq"
        assert block_q % req == 0, "block_q violates TPU tiling constraints"
    nq = Lq // block_q

    est = _flash_step_bytes(hb, block_q, block_kv, Dk, Dv, isz, osz, has_mask)
    vmem_limit = int(min(max(est + (8 << 20), 32 << 20), limit_cap))

    kernel = _make_flash_kernel(inv_temp, has_mask, mm_dtype)
    grid = (B, H // hb, nq, nkv)

    in_specs = [
        pl.BlockSpec((1, hb, block_q, Dk), lambda b, h, qi, kv: (b, h, qi, 0)),   # q
        pl.BlockSpec((1, hb, block_kv, Dk), lambda b, h, qi, kv: (b, h, kv, 0)),  # k
        pl.BlockSpec((1, hb, block_kv, Dv), lambda b, h, qi, kv: (b, h, kv, 0)),  # v
    ]
    if has_mask:
        in_specs.append(
            pl.BlockSpec((1, block_q, block_kv), lambda b, h, qi, kv: (b, qi, kv)))

    out_specs = pl.BlockSpec((1, hb, block_q, Dv), lambda b, h, qi, kv: (b, h, qi, 0))

    output = pl.pallas_call(
        kernel,
        out_shape=jax.ShapeDtypeStruct((B, H, Lq, Dv), v.dtype),
        grid=grid,
        in_specs=in_specs,
        out_specs=out_specs,
        scratch_shapes=[
            pltpu.VMEM((hb, block_q, 1), jnp.float32),    # running max
            pltpu.VMEM((hb, block_q, 1), jnp.float32),    # running denom
            pltpu.VMEM((hb, block_q, Dv), jnp.float32),   # accumulator
        ],
        compiler_params=pltpu.CompilerParams(
            dimension_semantics=("parallel", "parallel", "arbitrary", "arbitrary"),
            vmem_limit_bytes=vmem_limit,
        ),
    )(*operands)
    return output, (None, None)


# --------------------------------------------------------------------------
# Reference & test
# --------------------------------------------------------------------------
def _reference(q, k, v, mask, temperature):
    s = jnp.einsum("bhqd,bhkd->bhqk", q / temperature, k).astype(jnp.float32)
    if mask is not None:
        m = mask[:, None, :, :].astype(jnp.float32)
        s = s + (1.0 - m) * _NEG_BIG
    p = jax.nn.softmax(s, axis=-1).astype(v.dtype)
    o = jnp.einsum("bhqk,bhkd->bhqd", p, v).astype(v.dtype)
    return o, (p, s)


if __name__ == "__main__":
    key = jax.random.PRNGKey(0)
    kq, kk, kv_key = jax.random.split(key, 3)

    B, H, L, Dk, Dv = 2, 2, 256, 32, 32
    temperature = math.sqrt(Dk)

    q = jax.random.normal(kq, (B, H, L, Dk), dtype=jnp.float32)
    k = jax.random.normal(kk, (B, H, L, Dk), dtype=jnp.float32)
    v = jax.random.normal(kv_key, (B, H, L, Dv), dtype=jnp.float32)

    # causal-style mask [B, Lq, Lk]: 1 = attend, 0 = masked out
    mask = jnp.tril(jnp.ones((L, L), dtype=jnp.float32))
    mask = jnp.broadcast_to(mask[None], (B, L, L))

    ref_out, (ref_prob, ref_attn) = _reference(q, k, v, mask, temperature)

    # full path (matches the PyTorch forward), explicitly exercising q-tiling
    out, (attn_prob, attn) = scaled_dot_product_attention(
        q, k, v, mask, temperature, block_q=128)
    jax.block_until_ready((out, attn_prob, attn))
    assert jnp.allclose(out, ref_out, atol=2e-3, rtol=2e-3), "output mismatch"
    assert jnp.allclose(attn_prob, ref_prob, atol=2e-3, rtol=2e-3), "attn_prob mismatch"
    assert jnp.allclose(attn, ref_attn, atol=1e-2, rtol=1e-5), "attn mismatch"

    # flash (online-softmax, KV-tiled) output-only path, masked
    out_f, _ = scaled_dot_product_attention(
        q, k, v, mask, temperature, need_weights=False, block_q=128, block_kv=128)
    jax.block_until_ready(out_f)
    assert jnp.allclose(out_f, ref_out, atol=2e-3, rtol=2e-3), "flash output mismatch"

    # output-only / no-mask fast path, auto tile selection
    out2, _ = scaled_dot_product_attention(q, k, v, None, temperature,
                                           need_weights=False)
    jax.block_until_ready(out2)
    ref_out2, _ = _reference(q, k, v, None, temperature)
    assert jnp.allclose(out2, ref_out2, atol=2e-3, rtol=2e-3), "no-mask output mismatch"

    print("KERNEL_OK")
</pallas_src>

<mosaic_0001>
module attributes {stable_mosaic.version = 11 : i64} {
  func.func @kernel(%arg0: i32, %arg1: i32, %arg2: i32, %arg3: memref<1x2x128x32xf32, #tpu.memory_space<vmem>>, %arg4: memref<1x2x256x32xf32, #tpu.memory_space<vmem>>, %arg5: memref<1x2x256x32xf32, #tpu.memory_space<vmem>>, %arg6: memref<1x128x256xi8, #tpu.memory_space<vmem>>, %arg7: memref<1x2x128x32xf32, #tpu.memory_space<vmem>>, %arg8: memref<1x2x128x256xf32, #tpu.memory_space<vmem>>, %arg9: memref<1x2x128x256xf32, #tpu.memory_space<vmem>>) attributes {dimension_semantics = [#tpu.dimension_semantics<parallel>, #tpu.dimension_semantics<parallel>, #tpu.dimension_semantics<arbitrary>], iteration_bounds = array<i64: 2, 1, 2>, scalar_prefetch = 0 : i64, scratch_operands = 0 : i64, tpu.core_type = #tpu.core_type<tc>, window_params = [{transform_indices = @transform_0, window_bounds = array<i64: 1, 2, 128, 32>}, {transform_indices = @transform_1, window_bounds = array<i64: 1, 2, 256, 32>}, {transform_indices = @transform_2, window_bounds = array<i64: 1, 2, 256, 32>}, {transform_indices = @transform_3, window_bounds = array<i64: 1, 128, 256>}, {transform_indices = @transform_4, window_bounds = array<i64: 1, 2, 128, 32>}, {transform_indices = @transform_5, window_bounds = array<i64: 1, 2, 128, 256>}, {transform_indices = @transform_6, window_bounds = array<i64: 1, 2, 128, 256>}]} {
    %c0 = arith.constant 0 : index
    %c0_0 = arith.constant 0 : index
    %c0_1 = arith.constant 0 : index
    %c0_2 = arith.constant 0 : index
    %0 = vector.load %arg3[%c0, %c0_0, %c0_1, %c0_2] : memref<1x2x128x32xf32, #tpu.memory_space<vmem>>, vector<1x2x128x32xf32>
    %1 = vector.shape_cast %0 : vector<1x2x128x32xf32> to vector<2x128x32xf32>
    %cst = arith.constant 0.176776692 : f32
    %2 = vector.broadcast %cst : f32 to vector<2x128x32xf32>
    %3 = arith.mulf %1, %2 : vector<2x128x32xf32>
    %c0_3 = arith.constant 0 : index
    %c0_4 = arith.constant 0 : index
    %c0_5 = arith.constant 0 : index
    %c0_6 = arith.constant 0 : index
    %4 = vector.load %arg4[%c0_3, %c0_4, %c0_5, %c0_6] : memref<1x2x256x32xf32, #tpu.memory_space<vmem>>, vector<1x2x256x32xf32>
    %5 = vector.shape_cast %4 : vector<1x2x256x32xf32> to vector<2x256x32xf32>
    %c0_7 = arith.constant 0 : index
    %c0_8 = arith.constant 0 : index
    %c0_9 = arith.constant 0 : index
    %c0_10 = arith.constant 0 : index
    %6 = vector.load %arg5[%c0_7, %c0_8, %c0_9, %c0_10] : memref<1x2x256x32xf32, #tpu.memory_space<vmem>>, vector<1x2x256x32xf32>
    %7 = vector.shape_cast %6 : vector<1x2x256x32xf32> to vector<2x256x32xf32>
    "tpu.trace_start"() <{level = 10 : i32, message = "hqd,hkd->hqk"}> : () -> ()
    %cst_11 = arith.constant dense<0.000000e+00> : vector<2x128x256xf32>
    %8 = tpu.matmul %3, %5, %cst_11 {dimension_numbers = #tpu.dot_dimension_numbers<[2], [2], [1], [1], [0, 0, 0, 1, 1, 1], [0], [0]>} : vector<2x128x32xf32>, vector<2x256x32xf32>, vector<2x128x256xf32> -> vector<2x128x256xf32>
    "tpu.trace_stop"() : () -> ()
    %c0_12 = arith.constant 0 : index
    %c0_13 = arith.constant 0 : index
    %c0_14 = arith.constant 0 : index
    %9 = vector.load %arg6[%c0_12, %c0_13, %c0_14] : memref<1x128x256xi8, #tpu.memory_space<vmem>>, vector<1x128x256xi8>
    %10 = vector.shape_cast %9 : vector<1x128x256xi8> to vector<128x256xi8>
    %c0_i8 = arith.constant 0 : i8
    %11 = vector.broadcast %c0_i8 : i8 to vector<128x256xi8>
    %12 = arith.cmpi ne, %10, %11 : vector<128x256xi8>
    %13 = vector.shape_cast %12 : vector<128x256xi1> to vector<1x128x256xi1>
    %cst_15 = arith.constant -1.000000e+09 : f32
    %14 = vector.broadcast %cst_15 : f32 to vector<2x128x256xf32>
    %15 = arith.addf %8, %14 : vector<2x128x256xf32>
    %16 = vector.shape_cast %13 : vector<1x128x256xi1> to vector<1x128x256xi1>
    %17 = vector.broadcast %16 : vector<1x128x256xi1> to vector<2x128x256xi1>
    %18 = arith.select %17, %8, %15 : vector<2x128x256xi1>, vector<2x128x256xf32>
    %c0_16 = arith.constant 0 : index
    %c0_17 = arith.constant 0 : index
    %c0_18 = arith.constant 0 : index
    %c0_19 = arith.constant 0 : index
    %19 = vector.load %arg9[%c0_16, %c0_17, %c0_18, %c0_19] : memref<1x2x128x256xf32, #tpu.memory_space<vmem>>, vector<1x2x128x256xf32>
    %20 = vector.shape_cast %19 : vector<1x2x128x256xf32> to vector<2x128x256xf32>
    %21 = vector.shape_cast %18 : vector<2x128x256xf32> to vector<1x2x128x256xf32>
    tpu.vector_store %arg9[%c0_16, %c0_17, %c0_18, %c0_19], %21 {strides = array<i32>} : memref<1x2x128x256xf32, #tpu.memory_space<vmem>>, vector<1x2x128x256xf32>,
    %cst_20 = arith.constant dense<0xFF800000> : vector<2x128xf32>
    %22 = vector.multi_reduction <maximumf>, %18, %cst_20 [2] : vector<2x128x256xf32> to vector<2x128xf32>
    %23 = vector.shape_cast %22 : vector<2x128xf32> to vector<2x128x1xf32>
    %24 = vector.broadcast %23 : vector<2x128x1xf32> to vector<2x128x256xf32>
    %25 = arith.subf %18, %24 : vector<2x128x256xf32>
    %26 = math.exp %25 : vector<2x128x256xf32>
    %cst_21 = arith.constant dense<0.000000e+00> : vector<2x128xf32>
    %27 = vector.multi_reduction <add>, %26, %cst_21 [2] : vector<2x128x256xf32> to vector<2x128xf32>
    %28 = vector.shape_cast %27 : vector<2x128xf32> to vector<2x128x1xf32>
    %29 = tpu.reciprocal %28 {approx = true} : vector<2x128x1xf32> -> vector<2x128x1xf32>
    %30 = vector.broadcast %29 : vector<2x128x1xf32> to vector<2x128x256xf32>
    %31 = arith.mulf %26, %30 : vector<2x128x256xf32>
    %c0_22 = arith.constant 0 : index
    %c0_23 = arith.constant 0 : index
    %c0_24 = arith.constant 0 : index
    %c0_25 = arith.constant 0 : index
    %32 = vector.load %arg8[%c0_22, %c0_23, %c0_24, %c0_25] : memref<1x2x128x256xf32, #tpu.memory_space<vmem>>, vector<1x2x128x256xf32>
    %33 = vector.shape_cast %32 : vector<1x2x128x256xf32> to vector<2x128x256xf32>
    %34 = vector.shape_cast %31 : vector<2x128x256xf32> to vector<1x2x128x256xf32>
    tpu.vector_store %arg8[%c0_22, %c0_23, %c0_24, %c0_25], %34 {strides = array<i32>} : memref<1x2x128x256xf32, #tpu.memory_space<vmem>>, vector<1x2x128x256xf32>,
    "tpu.trace_start"() <{level = 10 : i32, message = "hqk,hkd->hqd"}> : () -> ()
    %cst_26 = arith.constant dense<0.000000e+00> : vector<2x128x32xf32>
    %35 = tpu.matmul %31, %7, %cst_26 {dimension_numbers = #tpu.dot_dimension_numbers<[2], [1], [1], [2], [0, 0, 0, 1, 1, 2], [0], [0]>} : vector<2x128x256xf32>, vector<2x256x32xf32>, vector<2x128x32xf32> -> vector<2x128x32xf32>
    "tpu.trace_stop"() : () -> ()
    %c0_27 = arith.constant 0 : index
    %c0_28 = arith.constant 0 : index
    %c0_29 = arith.constant 0 : index
    %c0_30 = arith.constant 0 : index
    %36 = vector.load %arg7[%c0_27, %c0_28, %c0_29, %c0_30] : memref<1x2x128x32xf32, #tpu.memory_space<vmem>>, vector<1x2x128x32xf32>
    %37 = vector.shape_cast %36 : vector<1x2x128x32xf32> to vector<2x128x32xf32>
    %38 = vector.shape_cast %35 : vector<2x128x32xf32> to vector<1x2x128x32xf32>
    tpu.vector_store %arg7[%c0_27, %c0_28, %c0_29, %c0_30], %38 {strides = array<i32>} : memref<1x2x128x32xf32, #tpu.memory_space<vmem>>, vector<1x2x128x32xf32>,
    return
  }
  func.func @transform_0(%arg0: i32, %arg1: i32, %arg2: i32) -> (i32, i32, i32, i32) {
    %c0_i32 = arith.constant 0 : i32
    %c0_i32_0 = arith.constant 0 : i32
    return %arg0, %arg1, %arg2, %c0_i32 : i32, i32, i32, i32
  }
  func.func @transform_1(%arg0: i32, %arg1: i32, %arg2: i32) -> (i32, i32, i32, i32) {
    %c0_i32 = arith.constant 0 : i32
    %c0_i32_0 = arith.constant 0 : i32
    %c0_i32_1 = arith.constant 0 : i32
    return %arg0, %arg1, %c0_i32, %c0_i32_0 : i32, i32, i32, i32
  }
  func.func @transform_2(%arg0: i32, %arg1: i32, %arg2: i32) -> (i32, i32, i32, i32) {
    %c0_i32 = arith.constant 0 : i32
    %c0_i32_0 = arith.constant 0 : i32
    %c0_i32_1 = arith.constant 0 : i32
    return %arg0, %arg1, %c0_i32, %c0_i32_0 : i32, i32, i32, i32
  }
  func.func @transform_3(%arg0: i32, %arg1: i32, %arg2: i32) -> (i32, i32, i32) {
    %c0_i32 = arith.constant 0 : i32
    %c0_i32_0 = arith.constant 0 : i32
    return %arg0, %arg2, %c0_i32 : i32, i32, i32
  }
  func.func @transform_4(%arg0: i32, %arg1: i32, %arg2: i32) -> (i32, i32, i32, i32) {
    %c0_i32 = arith.constant 0 : i32
    %c0_i32_0 = arith.constant 0 : i32
    return %arg0, %arg1, %arg2, %c0_i32 : i32, i32, i32, i32
  }
  func.func @transform_5(%arg0: i32, %arg1: i32, %arg2: i32) -> (i32, i32, i32, i32) {
    %c0_i32 = arith.constant 0 : i32
    %c0_i32_0 = arith.constant 0 : i32
    return %arg0, %arg1, %arg2, %c0_i32 : i32, i32, i32, i32
  }
  func.func @transform_6(%arg0: i32, %arg1: i32, %arg2: i32) -> (i32, i32, i32, i32) {
    %c0_i32 = arith.constant 0 : i32
    %c0_i32_0 = arith.constant 0 : i32
    return %arg0, %arg1, %arg2, %c0_i32 : i32, i32, i32, i32
  }
}

</mosaic_0001>

<llo_original>
// kernel: tpu_custom_call.1
$region0: #{tpu_custom_call.1}
  #allocation0 [shape = 'u32[]', space=smem, size = 0x4, offset = 0x4, fixed_abs, tag = 'smem constant byte address 0x4 - core index']
  #allocation1 [shape = 'u32[144,128]{1,0:T(1,128)}', space=vmem, size = 0x12000, scoped, tag = 'internal scratch']
  #allocation8 [shape = 's32[]', space=sflag, size = 0x4, offset = 0, fixed_abs, tag = 'sflag constant byte address 0x0 - dummy sync flag']
  #allocation10 [shape = 's32[]', space=sflag, size = 0x4, offset = 0, fixed_abs, tag = 'sflag constant byte address 0x0 - dummy sync flag']
  %s0 = inlined_call_operand.vmem [shape: f32[2,2,256,32], index: 0, kind: input, shape index: {}]
  %s1 = inlined_call_operand.vmem [shape: f32[2,2,256,32], index: 1, kind: input, shape index: {}]
  %s2 = inlined_call_operand.vmem [shape: f32[2,2,256,32], index: 2, kind: input, shape index: {}]
  %s3 = inlined_call_operand.vmem [shape: s8[2,256,256], index: 3, kind: input, shape index: {}]
  %s4 = inlined_call_operand.vmem [shape: f32[2,2,256,32], index: 4, kind: output, shape index: {0}]
  %s5 = inlined_call_operand.hbm [shape: f32[2,2,256,256], index: 5, kind: output, shape index: {1}]
  %s6 = inlined_call_operand.hbm [shape: f32[2,2,256,256], index: 6, kind: output, shape index: {2}]
  %7 = xla_tuple %s4, %s5, %s6
  %s8 = sld [smem:[#allocation0]]
  $region137: #{tpu_custom_call.1} parent=0
    _
  %s10 = ssub.s32 1, %s8
  %s11 = scalar_select 0, %s10, %s8
  $region1: #{tpu_custom_call.1} parent=0
    #allocation2 [shape = 'u8[262144]{0}', space=vmem, size = 0x40000, scoped, tag = 'input window, operand 0']
    #allocation3 [shape = 'u8[262144]{0}', space=vmem, size = 0x40000, scoped, tag = 'output window, operand 0']
    #allocation4 [shape = 'u8[524288]{0}', space=vmem, size = 0x80000, scoped, tag = 'output window, operand 1']
    #allocation5 [shape = 's32[2]{0}', space=sflag, size = 0x8, scoped, tag = 'scoped memory for tpu_custom_call.1']
    #allocation6 [shape = 'u8[524288]{0}', space=vmem, size = 0x80000, scoped, tag = 'output window, operand 2']
    #allocation7 [shape = 's32[2]{0}', space=sflag, size = 0x8, scoped, tag = 'scoped memory for tpu_custom_call.1']
    %12 = vsyncpa [#allocation5], 0
    %s13 = scalar_lea.sflag [#allocation5], 1
    %14 = vsyncpa %s13, 0
    %15 = vsyncpa [#allocation7], 0
    %s16 = scalar_lea.sflag [#allocation7], 1
    %17 = vsyncpa %s16, 0
    loop: start=0, step=1, limit=6
    $region2: #{tpu_custom_call.1} parent=1 // loop_pre_header
      _
    $region3: #{tpu_custom_call.1} parent=1 // loop_header
      %s19 = sphi 0, %s23
      %p20 = scmp.ge.s32.totalorder %s19, 6
      %s26 = sphi 0, %s45
      %s27 = sphi 0, %s41
      %s28 = sphi 0, %s37
      %s29 = sphi 0, %s26
      %s30 = sphi 0, %s27
      %s31 = sphi 0, %s28
      %s32 = sphi 0, %s29
      %s33 = sphi 0, %s30
      %s34 = sphi 0, %s31
      %s52 = sphi 0, %s54
      %s55 = sphi 0, %s52
      %s56 = sphi 0, %s55
      %s72 = sphi 0, %s56
      %s80 = sphi 0, %s82
      %s83 = sphi 0, %s80
      %s84 = sphi 0, %s83
      %s100 = sphi 0, %s84
      %s108 = sphi 0, %s110
      %s111 = sphi 0, %s108
      %s112 = sphi 0, %s111
      %s128 = sphi 0, %s112
      %s136 = sphi 0, %s138
      %s139 = sphi 0, %s136
      %s140 = sphi 0, %s139
      %s156 = sphi 0, %s140
      %s166 = sphi 0, %s168
      %s169 = sphi 0, %s166
      %s170 = sphi 0, %s169
      %s186 = sphi 0, %s170
      %s196 = sphi 0, %s198
      %s199 = sphi 0, %s196
      %s200 = sphi 0, %s199
      %s216 = sphi 0, %s200
      %s226 = sphi 0, %s228
      %s229 = sphi 0, %s226
      %s230 = sphi 0, %s229
      %s246 = sphi 0, %s230
    $region4: #{tpu_custom_call.1} parent=1 // loop_header_branch
      %22 = sbr.rel (%p20) target = $region8
    $region5: #{tpu_custom_call.1} parent=1 // loop_body
      %s24 = ssub.s32 %s19, 1
      %s25 = ssub.s32 %s19, 2
      %s35 = sadd.s32 1, %s28
      %p36 = scmp.ge.s32.totalorder %s35, 2
      %s37 = scalar_select %p36, 0, %s35
      %s38 = sadd.s32 1, %s27
      %s39 = scalar_select %p36, %s38, %s27
      %p40 = scmp.ge.s32.totalorder %s39, 1
      %s41 = scalar_select %p40, 0, %s39
      %s42 = sadd.s32 1, %s26
      %s43 = scalar_select %p40, %s42, %s26
      %p44 = scmp.ge.s32.totalorder %s43, 2
      %s45 = scalar_select %p44, 0, %s43
      %s46 = ssub.s32 %s26, %s45
      %s47 = ssub.s32 %s27, %s41
      %s48 = sor.u32 %s46, %s47
      %s49 = ssub.s32 %s28, %s37
      %s50 = sor.u32 %s48, %s49
      %p51 = scmp.eq.s32.totalorder %s50, 0
      %s53 = sadd.s32 %s52, 1
      %s54 = scalar_select %p51, %s52, %s53
      %p57 = pneg %p51
      %p58 = scmp.eq.s32.totalorder %s19, 3
      %p59 = por %p57, %p58
      %p60 = scmp.ne.s32.totalorder %s52, %s55
      %p61 = scmp.eq.s32.totalorder %s19, 0
      %p62 = por %p60, %p61
      %p63 = scmp.ne.s32.totalorder %s52, %s55
      %p64 = scmp.eq.s32.totalorder %s24, 3
      %p65 = por %p63, %p64
      %p66 = scmp.ne.s32.totalorder %s55, %s56
      %p67 = scmp.eq.s32.totalorder %s24, 0
      %p68 = por %p66, %p67
      %p69 = scmp.ne.s32.totalorder %s55, %s56
      %p70 = scmp.eq.s32.totalorder %s25, 3
      %p71 = por %p69, %p70
      %p73 = scmp.ne.s32.totalorder %s56, %s72
      %p74 = scmp.eq.s32.totalorder %s25, 0
      %p75 = por %p73, %p74
      %s76 = ssub.s32 %s26, %s45
      %s77 = ssub.s32 %s27, %s41
      %s78 = sor.u32 %s76, %s77
      %p79 = scmp.eq.s32.totalorder %s78, 0
      %s81 = sadd.s32 %s80, 1
      %s82 = scalar_select %p79, %s80, %s81
      %p85 = pneg %p79
      %p86 = scmp.eq.s32.totalorder %s19, 3
      %p87 = por %p85, %p86
      %p88 = scmp.ne.s32.totalorder %s80, %s83
      %p89 = scmp.eq.s32.totalorder %s19, 0
      %p90 = por %p88, %p89
      %p91 = scmp.ne.s32.totalorder %s80, %s83
      %p92 = scmp.eq.s32.totalorder %s24, 3
      %p93 = por %p91, %p92
      %p94 = scmp.ne.s32.totalorder %s83, %s84
      %p95 = scmp.eq.s32.totalorder %s24, 0
      %p96 = por %p94, %p95
      %p97 = scmp.ne.s32.totalorder %s83, %s84
      %p98 = scmp.eq.s32.totalorder %s25, 3
      %p99 = por %p97, %p98
      %p101 = scmp.ne.s32.totalorder %s84, %s100
      %p102 = scmp.eq.s32.totalorder %s25, 0
      %p103 = por %p101, %p102
      %s104 = ssub.s32 %s26, %s45
      %s105 = ssub.s32 %s27, %s41
      %s106 = sor.u32 %s104, %s105
      %p107 = scmp.eq.s32.totalorder %s106, 0
      %s109 = sadd.s32 %s108, 1
      %s110 = scalar_select %p107, %s108, %s109
      %p113 = pneg %p107
      %p114 = scmp.eq.s32.totalorder %s19, 3
      %p115 = por %p113, %p114
      %p116 = scmp.ne.s32.totalorder %s108, %s111
      %p117 = scmp.eq.s32.totalorder %s19, 0
      %p118 = por %p116, %p117
      %p119 = scmp.ne.s32.totalorder %s108, %s111
      %p120 = scmp.eq.s32.totalorder %s24, 3
      %p121 = por %p119, %p120
      %p122 = scmp.ne.s32.totalorder %s111, %s112
      %p123 = scmp.eq.s32.totalorder %s24, 0
      %p124 = por %p122, %p123
      %p125 = scmp.ne.s32.totalorder %s111, %s112
      %p126 = scmp.eq.s32.totalorder %s25, 3
      %p127 = por %p125, %p126
      %p129 = scmp.ne.s32.totalorder %s112, %s128
      %p130 = scmp.eq.s32.totalorder %s25, 0
      %p131 = por %p129, %p130
      %s132 = ssub.s32 %s26, %s45
      %s133 = ssub.s32 %s28, %s37
      %s134 = sor.u32 %s132, %s133
      %p135 = scmp.eq.s32.totalorder %s134, 0
      %s137 = sadd.s32 %s136, 1
      %s138 = scalar_select %p135, %s136, %s137
      %p141 = pneg %p135
      %p142 = scmp.eq.s32.totalorder %s19, 3
      %p143 = por %p141, %p142
      %p144 = scmp.ne.s32.totalorder %s136, %s139
      %p145 = scmp.eq.s32.totalorder %s19, 0
      %p146 = por %p144, %p145
      %p147 = scmp.ne.s32.totalorder %s136, %s139
      %p148 = scmp.eq.s32.totalorder %s24, 3
      %p149 = por %p147, %p148
      %p150 = scmp.ne.s32.totalorder %s139, %s140
      %p151 = scmp.eq.s32.totalorder %s24, 0
      %p152 = por %p150, %p151
      %p153 = scmp.ne.s32.totalorder %s139, %s140
      %p154 = scmp.eq.s32.totalorder %s25, 3
      %p155 = por %p153, %p154
      %p157 = scmp.ne.s32.totalorder %s140, %s156
      %p158 = scmp.eq.s32.totalorder %s25, 0
      %p159 = por %p157, %p158
      %s160 = ssub.s32 %s26, %s45
      %s161 = ssub.s32 %s27, %s41
      %s162 = sor.u32 %s160, %s161
      %s163 = ssub.s32 %s28, %s37
      %s164 = sor.u32 %s162, %s163
      %p165 = scmp.eq.s32.totalorder %s164, 0
      %s167 = sadd.s32 %s166, 1
      %s168 = scalar_select %p165, %s166, %s167
      %p171 = pneg %p165
      %p172 = scmp.eq.s32.totalorder %s19, 3
      %p173 = por %p171, %p172
      %p174 = scmp.ne.s32.totalorder %s166, %s169
      %p175 = scmp.eq.s32.totalorder %s19, 0
      %p176 = por %p174, %p175
      %p177 = scmp.ne.s32.totalorder %s166, %s169
      %p178 = scmp.eq.s32.totalorder %s24, 3
      %p179 = por %p177, %p178
      %p180 = scmp.ne.s32.totalorder %s169, %s170
      %p181 = scmp.eq.s32.totalorder %s24, 0
      %p182 = por %p180, %p181
      %p183 = scmp.ne.s32.totalorder %s169, %s170
      %p184 = scmp.eq.s32.totalorder %s25, 3
      %p185 = por %p183, %p184
      %p187 = scmp.ne.s32.totalorder %s170, %s186
      %p188 = scmp.eq.s32.totalorder %s25, 0
      %p189 = por %p187, %p188
      %s190 = ssub.s32 %s26, %s45
      %s191 = ssub.s32 %s27, %s41
      %s192 = sor.u32 %s190, %s191
      %s193 = ssub.s32 %s28, %s37
      %s194 = sor.u32 %s192, %s193
      %p195 = scmp.eq.s32.totalorder %s194, 0
      %s197 = sadd.s32 %s196, 1
      %s198 = scalar_select %p195, %s196, %s197
      %p201 = pneg %p195
      %p202 = scmp.eq.s32.totalorder %s19, 3
      %p203 = por %p201, %p202
      %p204 = scmp.ne.s32.totalorder %s196, %s199
      %p205 = scmp.eq.s32.totalorder %s19, 0
      %p206 = por %p204, %p205
      %p207 = scmp.ne.s32.totalorder %s196, %s199
      %p208 = scmp.eq.s32.totalorder %s24, 3
      %p209 = por %p207, %p208
      %p210 = scmp.ne.s32.totalorder %s199, %s200
      %p211 = scmp.eq.s32.totalorder %s24, 0
      %p212 = por %p210, %p211
      %p213 = scmp.ne.s32.totalorder %s199, %s200
      %p214 = scmp.eq.s32.totalorder %s25, 3
      %p215 = por %p213, %p214
      %p217 = scmp.ne.s32.totalorder %s200, %s216
      %p218 = scmp.eq.s32.totalorder %s25, 0
      %p219 = por %p217, %p218
      %s220 = ssub.s32 %s26, %s45
      %s221 = ssub.s32 %s27, %s41
      %s222 = sor.u32 %s220, %s221
      %s223 = ssub.s32 %s28, %s37
      %s224 = sor.u32 %s222, %s223
      %p225 = scmp.eq.s32.totalorder %s224, 0
      %s227 = sadd.s32 %s226, 1
      %s228 = scalar_select %p225, %s226, %s227
      %p231 = pneg %p225
      %p232 = scmp.eq.s32.totalorder %s19, 3
      %p233 = por %p231, %p232
      %p234 = scmp.ne.s32.totalorder %s226, %s229
      %p235 = scmp.eq.s32.totalorder %s19, 0
      %p236 = por %p234, %p235
      %p237 = scmp.ne.s32.totalorder %s226, %s229
      %p238 = scmp.eq.s32.totalorder %s24, 3
      %p239 = por %p237, %p238
      %p240 = scmp.ne.s32.totalorder %s229, %s230
      %p241 = scmp.eq.s32.totalorder %s24, 0
      %p242 = por %p240, %p241
      %p243 = scmp.ne.s32.totalorder %s229, %s230
      %p244 = scmp.eq.s32.totalorder %s25, 3
      %p245 = por %p243, %p244
      %p247 = scmp.ne.s32.totalorder %s230, %s246
      %p248 = scmp.eq.s32.totalorder %s25, 0
      %p249 = por %p247, %p248
      %p250 = scmp.le.s32.totalorder 1, %s19
      %p251 = scmp.lt.s32.totalorder %s19, 5
      %p252 = pnand %p250, %p251
      %p253 = pneg %p252
      // Predicated region
      $region9: #{tpu_custom_call.1} parent=5 // pred_check
        _
      $region10: #{tpu_custom_call.1} parent=5 // pred_check_branch
        %255 = sbr.rel (%p252) target = $region12
      $region11: #{tpu_custom_call.1} parent=5 // pred_region
        %s256 = ssub.s32 %s19, 1
      $region12: #{tpu_custom_call.1} parent=5 // pred_fallthru
        _
      %p257 = scmp.lt.s32.totalorder %s19, 4
      // Predicated region
      $region13: #{tpu_custom_call.1} parent=5 // pred_check
        %p258 = pneg %p257
      $region14: #{tpu_custom_call.1} parent=5 // pred_check_branch
        %260 = sbr.rel (%p258) target = $region16
      $region15: #{tpu_custom_call.1} parent=5 // pred_region
        // Predicated region
        $region17: #{tpu_custom_call.1} parent=15 // pred_check
          %p261 = pneg %p62
        $region18: #{tpu_custom_call.1} parent=15 // pred_check_branch
          %263 = sbr.rel (%p261) target = $region20
        $region19: #{tpu_custom_call.1} parent=15 // pred_region
          %s264 = sand.u32 %s52, 1
          %s265 = sand.u32 %s52, 1
          %s266 = smul.addr %s265, 256
          %s267 = scalar_lea.vmem [#allocation2], %s266
          %s268 = smul.u32 2, %s27
          %s269 = smul.u32 16, %s28
          %s270 = smul.addr %s268, 32
          %s271 = sadd.s32 %s269, %s270
          %s272 = smul.addr %s26, 64
          %s273 = sadd.s32 %s271, %s272
          %s274 = smul.addr %s273, 8
          %s275 = scalar_lea.vmem %s0, %s274
          // Predicated region
          $region21: #{tpu_custom_call.1} parent=19 // pred_check
            _
          $region22: #{tpu_custom_call.1} parent=19 // pred_check_branch
            %277 = sbr.rel (0) target = $region24
          $region23: #{tpu_custom_call.1} parent=19 // pred_region
            // Predicated region
            $region25: #{tpu_custom_call.1} parent=23 // pred_check
              _
            $region26: #{tpu_custom_call.1} parent=23 // pred_check_branch
              %279 = sbr.rel (0) target = $region28
            $region27: #{tpu_custom_call.1} parent=23 // pred_region
              // Predicated region
              $region40: #{tpu_custom_call.1} parent=27 // pred_check
                _
              $region41: #{tpu_custom_call.1} parent=27 // pred_check_branch
                %356 = sbr.rel (0) target = $region43
              $region42: #{tpu_custom_call.1} parent=27 // pred_region
                loop: start=0, step=1, limit=1
                $region44: #{tpu_custom_call.1} parent=42 // loop_pre_header
                  _
                $region45: #{tpu_custom_call.1} parent=42 // loop_header
                  %s358 = sphi 0, %s362
                  %p359 = scmp.ge.s32.totalorder %s358, 1
                  %s363 = sphi %s275, %s275
                  %s364 = sphi %s267, %s267
                $region46: #{tpu_custom_call.1} parent=42 // loop_header_branch
                  %361 = sbr.rel (%p359) target = $region50
                $region47: #{tpu_custom_call.1} parent=42 // loop_body
                  %v365 = vld [vmem:[%s363] sm:$0xff]
                  %366 = vst [vmem:[%s364] sm:$0xff] %v365
                  %v367 = vld [vmem:[%s363 + $0x8] sm:$0xff]
                  %368 = vst [vmem:[%s364 + $0x8] sm:$0xff] %v367
                  %v369 = vld [vmem:[%s363 + $0x10] sm:$0xff]
                  %370 = vst [vmem:[%s364 + $0x10] sm:$0xff] %v369
                  %v371 = vld [vmem:[%s363 + $0x18] sm:$0xff]
                  %372 = vst [vmem:[%s364 + $0x18] sm:$0xff] %v371
                  %v373 = vld [vmem:[%s363 + $0x20] sm:$0xff]
                  %374 = vst [vmem:[%s364 + $0x20] sm:$0xff] %v373
                  %v375 = vld [vmem:[%s363 + $0x28] sm:$0xff]
                  %376 = vst [vmem:[%s364 + $0x28] sm:$0xff] %v375
                  %v377 = vld [vmem:[%s363 + $0x30] sm:$0xff]
                  %378 = vst [vmem:[%s364 + $0x30] sm:$0xff] %v377
                  %v379 = vld [vmem:[%s363 + $0x38] sm:$0xff]
                  %380 = vst [vmem:[%s364 + $0x38] sm:$0xff] %v379
                  %v381 = vld [vmem:[%s363 + $0x40] sm:$0xff]
                  %382 = vst [vmem:[%s364 + $0x40] sm:$0xff] %v381
                  %v383 = vld [vmem:[%s363 + $0x48] sm:$0xff]
                  %384 = vst [vmem:[%s364 + $0x48] sm:$0xff] %v383
                  %v385 = vld [vmem:[%s363 + $0x50] sm:$0xff]
                  %386 = vst [vmem:[%s364 + $0x50] sm:$0xff] %v385
                  %v387 = vld [vmem:[%s363 + $0x58] sm:$0xff]
                  %388 = vst [vmem:[%s364 + $0x58] sm:$0xff] %v387
                  %v389 = vld [vmem:[%s363 + $0x60] sm:$0xff]
                  %390 = vst [vmem:[%s364 + $0x60] sm:$0xff] %v389
                  %v391 = vld [vmem:[%s363 + $0x68] sm:$0xff]
                  %392 = vst [vmem:[%s364 + $0x68] sm:$0xff] %v391
                  %v393 = vld [vmem:[%s363 + $0x70] sm:$0xff]
                  %394 = vst [vmem:[%s364 + $0x70] sm:$0xff] %v393
                  %v395 = vld [vmem:[%s363 + $0x78] sm:$0xff]
                  %396 = vst [vmem:[%s364 + $0x78] sm:$0xff] %v395
                  %v397 = vld [vmem:[%s363 + $0x100] sm:$0xff]
                  %398 = vst [vmem:[%s364 + $0x80] sm:$0xff] %v397
                  %v399 = vld [vmem:[%s363 + $0x108] sm:$0xff]
                  %400 = vst [vmem:[%s364 + $0x88] sm:$0xff] %v399
                  %v401 = vld [vmem:[%s363 + $0x110] sm:$0xff]
                  %402 = vst [vmem:[%s364 + $0x90] sm:$0xff] %v401
                  %v403 = vld [vmem:[%s363 + $0x118] sm:$0xff]
                  %404 = vst [vmem:[%s364 + $0x98] sm:$0xff] %v403
                  %v405 = vld [vmem:[%s363 + $0x120] sm:$0xff]
                  %406 = vst [vmem:[%s364 + $0xa0] sm:$0xff] %v405
                  %v407 = vld [vmem:[%s363 + $0x128] sm:$0xff]
                  %408 = vst [vmem:[%s364 + $0xa8] sm:$0xff] %v407
                  %v409 = vld [vmem:[%s363 + $0x130] sm:$0xff]
                  %410 = vst [vmem:[%s364 + $0xb0] sm:$0xff] %v409
                  %v411 = vld [vmem:[%s363 + $0x138] sm:$0xff]
                  %412 = vst [vmem:[%s364 + $0xb8] sm:$0xff] %v411
                  %v413 = vld [vmem:[%s363 + $0x140] sm:$0xff]
                  %414 = vst [vmem:[%s364 + $0xc0] sm:$0xff] %v413
                  %v415 = vld [vmem:[%s363 + $0x148] sm:$0xff]
                  %416 = vst [vmem:[%s364 + $0xc8] sm:$0xff] %v415
                  %v417 = vld [vmem:[%s363 + $0x150] sm:$0xff]
                  %418 = vst [vmem:[%s364 + $0xd0] sm:$0xff] %v417
                  %v419 = vld [vmem:[%s363 + $0x158] sm:$0xff]
                  %420 = vst [vmem:[%s364 + $0xd8] sm:$0xff] %v419
                  %v421 = vld [vmem:[%s363 + $0x160] sm:$0xff]
                  %422 = vst [vmem:[%s364 + $0xe0] sm:$0xff] %v421
                  %v423 = vld [vmem:[%s363 + $0x168] sm:$0xff]
                  %424 = vst [vmem:[%s364 + $0xe8] sm:$0xff] %v423
                  %v425 = vld [vmem:[%s363 + $0x170] sm:$0xff]
                  %426 = vst [vmem:[%s364 + $0xf0] sm:$0xff] %v425
                  %v427 = vld [vmem:[%s363 + $0x178] sm:$0xff]
                  %428 = vst [vmem:[%s364 + $0xf8] sm:$0xff] %v427
                $region48: #{tpu_custom_call.1} parent=42 // loop_footer
                  %s362 = sadd.s32 1, %s358
                $region49: #{tpu_custom_call.1} parent=42 // loop_footer_branch
                  %357 = sbr.rel target = $region45
                $region50: #{tpu_custom_call.1} parent=42 // loop_exit
                  _
              $region43: #{tpu_custom_call.1} parent=27 // pred_fallthru
                _
              // Predicated region
              $region51: #{tpu_custom_call.1} parent=27 // pred_check
                _
              $region52: #{tpu_custom_call.1} parent=27 // pred_check_branch
                %430 = sbr.rel target = $region54
              $region53: #{tpu_custom_call.1} parent=27 // pred_region
                _
              $region54: #{tpu_custom_call.1} parent=27 // pred_fallthru
                _
            $region28: #{tpu_custom_call.1} parent=23 // pred_fallthru
              _
            // Predicated region
            $region29: #{tpu_custom_call.1} parent=23 // pred_check
              _
            $region30: #{tpu_custom_call.1} parent=23 // pred_check_branch
              %281 = sbr.rel target = $region32
            $region31: #{tpu_custom_call.1} parent=23 // pred_region
              loop: start=0, step=1, limit=1
              $region33: #{tpu_custom_call.1} parent=31 // loop_pre_header
                _
              $region34: #{tpu_custom_call.1} parent=31 // loop_header
                %s284 = sphi 0, %s288
                %p285 = scmp.ge.s32.totalorder %s284, 1
                %s289 = sphi %s275, %s275
                %s290 = sphi %s267, %s267
              $region35: #{tpu_custom_call.1} parent=31 // loop_header_branch
                %287 = sbr.rel (%p285) target = $region39
              $region36: #{tpu_custom_call.1} parent=31 // loop_body
                %v291 = vld [vmem:[%s289] sm:$0xff]
                %292 = vst [vmem:[%s290] sm:$0xff] %v291
                %v293 = vld [vmem:[%s289 + $0x8] sm:$0xff]
                %294 = vst [vmem:[%s290 + $0x8] sm:$0xff] %v293
                %v295 = vld [vmem:[%s289 + $0x10] sm:$0xff]
                %296 = vst [vmem:[%s290 + $0x10] sm:$0xff] %v295
                %v297 = vld [vmem:[%s289 + $0x18] sm:$0xff]
                %298 = vst [vmem:[%s290 + $0x18] sm:$0xff] %v297
                %v299 = vld [vmem:[%s289 + $0x20] sm:$0xff]
                %300 = vst [vmem:[%s290 + $0x20] sm:$0xff] %v299
                %v301 = vld [vmem:[%s289 + $0x28] sm:$0xff]
                %302 = vst [vmem:[%s290 + $0x28] sm:$0xff] %v301
                %v303 = vld [vmem:[%s289 + $0x30] sm:$0xff]
                %304 = vst [vmem:[%s290 + $0x30] sm:$0xff] %v303
                %v305 = vld [vmem:[%s289 + $0x38] sm:$0xff]
                %306 = vst [vmem:[%s290 + $0x38] sm:$0xff] %v305
                %v307 = vld [vmem:[%s289 + $0x40] sm:$0xff]
                %308 = vst [vmem:[%s290 + $0x40] sm:$0xff] %v307
                %v309 = vld [vmem:[%s289 + $0x48] sm:$0xff]
                %310 = vst [vmem:[%s290 + $0x48] sm:$0xff] %v309
                %v311 = vld [vmem:[%s289 + $0x50] sm:$0xff]
                %312 = vst [vmem:[%s290 + $0x50] sm:$0xff] %v311
                %v313 = vld [vmem:[%s289 + $0x58] sm:$0xff]
                %314 = vst [vmem:[%s290 + $0x58] sm:$0xff] %v313
                %v315 = vld [vmem:[%s289 + $0x60] sm:$0xff]
                %316 = vst [vmem:[%s290 + $0x60] sm:$0xff] %v315
                %v317 = vld [vmem:[%s289 + $0x68] sm:$0xff]
                %318 = vst [vmem:[%s290 + $0x68] sm:$0xff] %v317
                %v319 = vld [vmem:[%s289 + $0x70] sm:$0xff]
                %320 = vst [vmem:[%s290 + $0x70] sm:$0xff] %v319
                %v321 = vld [vmem:[%s289 + $0x78] sm:$0xff]
                %322 = vst [vmem:[%s290 + $0x78] sm:$0xff] %v321
                %v323 = vld [vmem:[%s289 + $0x100] sm:$0xff]
                %324 = vst [vmem:[%s290 + $0x80] sm:$0xff] %v323
                %v325 = vld [vmem:[%s289 + $0x108] sm:$0xff]
                %326 = vst [vmem:[%s290 + $0x88] sm:$0xff] %v325
                %v327 = vld [vmem:[%s289 + $0x110] sm:$0xff]
                %328 = vst [vmem:[%s290 + $0x90] sm:$0xff] %v327
                %v329 = vld [vmem:[%s289 + $0x118] sm:$0xff]
                %330 = vst [vmem:[%s290 + $0x98] sm:$0xff] %v329
                %v331 = vld [vmem:[%s289 + $0x120] sm:$0xff]
                %332 = vst [vmem:[%s290 + $0xa0] sm:$0xff] %v331
                %v333 = vld [vmem:[%s289 + $0x128] sm:$0xff]
                %334 = vst [vmem:[%s290 + $0xa8] sm:$0xff] %v333
                %v335 = vld [vmem:[%s289 + $0x130] sm:$0xff]
                %336 = vst [vmem:[%s290 + $0xb0] sm:$0xff] %v335
                %v337 = vld [vmem:[%s289 + $0x138] sm:$0xff]
                %338 = vst [vmem:[%s290 + $0xb8] sm:$0xff] %v337
                %v339 = vld [vmem:[%s289 + $0x140] sm:$0xff]
                %340 = vst [vmem:[%s290 + $0xc0] sm:$0xff] %v339
                %v341 = vld [vmem:[%s289 + $0x148] sm:$0xff]
                %342 = vst [vmem:[%s290 + $0xc8] sm:$0xff] %v341
                %v343 = vld [vmem:[%s289 + $0x150] sm:$0xff]
                %344 = vst [vmem:[%s290 + $0xd0] sm:$0xff] %v343
                %v345 = vld [vmem:[%s289 + $0x158] sm:$0xff]
                %346 = vst [vmem:[%s290 + $0xd8] sm:$0xff] %v345
                %v347 = vld [vmem:[%s289 + $0x160] sm:$0xff]
                %348 = vst [vmem:[%s290 + $0xe0] sm:$0xff] %v347
                %v349 = vld [vmem:[%s289 + $0x168] sm:$0xff]
                %350 = vst [vmem:[%s290 + $0xe8] sm:$0xff] %v349
                %v351 = vld [vmem:[%s289 + $0x170] sm:$0xff]
                %352 = vst [vmem:[%s290 + $0xf0] sm:$0xff] %v351
                %v353 = vld [vmem:[%s289 + $0x178] sm:$0xff]
                %354 = vst [vmem:[%s290 + $0xf8] sm:$0xff] %v353
              $region37: #{tpu_custom_call.1} parent=31 // loop_footer
                %s288 = sadd.s32 1, %s284
              $region38: #{tpu_custom_call.1} parent=31 // loop_footer_branch
                %283 = sbr.rel target = $region34
              $region39: #{tpu_custom_call.1} parent=31 // loop_exit
                _
            $region32: #{tpu_custom_call.1} parent=23 // pred_fallthru
              _
          $region24: #{tpu_custom_call.1} parent=19 // pred_fallthru
            _
          %431 = vnop
        $region20: #{tpu_custom_call.1} parent=15 // pred_fallthru
          _
        // Predicated region
        $region55: #{tpu_custom_call.1} parent=15 // pred_check
          %p432 = pneg %p90
        $region56: #{tpu_custom_call.1} parent=15 // pred_check_branch
          %434 = sbr.rel (%p432) target = $region58
        $region57: #{tpu_custom_call.1} parent=15 // pred_region
          %s435 = smul.u32 2, %s27
          %p436 = scmp.lt.s32.totalorder %s26, 1
          %s437 = scalar_select %p436, %s26, 1
          %p438 = scmp.lt.s32.totalorder %s435, 1
          %s439 = scalar_select %p438, %s435, 1
          %s440 = smul.addr %s439, 32
          %s441 = smul.addr %s437, 64
          %s442 = sadd.s32 %s440, %s441
          %s443 = smul.addr %s442, 8
          %s444 = scalar_lea.vmem %s1, %s443
          %s445 = smul.u32 2, %s27
        $region58: #{tpu_custom_call.1} parent=15 // pred_fallthru
          _
        // Predicated region
        $region59: #{tpu_custom_call.1} parent=15 // pred_check
          %p446 = pneg %p118
        $region60: #{tpu_custom_call.1} parent=15 // pred_check_branch
          %448 = sbr.rel (%p446) target = $region62
        $region61: #{tpu_custom_call.1} parent=15 // pred_region
          %s449 = smul.u32 2, %s27
          %p450 = scmp.lt.s32.totalorder %s26, 1
          %s451 = scalar_select %p450, %s26, 1
          %p452 = scmp.lt.s32.totalorder %s449, 1
          %s453 = scalar_select %p452, %s449, 1
          %s454 = smul.addr %s453, 32
          %s455 = smul.addr %s451, 64
          %s456 = sadd.s32 %s454, %s455
          %s457 = smul.addr %s456, 8
          %s458 = scalar_lea.vmem %s2, %s457
          %s459 = smul.u32 2, %s27
        $region62: #{tpu_custom_call.1} parent=15 // pred_fallthru
          _
        // Predicated region
        $region63: #{tpu_custom_call.1} parent=15 // pred_check
          %p460 = pneg %p146
        $region64: #{tpu_custom_call.1} parent=15 // pred_check_branch
          %462 = sbr.rel (%p460) target = $region66
        $region65: #{tpu_custom_call.1} parent=15 // pred_region
          %s463 = smul.u32 4, %s28
          %p464 = scmp.lt.s32.totalorder %s26, 1
          %s465 = scalar_select %p464, %s26, 1
          %p466 = scmp.lt.s32.totalorder %s463, 7
          %s467 = scalar_select %p466, %s463, 7
          %s468 = smul.addr %s467, 2
          %s469 = smul.addr %s465, 16
          %s470 = sadd.s32 %s468, %s469
          %s471 = smul.addr %s470, 8
          %s472 = scalar_lea.vmem %s3, %s471
          %s473 = smul.u32 4, %s28
        $region66: #{tpu_custom_call.1} parent=15 // pred_fallthru
          _
      $region16: #{tpu_custom_call.1} parent=5 // pred_fallthru
        _
      %p474 = scmp.le.s32.totalorder 1, %s19
      %p475 = scmp.lt.s32.totalorder %s19, 5
      %p476 = pnand %p474, %p475
      %p477 = pneg %p476
      // Predicated region
      $region67: #{tpu_custom_call.1} parent=5 // pred_check
        _
      $region68: #{tpu_custom_call.1} parent=5 // pred_check_branch
        %479 = sbr.rel (%p476) target = $region70
      $region69: #{tpu_custom_call.1} parent=5 // pred_region
        %s480 = ssub.s32 %s19, 1
        %s481 = sand.u32 %s55, 1
        %s482 = sand.u32 %s55, 1
        %s483 = smul.addr %s482, 256
        %s484 = scalar_lea.vmem [#allocation2], %s483
        // Predicated region
        $region71: #{tpu_custom_call.1} parent=69 // pred_check
          %p485 = pneg %p68
        $region72: #{tpu_custom_call.1} parent=69 // pred_check_branch
          %487 = sbr.rel (%p485) target = $region74
        $region73: #{tpu_custom_call.1} parent=69 // pred_region
          _
        $region74: #{tpu_custom_call.1} parent=69 // pred_fallthru
          _
        %s488 = sand.u32 %s55, 1
        %s489 = sand.u32 %s55, 1
        %s490 = smul.addr %s489, 256
        %s491 = scalar_lea.vmem [#allocation2], %s490
        %p492 = pneg %p68
        %p493 = pneg %p65
        %s494 = smul.u32 2, %s30
        %p495 = scmp.lt.s32.totalorder %s29, 1
        %s496 = scalar_select %p495, %s29, 1
        %p497 = scmp.lt.s32.totalorder %s494, 1
        %s498 = scalar_select %p497, %s494, 1
        %s499 = smul.addr %s498, 32
        %s500 = smul.addr %s496, 64
        %s501 = sadd.s32 %s499, %s500
        %s502 = smul.addr %s501, 8
        %s503 = scalar_lea.vmem %s1, %s502
        %p504 = pneg %p96
        %p505 = pneg %p93
        %s506 = smul.u32 2, %s30
        %p507 = scmp.lt.s32.totalorder %s29, 1
        %s508 = scalar_select %p507, %s29, 1
        %p509 = scmp.lt.s32.totalorder %s506, 1
        %s510 = scalar_select %p509, %s506, 1
        %s511 = smul.addr %s510, 32
        %s512 = smul.addr %s508, 64
        %s513 = sadd.s32 %s511, %s512
        %s514 = smul.addr %s513, 8
        %s515 = scalar_lea.vmem %s2, %s514
        %p516 = pneg %p124
        %p517 = pneg %p121
        %s518 = smul.u32 4, %s31
        %p519 = scmp.lt.s32.totalorder %s29, 1
        %s520 = scalar_select %p519, %s29, 1
        %p521 = scmp.lt.s32.totalorder %s518, 7
        %s522 = scalar_select %p521, %s518, 7
        %s523 = smul.addr %s522, 2
        %s524 = smul.addr %s520, 16
        %s525 = sadd.s32 %s523, %s524
        %s526 = smul.addr %s525, 8
        %s527 = scalar_lea.vmem %s3, %s526
        %p528 = pneg %p152
        %p529 = pneg %p149
        %p530 = pneg %p182
        %p531 = pneg %p179
        %s532 = sand.u32 %s169, 1
        %s533 = sand.u32 %s169, 1
        %s534 = smul.addr %s533, 256
        %s535 = scalar_lea.vmem [#allocation3], %s534
        %p536 = pneg %p212
        %p537 = pneg %p209
        %s538 = sand.u32 %s199, 1
        %s539 = scalar_lea.sflag [#allocation5], %s538
        %s540 = sand.u32 %s199, 1
        %s541 = smul.addr %s540, 512
        %s542 = scalar_lea.vmem [#allocation4], %s541
        %p543 = pneg %p242
        %p544 = pneg %p239
        %s545 = sand.u32 %s229, 1
        %s546 = scalar_lea.sflag [#allocation7], %s545
        %s547 = sand.u32 %s229, 1
        %s548 = smul.addr %s547, 512
        %s549 = scalar_lea.vmem [#allocation6], %s548
        %s550 = smul.u32 2, %s30
        %s551 = smul.u32 16, %s31
        %s552 = smul.u32 2, %s30
        %p553 = scmp.lt.s32.totalorder %s29, 1
        %s554 = scalar_select %p553, %s29, 1
        %p555 = scmp.lt.s32.totalorder %s552, 1
        %s556 = scalar_select %p555, %s552, 1
        %s557 = smul.addr %s556, 32
        %s558 = smul.addr %s554, 64
        %s559 = sadd.s32 %s557, %s558
        %s560 = smul.addr %s559, 8
        %s561 = scalar_lea.vmem %s1, %s560
        %s562 = smul.u32 2, %s30
        %s563 = smul.u32 2, %s30
        %p564 = scmp.lt.s32.totalorder %s29, 1
        %s565 = scalar_select %p564, %s29, 1
        %p566 = scmp.lt.s32.totalorder %s563, 1
        %s567 = scalar_select %p566, %s563, 1
        %s568 = smul.addr %s567, 32
        %s569 = smul.addr %s565, 64
        %s570 = sadd.s32 %s568, %s569
        %s571 = smul.addr %s570, 8
        %s572 = scalar_lea.vmem %s2, %s571
        %s573 = smul.u32 2, %s30
        %s574 = smul.u32 4, %s31
        %p575 = scmp.lt.s32.totalorder %s29, 1
        %s576 = scalar_select %p575, %s29, 1
        %p577 = scmp.lt.s32.totalorder %s574, 7
        %s578 = scalar_select %p577, %s574, 7
        %s579 = smul.addr %s578, 2
        %s580 = smul.addr %s576, 16
        %s581 = sadd.s32 %s579, %s580
        %s582 = smul.addr %s581, 8
        %s583 = scalar_lea.vmem %s3, %s582
        %s584 = smul.u32 4, %s31
        %s585 = smul.u32 2, %s30
        %s586 = smul.u32 16, %s31
        %s587 = smul.u32 2, %s30
        %s588 = smul.u32 16, %s31
        %s589 = smul.u32 2, %s30
        %s590 = smul.u32 16, %s31
        %v593 = vld [vmem:[%s484] sm:$0xff]
        %v594 = vld [vmem:[%s484 + $0x8] sm:$0xff]
        %v595 = vld [vmem:[%s484 + $0x10] sm:$0xff]
        %v596 = vld [vmem:[%s484 + $0x18] sm:$0xff]
        %v597 = vld [vmem:[%s484 + $0x20] sm:$0xff]
        %v598 = vld [vmem:[%s484 + $0x28] sm:$0xff]
        %v599 = vld [vmem:[%s484 + $0x30] sm:$0xff]
        %v600 = vld [vmem:[%s484 + $0x38] sm:$0xff]
        %v601 = vld [vmem:[%s484 + $0x40] sm:$0xff]
        %v602 = vld [vmem:[%s484 + $0x48] sm:$0xff]
        %v603 = vld [vmem:[%s484 + $0x50] sm:$0xff]
        %v604 = vld [vmem:[%s484 + $0x58] sm:$0xff]
        %v605 = vld [vmem:[%s484 + $0x60] sm:$0xff]
        %v606 = vld [vmem:[%s484 + $0x68] sm:$0xff]
        %v607 = vld [vmem:[%s484 + $0x70] sm:$0xff]
        %v608 = vld [vmem:[%s484 + $0x78] sm:$0xff]
        %v609 = vld [vmem:[%s484 + $0x80] sm:$0xff]
        %v610 = vld [vmem:[%s484 + $0x88] sm:$0xff]
        %v611 = vld [vmem:[%s484 + $0x90] sm:$0xff]
        %v612 = vld [vmem:[%s484 + $0x98] sm:$0xff]
        %v613 = vld [vmem:[%s484 + $0xa0] sm:$0xff]
        %v614 = vld [vmem:[%s484 + $0xa8] sm:$0xff]
        %v615 = vld [vmem:[%s484 + $0xb0] sm:$0xff]
        %v616 = vld [vmem:[%s484 + $0xb8] sm:$0xff]
        %v617 = vld [vmem:[%s484 + $0xc0] sm:$0xff]
        %v618 = vld [vmem:[%s484 + $0xc8] sm:$0xff]
        %v619 = vld [vmem:[%s484 + $0xd0] sm:$0xff]
        %v620 = vld [vmem:[%s484 + $0xd8] sm:$0xff]
        %v621 = vld [vmem:[%s484 + $0xe0] sm:$0xff]
        %v622 = vld [vmem:[%s484 + $0xe8] sm:$0xff]
        %v623 = vld [vmem:[%s484 + $0xf0] sm:$0xff]
        %v624 = vld [vmem:[%s484 + $0xf8] sm:$0xff]
        %v625 = vmul.f32 %v593, 0.17677669
        %v626 = vmul.f32 %v594, 0.17677669
        %v627 = vmul.f32 %v595, 0.17677669
        %v628 = vmul.f32 %v596, 0.17677669
        %v629 = vmul.f32 %v597, 0.17677669
        %v630 = vmul.f32 %v598, 0.17677669
        %v631 = vmul.f32 %v599, 0.17677669
        %v632 = vmul.f32 %v600, 0.17677669
        %v633 = vmul.f32 %v601, 0.17677669
        %v634 = vmul.f32 %v602, 0.17677669
        %v635 = vmul.f32 %v603, 0.17677669
        %v636 = vmul.f32 %v604, 0.17677669
        %v637 = vmul.f32 %v605, 0.17677669
        %v638 = vmul.f32 %v606, 0.17677669
        %v639 = vmul.f32 %v607, 0.17677669
        %v640 = vmul.f32 %v608, 0.17677669
        %v641 = vmul.f32 %v609, 0.17677669
        %v642 = vmul.f32 %v610, 0.17677669
        %v643 = vmul.f32 %v611, 0.17677669
        %v644 = vmul.f32 %v612, 0.17677669
        %v645 = vmul.f32 %v613, 0.17677669
        %v646 = vmul.f32 %v614, 0.17677669
        %v647 = vmul.f32 %v615, 0.17677669
        %v648 = vmul.f32 %v616, 0.17677669
        %v649 = vmul.f32 %v617, 0.17677669
        %v650 = vmul.f32 %v618, 0.17677669
        %v651 = vmul.f32 %v619, 0.17677669
        %v652 = vmul.f32 %v620, 0.17677669
        %v653 = vmul.f32 %v621, 0.17677669
        %v654 = vmul.f32 %v622, 0.17677669
        %v655 = vmul.f32 %v623, 0.17677669
        %v656 = vmul.f32 %v624, 0.17677669
        %v657 = vld [vmem:[%s561] sm:$0xff]
        %v658 = vld [vmem:[%s561 + $0x8] sm:$0xff]
        %v659 = vld [vmem:[%s561 + $0x10] sm:$0xff]
        %v660 = vld [vmem:[%s561 + $0x18] sm:$0xff]
        %v661 = vld [vmem:[%s561 + $0x20] sm:$0xff]
        %v662 = vld [vmem:[%s561 + $0x28] sm:$0xff]
        %v663 = vld [vmem:[%s561 + $0x30] sm:$0xff]
        %v664 = vld [vmem:[%s561 + $0x38] sm:$0xff]
        %v665 = vld [vmem:[%s561 + $0x40] sm:$0xff]
        %v666 = vld [vmem:[%s561 + $0x48] sm:$0xff]
        %v667 = vld [vmem:[%s561 + $0x50] sm:$0xff]
        %v668 = vld [vmem:[%s561 + $0x58] sm:$0xff]
        %v669 = vld [vmem:[%s561 + $0x60] sm:$0xff]
        %v670 = vld [vmem:[%s561 + $0x68] sm:$0xff]
        %v671 = vld [vmem:[%s561 + $0x70] sm:$0xff]
        %v672 = vld [vmem:[%s561 + $0x78] sm:$0xff]
        %v673 = vld [vmem:[%s561 + $0x80] sm:$0xff]
        %v674 = vld [vmem:[%s561 + $0x88] sm:$0xff]
        %v675 = vld [vmem:[%s561 + $0x90] sm:$0xff]
        %v676 = vld [vmem:[%s561 + $0x98] sm:$0xff]
        %v677 = vld [vmem:[%s561 + $0xa0] sm:$0xff]
        %v678 = vld [vmem:[%s561 + $0xa8] sm:$0xff]
        %v679 = vld [vmem:[%s561 + $0xb0] sm:$0xff]
        %v680 = vld [vmem:[%s561 + $0xb8] sm:$0xff]
        %v681 = vld [vmem:[%s561 + $0xc0] sm:$0xff]
        %v682 = vld [vmem:[%s561 + $0xc8] sm:$0xff]
        %v683 = vld [vmem:[%s561 + $0xd0] sm:$0xff]
        %v684 = vld [vmem:[%s561 + $0xd8] sm:$0xff]
        %v685 = vld [vmem:[%s561 + $0xe0] sm:$0xff]
        %v686 = vld [vmem:[%s561 + $0xe8] sm:$0xff]
        %v687 = vld [vmem:[%s561 + $0xf0] sm:$0xff]
        %v688 = vld [vmem:[%s561 + $0xf8] sm:$0xff]
        %v689 = vld [vmem:[%s561 + $0x100] sm:$0xff]
        %v690 = vld [vmem:[%s561 + $0x108] sm:$0xff]
        %v691 = vld [vmem:[%s561 + $0x110] sm:$0xff]
        %v692 = vld [vmem:[%s561 + $0x118] sm:$0xff]
        %v693 = vld [vmem:[%s561 + $0x120] sm:$0xff]
        %v694 = vld [vmem:[%s561 + $0x128] sm:$0xff]
        %v695 = vld [vmem:[%s561 + $0x130] sm:$0xff]
        %v696 = vld [vmem:[%s561 + $0x138] sm:$0xff]
        %v697 = vld [vmem:[%s561 + $0x140] sm:$0xff]
        %v698 = vld [vmem:[%s561 + $0x148] sm:$0xff]
        %v699 = vld [vmem:[%s561 + $0x150] sm:$0xff]
        %v700 = vld [vmem:[%s561 + $0x158] sm:$0xff]
        %v701 = vld [vmem:[%s561 + $0x160] sm:$0xff]
        %v702 = vld [vmem:[%s561 + $0x168] sm:$0xff]
        %v703 = vld [vmem:[%s561 + $0x170] sm:$0xff]
        %v704 = vld [vmem:[%s561 + $0x178] sm:$0xff]
        %v705 = vld [vmem:[%s561 + $0x180] sm:$0xff]
        %v706 = vld [vmem:[%s561 + $0x188] sm:$0xff]
        %v707 = vld [vmem:[%s561 + $0x190] sm:$0xff]
        %v708 = vld [vmem:[%s561 + $0x198] sm:$0xff]
        %v709 = vld [vmem:[%s561 + $0x1a0] sm:$0xff]
        %v710 = vld [vmem:[%s561 + $0x1a8] sm:$0xff]
        %v711 = vld [vmem:[%s561 + $0x1b0] sm:$0xff]
        %v712 = vld [vmem:[%s561 + $0x1b8] sm:$0xff]
        %v713 = vld [vmem:[%s561 + $0x1c0] sm:$0xff]
        %v714 = vld [vmem:[%s561 + $0x1c8] sm:$0xff]
        %v715 = vld [vmem:[%s561 + $0x1d0] sm:$0xff]
        %v716 = vld [vmem:[%s561 + $0x1d8] sm:$0xff]
        %v717 = vld [vmem:[%s561 + $0x1e0] sm:$0xff]
        %v718 = vld [vmem:[%s561 + $0x1e8] sm:$0xff]
        %v719 = vld [vmem:[%s561 + $0x1f0] sm:$0xff]
        %v720 = vld [vmem:[%s561 + $0x1f8] sm:$0xff]
        %v721 = vld [vmem:[%s572] sm:$0xff]
        %v722 = vld [vmem:[%s572 + $0x8] sm:$0xff]
        %v723 = vld [vmem:[%s572 + $0x10] sm:$0xff]
        %v724 = vld [vmem:[%s572 + $0x18] sm:$0xff]
        %v725 = vld [vmem:[%s572 + $0x20] sm:$0xff]
        %v726 = vld [vmem:[%s572 + $0x28] sm:$0xff]
        %v727 = vld [vmem:[%s572 + $0x30] sm:$0xff]
        %v728 = vld [vmem:[%s572 + $0x38] sm:$0xff]
        %v729 = vld [vmem:[%s572 + $0x40] sm:$0xff]
        %v730 = vld [vmem:[%s572 + $0x48] sm:$0xff]
        %v731 = vld [vmem:[%s572 + $0x50] sm:$0xff]
        %v732 = vld [vmem:[%s572 + $0x58] sm:$0xff]
        %v733 = vld [vmem:[%s572 + $0x60] sm:$0xff]
        %v734 = vld [vmem:[%s572 + $0x68] sm:$0xff]
        %v735 = vld [vmem:[%s572 + $0x70] sm:$0xff]
        %v736 = vld [vmem:[%s572 + $0x78] sm:$0xff]
        %v737 = vld [vmem:[%s572 + $0x80] sm:$0xff]
        %v738 = vld [vmem:[%s572 + $0x88] sm:$0xff]
        %v739 = vld [vmem:[%s572 + $0x90] sm:$0xff]
        %v740 = vld [vmem:[%s572 + $0x98] sm:$0xff]
        %v741 = vld [vmem:[%s572 + $0xa0] sm:$0xff]
        %v742 = vld [vmem:[%s572 + $0xa8] sm:$0xff]
        %v743 = vld [vmem:[%s572 + $0xb0] sm:$0xff]
        %v744 = vld [vmem:[%s572 + $0xb8] sm:$0xff]
        %v745 = vld [vmem:[%s572 + $0xc0] sm:$0xff]
        %v746 = vld [vmem:[%s572 + $0xc8] sm:$0xff]
        %v747 = vld [vmem:[%s572 + $0xd0] sm:$0xff]
        %v748 = vld [vmem:[%s572 + $0xd8] sm:$0xff]
        %v749 = vld [vmem:[%s572 + $0xe0] sm:$0xff]
        %v750 = vld [vmem:[%s572 + $0xe8] sm:$0xff]
        %v751 = vld [vmem:[%s572 + $0xf0] sm:$0xff]
        %v752 = vld [vmem:[%s572 + $0xf8] sm:$0xff]
        %v753 = vld [vmem:[%s572 + $0x100] sm:$0xff]
        %v754 = vld [vmem:[%s572 + $0x108] sm:$0xff]
        %v755 = vld [vmem:[%s572 + $0x110] sm:$0xff]
        %v756 = vld [vmem:[%s572 + $0x118] sm:$0xff]
        %v757 = vld [vmem:[%s572 + $0x120] sm:$0xff]
        %v758 = vld [vmem:[%s572 + $0x128] sm:$0xff]
        %v759 = vld [vmem:[%s572 + $0x130] sm:$0xff]
        %v760 = vld [vmem:[%s572 + $0x138] sm:$0xff]
        %v761 = vld [vmem:[%s572 + $0x140] sm:$0xff]
        %v762 = vld [vmem:[%s572 + $0x148] sm:$0xff]
        %v763 = vld [vmem:[%s572 + $0x150] sm:$0xff]
        %v764 = vld [vmem:[%s572 + $0x158] sm:$0xff]
        %v765 = vld [vmem:[%s572 + $0x160] sm:$0xff]
        %v766 = vld [vmem:[%s572 + $0x168] sm:$0xff]
        %v767 = vld [vmem:[%s572 + $0x170] sm:$0xff]
        %v768 = vld [vmem:[%s572 + $0x178] sm:$0xff]
        %v769 = vld [vmem:[%s572 + $0x180] sm:$0xff]
        %v770 = vld [vmem:[%s572 + $0x188] sm:$0xff]
        %v771 = vld [vmem:[%s572 + $0x190] sm:$0xff]
        %v772 = vld [vmem:[%s572 + $0x198] sm:$0xff]
        %v773 = vld [vmem:[%s572 + $0x1a0] sm:$0xff]
        %v774 = vld [vmem:[%s572 + $0x1a8] sm:$0xff]
        %v775 = vld [vmem:[%s572 + $0x1b0] sm:$0xff]
        %v776 = vld [vmem:[%s572 + $0x1b8] sm:$0xff]
        %v777 = vld [vmem:[%s572 + $0x1c0] sm:$0xff]
        %v778 = vld [vmem:[%s572 + $0x1c8] sm:$0xff]
        %v779 = vld [vmem:[%s572 + $0x1d0] sm:$0xff]
        %v780 = vld [vmem:[%s572 + $0x1d8] sm:$0xff]
        %v781 = vld [vmem:[%s572 + $0x1e0] sm:$0xff]
        %v782 = vld [vmem:[%s572 + $0x1e8] sm:$0xff]
        %v783 = vld [vmem:[%s572 + $0x1f0] sm:$0xff]
        %v784 = vld [vmem:[%s572 + $0x1f8] sm:$0xff]
        %vm785 = vcmask 261120
        %v787 = vsel %vm785, %v625, 0
        %v790 = vsel %vm785, %v626, 0
        %v793 = vsel %vm785, %v627, 0
        %v796 = vsel %vm785, %v628, 0
        %v799 = vsel %vm785, %v629, 0
        %v802 = vsel %vm785, %v630, 0
        %v805 = vsel %vm785, %v631, 0
        %v808 = vsel %vm785, %v632, 0
        %v811 = vsel %vm785, %v633, 0
        %v814 = vsel %vm785, %v634, 0
        %v817 = vsel %vm785, %v635, 0
        %v820 = vsel %vm785, %v636, 0
        %v823 = vsel %vm785, %v637, 0
        %v826 = vsel %vm785, %v638, 0
        %v829 = vsel %vm785, %v639, 0
        %v832 = vsel %vm785, %v640, 0
        %v835 = vsel %vm785, %v657, 0
        %v838 = vsel %vm785, %v658, 0
        %v841 = vsel %vm785, %v659, 0
        %v844 = vsel %vm785, %v660, 0
        %v847 = vsel %vm785, %v661, 0
        %v850 = vsel %vm785, %v662, 0
        %v853 = vsel %vm785, %v663, 0
        %v856 = vsel %vm785, %v664, 0
        %v859 = vsel %vm785, %v665, 0
        %v862 = vsel %vm785, %v666, 0
        %v865 = vsel %vm785, %v667, 0
        %v868 = vsel %vm785, %v668, 0
        %v871 = vsel %vm785, %v669, 0
        %v874 = vsel %vm785, %v670, 0
        %v877 = vsel %vm785, %v671, 0
        %v880 = vsel %vm785, %v672, 0
        %v883 = vsel %vm785, %v673, 0
        %v886 = vsel %vm785, %v674, 0
        %v889 = vsel %vm785, %v675, 0
        %v892 = vsel %vm785, %v676, 0
        %v895 = vsel %vm785, %v677, 0
        %v898 = vsel %vm785, %v678, 0
        %v901 = vsel %vm785, %v679, 0
        %v904 = vsel %vm785, %v680, 0
        %v907 = vsel %vm785, %v681, 0
        %v910 = vsel %vm785, %v682, 0
        %v913 = vsel %vm785, %v683, 0
        %v916 = vsel %vm785, %v684, 0
        %v919 = vsel %vm785, %v685, 0
        %v922 = vsel %vm785, %v686, 0
        %v925 = vsel %vm785, %v687, 0
        %v928 = vsel %vm785, %v688, 0
        %930 = vmatprep.subr.mxu0 0.0
        %931 = vmatpush1.xpose.msra.mxu0 %v835
        %932 = vmatprep.subr.mxu0 0.0
        %933 = vmatpush1.xpose.msra.mxu0 %v838
        %934 = vmatprep.subr.mxu0 0.0
        %935 = vmatpush1.xpose.msra.mxu0 %v841
        %936 = vmatprep.subr.mxu0 0.0
        %937 = vmatpush1.xpose.msra.mxu0 %v844
        %938 = vmatprep.subr.mxu0 0.0
        %939 = vmatpush1.xpose.msra.mxu0 %v847
        %940 = vmatprep.subr.mxu0 0.0
        %941 = vmatpush1.xpose.msra.mxu0 %v850
        %942 = vmatprep.subr.mxu0 0.0
        %943 = vmatpush1.xpose.msra.mxu0 %v853
        %944 = vmatprep.subr.mxu0 0.0
        %945 = vmatpush1.xpose.msra.mxu0 %v856
        %946 = vmatprep.subr.mxu0 0.0
        %947 = vmatpush1.xpose.msra.mxu0 %v859
        %948 = vmatprep.subr.mxu0 0.0
        %949 = vmatpush1.xpose.msra.mxu0 %v862
        %950 = vmatprep.subr.mxu0 0.0
        %951 = vmatpush1.xpose.msra.mxu0 %v865
        %952 = vmatprep.subr.mxu0 0.0
        %953 = vmatpush1.xpose.msra.mxu0 %v868
        %954 = vmatprep.subr.mxu0 0.0
        %955 = vmatpush1.xpose.msra.mxu0 %v871
        %956 = vmatprep.subr.mxu0 0.0
        %957 = vmatpush1.xpose.msra.mxu0 %v874
        %958 = vmatprep.subr.mxu0 0.0
        %959 = vmatpush1.xpose.msra.mxu0 %v877
        %960 = vmatprep.subr.mxu0 0.0
        %961 = vmatpush1.xpose.msra.mxu0 %v880
        %962 = vmatprep.subr.mxu0 0.0
        %963 = vmatpush1.xpose.msra.mxu0 %v883
        %964 = vmatprep.subr.mxu0 0.0
        %965 = vmatpush1.xpose.msra.mxu0 %v886
        %966 = vmatprep.subr.mxu0 0.0
        %967 = vmatpush1.xpose.msra.mxu0 %v889
        %968 = vmatprep.subr.mxu0 0.0
        %969 = vmatpush1.xpose.msra.mxu0 %v892
        %970 = vmatprep.subr.mxu0 0.0
        %971 = vmatpush1.xpose.msra.mxu0 %v895
        %972 = vmatprep.subr.mxu0 0.0
        %973 = vmatpush1.xpose.msra.mxu0 %v898
        %974 = vmatprep.subr.mxu0 0.0
        %975 = vmatpush1.xpose.msra.mxu0 %v901
        %976 = vmatprep.subr.mxu0 0.0
        %977 = vmatpush1.xpose.msra.mxu0 %v904
        %978 = vmatprep.subr.mxu0 0.0
        %979 = vmatpush1.xpose.msra.mxu0 %v907
        %980 = vmatprep.subr.mxu0 0.0
        %981 = vmatpush1.xpose.msra.mxu0 %v910
        %982 = vmatprep.subr.mxu0 0.0
        %983 = vmatpush1.xpose.msra.mxu0 %v913
        %984 = vmatprep.subr.mxu0 0.0
        %985 = vmatpush1.xpose.msra.mxu0 %v916
        %986 = vmatprep.subr.mxu0 0.0
        %987 = vmatpush1.xpose.msra.mxu0 %v919
        %988 = vmatprep.subr.mxu0 0.0
        %989 = vmatpush1.xpose.msra.mxu0 %v922
        %990 = vmatprep.subr.mxu0 0.0
        %991 = vmatpush1.xpose.msra.mxu0 %v925
        %992 = vmatprep.subr.mxu0 0.0
        %993 = vmatpush1.xpose.msra.mxu0 %v928
        %994 = vmatprep.mubr.f32.mxu0 0.0
        %995 = vmatmul.mubr.f32.gmra.mrb[0].mxu0 %v787
        %v996 = vpop.f32.mrb[0].mxu0
        %v997 = vadd.f32 0.0, %v996
        %v998 = vpop.f32.mrb[0].mxu0
        %v999 = vadd.f32 0.0, %v998
        %1000 = vmatprep.mubr.f32.mxu0 0.0
        %1001 = vmatmul.mubr.f32.gmra.mrb[0].mxu0 %v790
        %v1002 = vpop.f32.mrb[0].mxu0
        %v1003 = vadd.f32 0.0, %v1002
        %v1004 = vpop.f32.mrb[0].mxu0
        %v1005 = vadd.f32 0.0, %v1004
        %1006 = vmatprep.mubr.f32.mxu0 0.0
        %1007 = vmatmul.mubr.f32.gmra.mrb[0].mxu0 %v793
        %v1008 = vpop.f32.mrb[0].mxu0
        %v1009 = vadd.f32 0.0, %v1008
        %v1010 = vpop.f32.mrb[0].mxu0
        %v1011 = vadd.f32 0.0, %v1010
        %1012 = vmatprep.mubr.f32.mxu0 0.0
        %1013 = vmatmul.mubr.f32.gmra.mrb[0].mxu0 %v796
        %v1014 = vpop.f32.mrb[0].mxu0
        %v1015 = vadd.f32 0.0, %v1014
        %v1016 = vpop.f32.mrb[0].mxu0
        %v1017 = vadd.f32 0.0, %v1016
        %1018 = vmatprep.mubr.f32.mxu0 0.0
        %1019 = vmatmul.mubr.f32.gmra.mrb[0].mxu0 %v799
        %v1020 = vpop.f32.mrb[0].mxu0
        %v1021 = vadd.f32 0.0, %v1020
        %v1022 = vpop.f32.mrb[0].mxu0
        %v1023 = vadd.f32 0.0, %v1022
        %1024 = vmatprep.mubr.f32.mxu0 0.0
        %1025 = vmatmul.mubr.f32.gmra.mrb[0].mxu0 %v802
        %v1026 = vpop.f32.mrb[0].mxu0
        %v1027 = vadd.f32 0.0, %v1026
        %v1028 = vpop.f32.mrb[0].mxu0
        %v1029 = vadd.f32 0.0, %v1028
        %1030 = vmatprep.mubr.f32.mxu0 0.0
        %1031 = vmatmul.mubr.f32.gmra.mrb[0].mxu0 %v805
        %v1032 = vpop.f32.mrb[0].mxu0
        %v1033 = vadd.f32 0.0, %v1032
        %v1034 = vpop.f32.mrb[0].mxu0
        %v1035 = vadd.f32 0.0, %v1034
        %1036 = vmatprep.mubr.f32.mxu0 0.0
        %1037 = vmatmul.mubr.f32.gmra.mrb[0].mxu0 %v808
        %v1038 = vpop.f32.mrb[0].mxu0
        %v1039 = vadd.f32 0.0, %v1038
        %v1040 = vpop.f32.mrb[0].mxu0
        %v1041 = vadd.f32 0.0, %v1040
        %1042 = vmatprep.mubr.f32.mxu0 0.0
        %1043 = vmatmul.mubr.f32.gmra.mrb[0].mxu0 %v811
        %v1044 = vpop.f32.mrb[0].mxu0
        %v1045 = vadd.f32 0.0, %v1044
        %v1046 = vpop.f32.mrb[0].mxu0
        %v1047 = vadd.f32 0.0, %v1046
        %1048 = vmatprep.mubr.f32.mxu0 0.0
        %1049 = vmatmul.mubr.f32.gmra.mrb[0].mxu0 %v814
        %v1050 = vpop.f32.mrb[0].mxu0
        %v1051 = vadd.f32 0.0, %v1050
        %v1052 = vpop.f32.mrb[0].mxu0
        %v1053 = vadd.f32 0.0, %v1052
        %1054 = vmatprep.mubr.f32.mxu0 0.0
        %1055 = vmatmul.mubr.f32.gmra.mrb[0].mxu0 %v817
        %v1056 = vpop.f32.mrb[0].mxu0
        %v1057 = vadd.f32 0.0, %v1056
        %v1058 = vpop.f32.mrb[0].mxu0
        %v1059 = vadd.f32 0.0, %v1058
        %1060 = vmatprep.mubr.f32.mxu0 0.0
        %1061 = vmatmul.mubr.f32.gmra.mrb[0].mxu0 %v820
        %v1062 = vpop.f32.mrb[0].mxu0
        %v1063 = vadd.f32 0.0, %v1062
        %v1064 = vpop.f32.mrb[0].mxu0
        %v1065 = vadd.f32 0.0, %v1064
        %1066 = vmatprep.mubr.f32.mxu0 0.0
        %1067 = vmatmul.mubr.f32.gmra.mrb[0].mxu0 %v823
        %v1068 = vpop.f32.mrb[0].mxu0
        %v1069 = vadd.f32 0.0, %v1068
        %v1070 = vpop.f32.mrb[0].mxu0
        %v1071 = vadd.f32 0.0, %v1070
        %1072 = vmatprep.mubr.f32.mxu0 0.0
        %1073 = vmatmul.mubr.f32.gmra.mrb[0].mxu0 %v826
        %v1074 = vpop.f32.mrb[0].mxu0
        %v1075 = vadd.f32 0.0, %v1074
        %v1076 = vpop.f32.mrb[0].mxu0
        %v1077 = vadd.f32 0.0, %v1076
        %1078 = vmatprep.mubr.f32.mxu0 0.0
        %1079 = vmatmul.mubr.f32.gmra.mrb[0].mxu0 %v829
        %v1080 = vpop.f32.mrb[0].mxu0
        %v1081 = vadd.f32 0.0, %v1080
        %v1082 = vpop.f32.mrb[0].mxu0
        %v1083 = vadd.f32 0.0, %v1082
        %1084 = vmatprep.mubr.f32.mxu0 0.0
        %1085 = vmatmul.mubr.f32.gmra.mrb[0].mxu0 %v832
        %v1086 = vpop.f32.mrb[0].mxu0
        %v1087 = vadd.f32 0.0, %v1086
        %v1088 = vpop.f32.mrb[0].mxu0
        %v1089 = vadd.f32 0.0, %v1088
        %1090 = vdwg.mxu0
        %v1092 = vsel %vm785, %v641, 0
        %v1095 = vsel %vm785, %v642, 0
        %v1098 = vsel %vm785, %v643, 0
        %v1101 = vsel %vm785, %v644, 0
        %v1104 = vsel %vm785, %v645, 0
        %v1107 = vsel %vm785, %v646, 0
        %v1110 = vsel %vm785, %v647, 0
        %v1113 = vsel %vm785, %v648, 0
        %v1116 = vsel %vm785, %v649, 0
        %v1119 = vsel %vm785, %v650, 0
        %v1122 = vsel %vm785, %v651, 0
        %v1125 = vsel %vm785, %v652, 0
        %v1128 = vsel %vm785, %v653, 0
        %v1131 = vsel %vm785, %v654, 0
        %v1134 = vsel %vm785, %v655, 0
        %v1137 = vsel %vm785, %v656, 0
        %v1140 = vsel %vm785, %v689, 0
        %v1143 = vsel %vm785, %v690, 0
        %v1146 = vsel %vm785, %v691, 0
        %v1149 = vsel %vm785, %v692, 0
        %v1152 = vsel %vm785, %v693, 0
        %v1155 = vsel %vm785, %v694, 0
        %v1158 = vsel %vm785, %v695, 0
        %v1161 = vsel %vm785, %v696, 0
        %v1164 = vsel %vm785, %v697, 0
        %v1167 = vsel %vm785, %v698, 0
        %v1170 = vsel %vm785, %v699, 0
        %v1173 = vsel %vm785, %v700, 0
        %v1176 = vsel %vm785, %v701, 0
        %v1179 = vsel %vm785, %v702, 0
        %v1182 = vsel %vm785, %v703, 0
        %v1185 = vsel %vm785, %v704, 0
        %v1188 = vsel %vm785, %v705, 0
        %v1191 = vsel %vm785, %v706, 0
        %v1194 = vsel %vm785, %v707, 0
        %v1197 = vsel %vm785, %v708, 0
        %v1200 = vsel %vm785, %v709, 0
        %v1203 = vsel %vm785, %v710, 0
        %v1206 = vsel %vm785, %v711, 0
        %v1209 = vsel %vm785, %v712, 0
        %v1212 = vsel %vm785, %v713, 0
        %v1215 = vsel %vm785, %v714, 0
        %v1218 = vsel %vm785, %v715, 0
        %v1221 = vsel %vm785, %v716, 0
        %v1224 = vsel %vm785, %v717, 0
        %v1227 = vsel %vm785, %v718, 0
        %v1230 = vsel %vm785, %v719, 0
        %v1233 = vsel %vm785, %v720, 0
        %1235 = vmatprep.subr.mxu0 0.0
        %1236 = vmatpush1.xpose.msra.mxu0 %v1140
        %1237 = vmatprep.subr.mxu0 0.0
        %1238 = vmatpush1.xpose.msra.mxu0 %v1143
        %1239 = vmatprep.subr.mxu0 0.0
        %1240 = vmatpush1.xpose.msra.mxu0 %v1146
        %1241 = vmatprep.subr.mxu0 0.0
        %1242 = vmatpush1.xpose.msra.mxu0 %v1149
        %1243 = vmatprep.subr.mxu0 0.0
        %1244 = vmatpush1.xpose.msra.mxu0 %v1152
        %1245 = vmatprep.subr.mxu0 0.0
        %1246 = vmatpush1.xpose.msra.mxu0 %v1155
        %1247 = vmatprep.subr.mxu0 0.0
        %1248 = vmatpush1.xpose.msra.mxu0 %v1158
        %1249 = vmatprep.subr.mxu0 0.0
        %1250 = vmatpush1.xpose.msra.mxu0 %v1161
        %1251 = vmatprep.subr.mxu0 0.0
        %1252 = vmatpush1.xpose.msra.mxu0 %v1164
        %1253 = vmatprep.subr.mxu0 0.0
        %1254 = vmatpush1.xpose.msra.mxu0 %v1167
        %1255 = vmatprep.subr.mxu0 0.0
        %1256 = vmatpush1.xpose.msra.mxu0 %v1170
        %1257 = vmatprep.subr.mxu0 0.0
        %1258 = vmatpush1.xpose.msra.mxu0 %v1173
        %1259 = vmatprep.subr.mxu0 0.0
        %1260 = vmatpush1.xpose.msra.mxu0 %v1176
        %1261 = vmatprep.subr.mxu0 0.0
        %1262 = vmatpush1.xpose.msra.mxu0 %v1179
        %1263 = vmatprep.subr.mxu0 0.0
        %1264 = vmatpush1.xpose.msra.mxu0 %v1182
        %1265 = vmatprep.subr.mxu0 0.0
        %1266 = vmatpush1.xpose.msra.mxu0 %v1185
        %1267 = vmatprep.subr.mxu0 0.0
        %1268 = vmatpush1.xpose.msra.mxu0 %v1188
        %1269 = vmatprep.subr.mxu0 0.0
        %1270 = vmatpush1.xpose.msra.mxu0 %v1191
        %1271 = vmatprep.subr.mxu0 0.0
        %1272 = vmatpush1.xpose.msra.mxu0 %v1194
        %1273 = vmatprep.subr.mxu0 0.0
        %1274 = vmatpush1.xpose.msra.mxu0 %v1197
        %1275 = vmatprep.subr.mxu0 0.0
        %1276 = vmatpush1.xpose.msra.mxu0 %v1200
        %1277 = vmatprep.subr.mxu0 0.0
        %1278 = vmatpush1.xpose.msra.mxu0 %v1203
        %1279 = vmatprep.subr.mxu0 0.0
        %1280 = vmatpush1.xpose.msra.mxu0 %v1206
        %1281 = vmatprep.subr.mxu0 0.0
        %1282 = vmatpush1.xpose.msra.mxu0 %v1209
        %1283 = vmatprep.subr.mxu0 0.0
        %1284 = vmatpush1.xpose.msra.mxu0 %v1212
        %1285 = vmatprep.subr.mxu0 0.0
        %1286 = vmatpush1.xpose.msra.mxu0 %v1215
        %1287 = vmatprep.subr.mxu0 0.0
        %1288 = vmatpush1.xpose.msra.mxu0 %v1218
        %1289 = vmatprep.subr.mxu0 0.0
        %1290 = vmatpush1.xpose.msra.mxu0 %v1221
        %1291 = vmatprep.subr.mxu0 0.0
        %1292 = vmatpush1.xpose.msra.mxu0 %v1224
        %1293 = vmatprep.subr.mxu0 0.0
        %1294 = vmatpush1.xpose.msra.mxu0 %v1227
        %1295 = vmatprep.subr.mxu0 0.0
        %1296 = vmatpush1.xpose.msra.mxu0 %v1230
        %1297 = vmatprep.subr.mxu0 0.0
        %1298 = vmatpush1.xpose.msra.mxu0 %v1233
        %1299 = vmatprep.mubr.f32.mxu0 0.0
        %1300 = vmatmul.mubr.f32.gmra.mrb[0].mxu0 %v1092
        %v1301 = vpop.f32.mrb[0].mxu0
        %v1302 = vadd.f32 0.0, %v1301
        %v1303 = vpop.f32.mrb[0].mxu0
        %v1304 = vadd.f32 0.0, %v1303
        %1305 = vmatprep.mubr.f32.mxu0 0.0
        %1306 = vmatmul.mubr.f32.gmra.mrb[0].mxu0 %v1095
        %v1307 = vpop.f32.mrb[0].mxu0
        %v1308 = vadd.f32 0.0, %v1307
        %v1309 = vpop.f32.mrb[0].mxu0
        %v1310 = vadd.f32 0.0, %v1309
        %1311 = vmatprep.mubr.f32.mxu0 0.0
        %1312 = vmatmul.mubr.f32.gmra.mrb[0].mxu0 %v1098
        %v1313 = vpop.f32.mrb[0].mxu0
        %v1314 = vadd.f32 0.0, %v1313
        %v1315 = vpop.f32.mrb[0].mxu0
        %v1316 = vadd.f32 0.0, %v1315
        %1317 = vmatprep.mubr.f32.mxu0 0.0
        %1318 = vmatmul.mubr.f32.gmra.mrb[0].mxu0 %v1101
        %v1319 = vpop.f32.mrb[0].mxu0
        %v1320 = vadd.f32 0.0, %v1319
        %v1321 = vpop.f32.mrb[0].mxu0
        %v1322 = vadd.f32 0.0, %v1321
        %1323 = vmatprep.mubr.f32.mxu0 0.0
        %1324 = vmatmul.mubr.f32.gmra.mrb[0].mxu0 %v1104
        %v1325 = vpop.f32.mrb[0].mxu0
        %v1326 = vadd.f32 0.0, %v1325
        %v1327 = vpop.f32.mrb[0].mxu0
        %v1328 = vadd.f32 0.0, %v1327
        %1329 = vmatprep.mubr.f32.mxu0 0.0
        %1330 = vmatmul.mubr.f32.gmra.mrb[0].mxu0 %v1107
        %v1331 = vpop.f32.mrb[0].mxu0
        %v1332 = vadd.f32 0.0, %v1331
        %v1333 = vpop.f32.mrb[0].mxu0
        %v1334 = vadd.f32 0.0, %v1333
        %1335 = vmatprep.mubr.f32.mxu0 0.0
        %1336 = vmatmul.mubr.f32.gmra.mrb[0].mxu0 %v1110
        %v1337 = vpop.f32.mrb[0].mxu0
        %v1338 = vadd.f32 0.0, %v1337
        %v1339 = vpop.f32.mrb[0].mxu0
        %v1340 = vadd.f32 0.0, %v1339
        %1341 = vmatprep.mubr.f32.mxu0 0.0
        %1342 = vmatmul.mubr.f32.gmra.mrb[0].mxu0 %v1113
        %v1343 = vpop.f32.mrb[0].mxu0
        %v1344 = vadd.f32 0.0, %v1343
        %v1345 = vpop.f32.mrb[0].mxu0
        %v1346 = vadd.f32 0.0, %v1345
        %1347 = vmatprep.mubr.f32.mxu0 0.0
        %1348 = vmatmul.mubr.f32.gmra.mrb[0].mxu0 %v1116
        %v1349 = vpop.f32.mrb[0].mxu0
        %v1350 = vadd.f32 0.0, %v1349
        %v1351 = vpop.f32.mrb[0].mxu0
        %v1352 = vadd.f32 0.0, %v1351
        %1353 = vmatprep.mubr.f32.mxu0 0.0
        %1354 = vmatmul.mubr.f32.gmra.mrb[0].mxu0 %v1119
        %v1355 = vpop.f32.mrb[0].mxu0
        %v1356 = vadd.f32 0.0, %v1355
        %v1357 = vpop.f32.mrb[0].mxu0
        %v1358 = vadd.f32 0.0, %v1357
        %1359 = vmatprep.mubr.f32.mxu0 0.0
        %1360 = vmatmul.mubr.f32.gmra.mrb[0].mxu0 %v1122
        %v1361 = vpop.f32.mrb[0].mxu0
        %v1362 = vadd.f32 0.0, %v1361
        %v1363 = vpop.f32.mrb[0].mxu0
        %v1364 = vadd.f32 0.0, %v1363
        %1365 = vmatprep.mubr.f32.mxu0 0.0
        %1366 = vmatmul.mubr.f32.gmra.mrb[0].mxu0 %v1125
        %v1367 = vpop.f32.mrb[0].mxu0
        %v1368 = vadd.f32 0.0, %v1367
        %v1369 = vpop.f32.mrb[0].mxu0
        %v1370 = vadd.f32 0.0, %v1369
        %1371 = vmatprep.mubr.f32.mxu0 0.0
        %1372 = vmatmul.mubr.f32.gmra.mrb[0].mxu0 %v1128
        %v1373 = vpop.f32.mrb[0].mxu0
        %v1374 = vadd.f32 0.0, %v1373
        %v1375 = vpop.f32.mrb[0].mxu0
        %v1376 = vadd.f32 0.0, %v1375
        %1377 = vmatprep.mubr.f32.mxu0 0.0
        %1378 = vmatmul.mubr.f32.gmra.mrb[0].mxu0 %v1131
        %v1379 = vpop.f32.mrb[0].mxu0
        %v1380 = vadd.f32 0.0, %v1379
        %v1381 = vpop.f32.mrb[0].mxu0
        %v1382 = vadd.f32 0.0, %v1381
        %1383 = vmatprep.mubr.f32.mxu0 0.0
        %1384 = vmatmul.mubr.f32.gmra.mrb[0].mxu0 %v1134
        %v1385 = vpop.f32.mrb[0].mxu0
        %v1386 = vadd.f32 0.0, %v1385
        %v1387 = vpop.f32.mrb[0].mxu0
        %v1388 = vadd.f32 0.0, %v1387
        %1389 = vmatprep.mubr.f32.mxu0 0.0
        %1390 = vmatmul.mubr.f32.gmra.mrb[0].mxu0 %v1137
        %v1391 = vpop.f32.mrb[0].mxu0
        %v1392 = vadd.f32 0.0, %v1391
        %v1393 = vpop.f32.mrb[0].mxu0
        %v1394 = vadd.f32 0.0, %v1393
        %1395 = vdwg.mxu0
        %v1396 = vld [vmem:[%s583] sm:$0xff]
        %v1397 = vld [vmem:[%s583 + $0x8] sm:$0xff]
        %v1398 = vld [vmem:[%s583 + $0x10] sm:$0xff]
        %v1399 = vld [vmem:[%s583 + $0x18] sm:$0xff]
        %v1400 = vld [vmem:[%s583 + $0x20] sm:$0xff]
        %v1401 = vld [vmem:[%s583 + $0x28] sm:$0xff]
        %v1402 = vld [vmem:[%s583 + $0x30] sm:$0xff]
        %v1403 = vld [vmem:[%s583 + $0x38] sm:$0xff]
        %vm1404 = vnez %v1396
        %vm1405 = vnez %v1397
        %vm1406 = vnez %v1398
        %vm1407 = vnez %v1399
        %vm1408 = vnez %v1400
        %vm1409 = vnez %v1401
        %vm1410 = vnez %v1402
        %vm1411 = vnez %v1403
        %v1412 = vadd.f32 %v997, -1e+09
        %v1413 = vadd.f32 %v999, -1e+09
        %v1414 = vadd.f32 %v1003, -1e+09
        %v1415 = vadd.f32 %v1005, -1e+09
        %v1416 = vadd.f32 %v1009, -1e+09
        %v1417 = vadd.f32 %v1011, -1e+09
        %v1418 = vadd.f32 %v1015, -1e+09
        %v1419 = vadd.f32 %v1017, -1e+09
        %v1420 = vadd.f32 %v1021, -1e+09
        %v1421 = vadd.f32 %v1023, -1e+09
        %v1422 = vadd.f32 %v1027, -1e+09
        %v1423 = vadd.f32 %v1029, -1e+09
        %v1424 = vadd.f32 %v1033, -1e+09
        %v1425 = vadd.f32 %v1035, -1e+09
        %v1426 = vadd.f32 %v1039, -1e+09
        %v1427 = vadd.f32 %v1041, -1e+09
        %v1428 = vadd.f32 %v1045, -1e+09
        %v1429 = vadd.f32 %v1047, -1e+09
        %v1430 = vadd.f32 %v1051, -1e+09
        %v1431 = vadd.f32 %v1053, -1e+09
        %v1432 = vadd.f32 %v1057, -1e+09
        %v1433 = vadd.f32 %v1059, -1e+09
        %v1434 = vadd.f32 %v1063, -1e+09
        %v1435 = vadd.f32 %v1065, -1e+09
        %v1436 = vadd.f32 %v1069, -1e+09
        %v1437 = vadd.f32 %v1071, -1e+09
        %v1438 = vadd.f32 %v1075, -1e+09
        %v1439 = vadd.f32 %v1077, -1e+09
        %v1440 = vadd.f32 %v1081, -1e+09
        %v1441 = vadd.f32 %v1083, -1e+09
        %v1442 = vadd.f32 %v1087, -1e+09
        %v1443 = vadd.f32 %v1089, -1e+09
        %v1444 = vadd.f32 %v1302, -1e+09
        %v1445 = vadd.f32 %v1304, -1e+09
        %v1446 = vadd.f32 %v1308, -1e+09
        %v1447 = vadd.f32 %v1310, -1e+09
        %v1448 = vadd.f32 %v1314, -1e+09
        %v1449 = vadd.f32 %v1316, -1e+09
        %v1450 = vadd.f32 %v1320, -1e+09
        %v1451 = vadd.f32 %v1322, -1e+09
        %v1452 = vadd.f32 %v1326, -1e+09
        %v1453 = vadd.f32 %v1328, -1e+09
        %v1454 = vadd.f32 %v1332, -1e+09
        %v1455 = vadd.f32 %v1334, -1e+09
        %v1456 = vadd.f32 %v1338, -1e+09
        %v1457 = vadd.f32 %v1340, -1e+09
        %v1458 = vadd.f32 %v1344, -1e+09
        %v1459 = vadd.f32 %v1346, -1e+09
        %v1460 = vadd.f32 %v1350, -1e+09
        %v1461 = vadd.f32 %v1352, -1e+09
        %v1462 = vadd.f32 %v1356, -1e+09
        %v1463 = vadd.f32 %v1358, -1e+09
        %v1464 = vadd.f32 %v1362, -1e+09
        %v1465 = vadd.f32 %v1364, -1e+09
        %v1466 = vadd.f32 %v1368, -1e+09
        %v1467 = vadd.f32 %v1370, -1e+09
        %v1468 = vadd.f32 %v1374, -1e+09
        %v1469 = vadd.f32 %v1376, -1e+09
        %v1470 = vadd.f32 %v1380, -1e+09
        %v1471 = vadd.f32 %v1382, -1e+09
        %v1472 = vadd.f32 %v1386, -1e+09
        %v1473 = vadd.f32 %v1388, -1e+09
        %v1474 = vadd.f32 %v1392, -1e+09
        %v1475 = vadd.f32 %v1394, -1e+09
        %v1476 = vsel %vm1404, 16843009, 0
        %v1477 = vsel %vm1405, 16843009, 0
        %v1478 = vsel %vm1406, 16843009, 0
        %v1479 = vsel %vm1407, 16843009, 0
        %v1480 = vsel %vm1408, 16843009, 0
        %v1481 = vsel %vm1409, 16843009, 0
        %v1482 = vsel %vm1410, 16843009, 0
        %v1483 = vsel %vm1411, 16843009, 0
        %v1484 = vunpack.c.0.s8 %v1476
        %v1485 = vunpack.c.0.s8 %v1477
        %v1486 = vunpack.c.1.s8 %v1476
        %v1487 = vunpack.c.1.s8 %v1477
        %v1488 = vunpack.c.2.s8 %v1476
        %v1489 = vunpack.c.2.s8 %v1477
        %v1490 = vunpack.c.3.s8 %v1476
        %v1491 = vunpack.c.3.s8 %v1477
        %v1492 = vunpack.c.0.s8 %v1478
        %v1493 = vunpack.c.0.s8 %v1479
        %v1494 = vunpack.c.1.s8 %v1478
        %v1495 = vunpack.c.1.s8 %v1479
        %v1496 = vunpack.c.2.s8 %v1478
        %v1497 = vunpack.c.2.s8 %v1479
        %v1498 = vunpack.c.3.s8 %v1478
        %v1499 = vunpack.c.3.s8 %v1479
        %v1500 = vunpack.c.0.s8 %v1480
        %v1501 = vunpack.c.0.s8 %v1481
        %v1502 = vunpack.c.1.s8 %v1480
        %v1503 = vunpack.c.1.s8 %v1481
        %v1504 = vunpack.c.2.s8 %v1480
        %v1505 = vunpack.c.2.s8 %v1481
        %v1506 = vunpack.c.3.s8 %v1480
        %v1507 = vunpack.c.3.s8 %v1481
        %v1508 = vunpack.c.0.s8 %v1482
        %v1509 = vunpack.c.0.s8 %v1483
        %v1510 = vunpack.c.1.s8 %v1482
        %v1511 = vunpack.c.1.s8 %v1483
        %v1512 = vunpack.c.2.s8 %v1482
        %v1513 = vunpack.c.2.s8 %v1483
        %v1514 = vunpack.c.3.s8 %v1482
        %v1515 = vunpack.c.3.s8 %v1483
        %v1516 = vpack.c.b16 %v1485, %v1484
        %v1517 = vpack.c.b8 %v1516, %v1516
        %v1518 = vpack.c.b16 %v1487, %v1486
        %v1519 = vpack.c.b8 %v1518, %v1518
        %v1520 = vpack.c.b16 %v1489, %v1488
        %v1521 = vpack.c.b8 %v1520, %v1520
        %v1522 = vpack.c.b16 %v1491, %v1490
        %v1523 = vpack.c.b8 %v1522, %v1522
        %v1524 = vpack.c.b16 %v1493, %v1492
        %v1525 = vpack.c.b8 %v1524, %v1524
        %v1526 = vpack.c.b16 %v1495, %v1494
        %v1527 = vpack.c.b8 %v1526, %v1526
        %v1528 = vpack.c.b16 %v1497, %v1496
        %v1529 = vpack.c.b8 %v1528, %v1528
        %v1530 = vpack.c.b16 %v1499, %v1498
        %v1531 = vpack.c.b8 %v1530, %v1530
        %v1532 = vpack.c.b16 %v1501, %v1500
        %v1533 = vpack.c.b8 %v1532, %v1532
        %v1534 = vpack.c.b16 %v1503, %v1502
        %v1535 = vpack.c.b8 %v1534, %v1534
        %v1536 = vpack.c.b16 %v1505, %v1504
        %v1537 = vpack.c.b8 %v1536, %v1536
        %v1538 = vpack.c.b16 %v1507, %v1506
        %v1539 = vpack.c.b8 %v1538, %v1538
        %v1540 = vpack.c.b16 %v1509, %v1508
        %v1541 = vpack.c.b8 %v1540, %v1540
        %v1542 = vpack.c.b16 %v1511, %v1510
        %v1543 = vpack.c.b8 %v1542, %v1542
        %v1544 = vpack.c.b16 %v1513, %v1512
        %v1545 = vpack.c.b8 %v1544, %v1544
        %v1546 = vpack.c.b16 %v1515, %v1514
        %v1547 = vpack.c.b8 %v1546, %v1546
        %vm1548 = vnez %v1517
        %vm1549 = vnez %v1519
        %vm1550 = vnez %v1521
        %vm1551 = vnez %v1523
        %vm1552 = vnez %v1525
        %vm1553 = vnez %v1527
        %vm1554 = vnez %v1529
        %vm1555 = vnez %v1531
        %vm1556 = vnez %v1533
        %vm1557 = vnez %v1535
        %vm1558 = vnez %v1537
        %vm1559 = vnez %v1539
        %vm1560 = vnez %v1541
        %vm1561 = vnez %v1543
        %vm1562 = vnez %v1545
        %vm1563 = vnez %v1547
        %v1564 = vsel %vm1548, 16843009, 0
        %v1565 = vsel %vm1549, 16843009, 0
        %v1566 = vsel %vm1550, 16843009, 0
        %v1567 = vsel %vm1551, 16843009, 0
        %v1568 = vsel %vm1552, 16843009, 0
        %v1569 = vsel %vm1553, 16843009, 0
        %v1570 = vsel %vm1554, 16843009, 0
        %v1571 = vsel %vm1555, 16843009, 0
        %v1572 = vsel %vm1556, 16843009, 0
        %v1573 = vsel %vm1557, 16843009, 0
        %v1574 = vsel %vm1558, 16843009, 0
        %v1575 = vsel %vm1559, 16843009, 0
        %v1576 = vsel %vm1560, 16843009, 0
        %v1577 = vsel %vm1561, 16843009, 0
        %v1578 = vsel %vm1562, 16843009, 0
        %v1579 = vsel %vm1563, 16843009, 0
        %v1580 = vunpack.c.0.s8 %v1564
        %v1581 = vunpack.c.1.s8 %v1564
        %v1582 = vunpack.c.0.s8 %v1565
        %v1583 = vunpack.c.1.s8 %v1565
        %v1584 = vunpack.c.0.s8 %v1566
        %v1585 = vunpack.c.1.s8 %v1566
        %v1586 = vunpack.c.0.s8 %v1567
        %v1587 = vunpack.c.1.s8 %v1567
        %v1588 = vunpack.c.0.s8 %v1568
        %v1589 = vunpack.c.1.s8 %v1568
        %v1590 = vunpack.c.0.s8 %v1569
        %v1591 = vunpack.c.1.s8 %v1569
        %v1592 = vunpack.c.0.s8 %v1570
        %v1593 = vunpack.c.1.s8 %v1570
        %v1594 = vunpack.c.0.s8 %v1571
        %v1595 = vunpack.c.1.s8 %v1571
        %v1596 = vunpack.c.0.s8 %v1572
        %v1597 = vunpack.c.1.s8 %v1572
        %v1598 = vunpack.c.0.s8 %v1573
        %v1599 = vunpack.c.1.s8 %v1573
        %v1600 = vunpack.c.0.s8 %v1574
        %v1601 = vunpack.c.1.s8 %v1574
        %v1602 = vunpack.c.0.s8 %v1575
        %v1603 = vunpack.c.1.s8 %v1575
        %v1604 = vunpack.c.0.s8 %v1576
        %v1605 = vunpack.c.1.s8 %v1576
        %v1606 = vunpack.c.0.s8 %v1577
        %v1607 = vunpack.c.1.s8 %v1577
        %v1608 = vunpack.c.0.s8 %v1578
        %v1609 = vunpack.c.1.s8 %v1578
        %v1610 = vunpack.c.0.s8 %v1579
        %v1611 = vunpack.c.1.s8 %v1579
        %vm1612 = vcmp.ne.s32.totalorder %v1580, 0
        %vm1613 = vcmp.ne.s32.totalorder %v1581, 0
        %vm1614 = vcmp.ne.s32.totalorder %v1582, 0
        %vm1615 = vcmp.ne.s32.totalorder %v1583, 0
        %vm1616 = vcmp.ne.s32.totalorder %v1584, 0
        %vm1617 = vcmp.ne.s32.totalorder %v1585, 0
        %vm1618 = vcmp.ne.s32.totalorder %v1586, 0
        %vm1619 = vcmp.ne.s32.totalorder %v1587, 0
        %vm1620 = vcmp.ne.s32.totalorder %v1588, 0
        %vm1621 = vcmp.ne.s32.totalorder %v1589, 0
        %vm1622 = vcmp.ne.s32.totalorder %v1590, 0
        %vm1623 = vcmp.ne.s32.totalorder %v1591, 0
        %vm1624 = vcmp.ne.s32.totalorder %v1592, 0
        %vm1625 = vcmp.ne.s32.totalorder %v1593, 0
        %vm1626 = vcmp.ne.s32.totalorder %v1594, 0
        %vm1627 = vcmp.ne.s32.totalorder %v1595, 0
        %vm1628 = vcmp.ne.s32.totalorder %v1596, 0
        %vm1629 = vcmp.ne.s32.totalorder %v1597, 0
        %vm1630 = vcmp.ne.s32.totalorder %v1598, 0
        %vm1631 = vcmp.ne.s32.totalorder %v1599, 0
        %vm1632 = vcmp.ne.s32.totalorder %v1600, 0
        %vm1633 = vcmp.ne.s32.totalorder %v1601, 0
        %vm1634 = vcmp.ne.s32.totalorder %v1602, 0
        %vm1635 = vcmp.ne.s32.totalorder %v1603, 0
        %vm1636 = vcmp.ne.s32.totalorder %v1604, 0
        %vm1637 = vcmp.ne.s32.totalorder %v1605, 0
        %vm1638 = vcmp.ne.s32.totalorder %v1606, 0
        %vm1639 = vcmp.ne.s32.totalorder %v1607, 0
        %vm1640 = vcmp.ne.s32.totalorder %v1608, 0
        %vm1641 = vcmp.ne.s32.totalorder %v1609, 0
        %vm1642 = vcmp.ne.s32.totalorder %v1610, 0
        %vm1643 = vcmp.ne.s32.totalorder %v1611, 0
        %v1644 = vsel %vm1612, 1, 0
        %v1645 = vsel %vm1613, 1, 0
        %v1646 = vsel %vm1614, 1, 0
        %v1647 = vsel %vm1615, 1, 0
        %v1648 = vsel %vm1616, 1, 0
        %v1649 = vsel %vm1617, 1, 0
        %v1650 = vsel %vm1618, 1, 0
        %v1651 = vsel %vm1619, 1, 0
        %v1652 = vsel %vm1620, 1, 0
        %v1653 = vsel %vm1621, 1, 0
        %v1654 = vsel %vm1622, 1, 0
        %v1655 = vsel %vm1623, 1, 0
        %v1656 = vsel %vm1624, 1, 0
        %v1657 = vsel %vm1625, 1, 0
        %v1658 = vsel %vm1626, 1, 0
        %v1659 = vsel %vm1627, 1, 0
        %v1660 = vsel %vm1628, 1, 0
        %v1661 = vsel %vm1629, 1, 0
        %v1662 = vsel %vm1630, 1, 0
        %v1663 = vsel %vm1631, 1, 0
        %v1664 = vsel %vm1632, 1, 0
        %v1665 = vsel %vm1633, 1, 0
        %v1666 = vsel %vm1634, 1, 0
        %v1667 = vsel %vm1635, 1, 0
        %v1668 = vsel %vm1636, 1, 0
        %v1669 = vsel %vm1637, 1, 0
        %v1670 = vsel %vm1638, 1, 0
        %v1671 = vsel %vm1639, 1, 0
        %v1672 = vsel %vm1640, 1, 0
        %v1673 = vsel %vm1641, 1, 0
        %v1674 = vsel %vm1642, 1, 0
        %v1675 = vsel %vm1643, 1, 0
        %vm1676 = vcmp.eq.s32.totalorder %v1644, 1
        %vm1677 = vcmp.eq.s32.totalorder %v1645, 1
        %vm1678 = vcmp.eq.s32.totalorder %v1646, 1
        %vm1679 = vcmp.eq.s32.totalorder %v1647, 1
        %vm1680 = vcmp.eq.s32.totalorder %v1648, 1
        %vm1681 = vcmp.eq.s32.totalorder %v1649, 1
        %vm1682 = vcmp.eq.s32.totalorder %v1650, 1
        %vm1683 = vcmp.eq.s32.totalorder %v1651, 1
        %vm1684 = vcmp.eq.s32.totalorder %v1652, 1
        %vm1685 = vcmp.eq.s32.totalorder %v1653, 1
        %vm1686 = vcmp.eq.s32.totalorder %v1654, 1
        %vm1687 = vcmp.eq.s32.totalorder %v1655, 1
        %vm1688 = vcmp.eq.s32.totalorder %v1656, 1
        %vm1689 = vcmp.eq.s32.totalorder %v1657, 1
        %vm1690 = vcmp.eq.s32.totalorder %v1658, 1
        %vm1691 = vcmp.eq.s32.totalorder %v1659, 1
        %vm1692 = vcmp.eq.s32.totalorder %v1660, 1
        %vm1693 = vcmp.eq.s32.totalorder %v1661, 1
        %vm1694 = vcmp.eq.s32.totalorder %v1662, 1
        %vm1695 = vcmp.eq.s32.totalorder %v1663, 1
        %vm1696 = vcmp.eq.s32.totalorder %v1664, 1
        %vm1697 = vcmp.eq.s32.totalorder %v1665, 1
        %vm1698 = vcmp.eq.s32.totalorder %v1666, 1
        %vm1699 = vcmp.eq.s32.totalorder %v1667, 1
        %vm1700 = vcmp.eq.s32.totalorder %v1668, 1
        %vm1701 = vcmp.eq.s32.totalorder %v1669, 1
        %vm1702 = vcmp.eq.s32.totalorder %v1670, 1
        %vm1703 = vcmp.eq.s32.totalorder %v1671, 1
        %vm1704 = vcmp.eq.s32.totalorder %v1672, 1
        %vm1705 = vcmp.eq.s32.totalorder %v1673, 1
        %vm1706 = vcmp.eq.s32.totalorder %v1674, 1
        %vm1707 = vcmp.eq.s32.totalorder %v1675, 1
        %v1708 = vsel %vm1676, %v997, %v1412
        %v1709 = vsel %vm1677, %v999, %v1413
        %v1710 = vsel %vm1678, %v1003, %v1414
        %v1711 = vsel %vm1679, %v1005, %v1415
        %v1712 = vsel %vm1680, %v1009, %v1416
        %v1713 = vsel %vm1681, %v1011, %v1417
        %v1714 = vsel %vm1682, %v1015, %v1418
        %v1715 = vsel %vm1683, %v1017, %v1419
        %v1716 = vsel %vm1684, %v1021, %v1420
        %v1717 = vsel %vm1685, %v1023, %v1421
        %v1718 = vsel %vm1686, %v1027, %v1422
        %v1719 = vsel %vm1687, %v1029, %v1423
        %v1720 = vsel %vm1688, %v1033, %v1424
        %v1721 = vsel %vm1689, %v1035, %v1425
        %v1722 = vsel %vm1690, %v1039, %v1426
        %v1723 = vsel %vm1691, %v1041, %v1427
        %v1724 = vsel %vm1692, %v1045, %v1428
        %v1725 = vsel %vm1693, %v1047, %v1429
        %v1726 = vsel %vm1694, %v1051, %v1430
        %v1727 = vsel %vm1695, %v1053, %v1431
        %v1728 = vsel %vm1696, %v1057, %v1432
        %v1729 = vsel %vm1697, %v1059, %v1433
        %v1730 = vsel %vm1698, %v1063, %v1434
        %v1731 = vsel %vm1699, %v1065, %v1435
        %v1732 = vsel %vm1700, %v1069, %v1436
        %v1733 = vsel %vm1701, %v1071, %v1437
        %v1734 = vsel %vm1702, %v1075, %v1438
        %v1735 = vsel %vm1703, %v1077, %v1439
        %v1736 = vsel %vm1704, %v1081, %v1440
        %v1737 = vsel %vm1705, %v1083, %v1441
        %v1738 = vsel %vm1706, %v1087, %v1442
        %v1739 = vsel %vm1707, %v1089, %v1443
        %v1740 = vsel %vm1676, %v1302, %v1444
        %v1741 = vsel %vm1677, %v1304, %v1445
        %v1742 = vsel %vm1678, %v1308, %v1446
        %v1743 = vsel %vm1679, %v1310, %v1447
        %v1744 = vsel %vm1680, %v1314, %v1448
        %v1745 = vsel %vm1681, %v1316, %v1449
        %v1746 = vsel %vm1682, %v1320, %v1450
        %v1747 = vsel %vm1683, %v1322, %v1451
        %v1748 = vsel %vm1684, %v1326, %v1452
        %v1749 = vsel %vm1685, %v1328, %v1453
        %v1750 = vsel %vm1686, %v1332, %v1454
        %v1751 = vsel %vm1687, %v1334, %v1455
        %v1752 = vsel %vm1688, %v1338, %v1456
        %v1753 = vsel %vm1689, %v1340, %v1457
        %v1754 = vsel %vm1690, %v1344, %v1458
        %v1755 = vsel %vm1691, %v1346, %v1459
        %v1756 = vsel %vm1692, %v1350, %v1460
        %v1757 = vsel %vm1693, %v1352, %v1461
        %v1758 = vsel %vm1694, %v1356, %v1462
        %v1759 = vsel %vm1695, %v1358, %v1463
        %v1760 = vsel %vm1696, %v1362, %v1464
        %v1761 = vsel %vm1697, %v1364, %v1465
        %v1762 = vsel %vm1698, %v1368, %v1466
        %v1763 = vsel %vm1699, %v1370, %v1467
        %v1764 = vsel %vm1700, %v1374, %v1468
        %v1765 = vsel %vm1701, %v1376, %v1469
        %v1766 = vsel %vm1702, %v1380, %v1470
        %v1767 = vsel %vm1703, %v1382, %v1471
        %v1768 = vsel %vm1704, %v1386, %v1472
        %v1769 = vsel %vm1705, %v1388, %v1473
        %v1770 = vsel %vm1706, %v1392, %v1474
        %v1771 = vsel %vm1707, %v1394, %v1475
        %1772 = vst [vmem:[%s549] sm:$0xff] %v1708
        %1773 = vst [vmem:[%s549 + $0x8] sm:$0xff] %v1709
        %1774 = vst [vmem:[%s549 + $0x10] sm:$0xff] %v1710
        %1775 = vst [vmem:[%s549 + $0x18] sm:$0xff] %v1711
        %1776 = vst [vmem:[%s549 + $0x20] sm:$0xff] %v1712
        %1777 = vst [vmem:[%s549 + $0x28] sm:$0xff] %v1713
        %1778 = vst [vmem:[%s549 + $0x30] sm:$0xff] %v1714
        %1779 = vst [vmem:[%s549 + $0x38] sm:$0xff] %v1715
        %1780 = vst [vmem:[%s549 + $0x40] sm:$0xff] %v1716
        %1781 = vst [vmem:[%s549 + $0x48] sm:$0xff] %v1717
        %1782 = vst [vmem:[%s549 + $0x50] sm:$0xff] %v1718
        %1783 = vst [vmem:[%s549 + $0x58] sm:$0xff] %v1719
        %1784 = vst [vmem:[%s549 + $0x60] sm:$0xff] %v1720
        %1785 = vst [vmem:[%s549 + $0x68] sm:$0xff] %v1721
        %1786 = vst [vmem:[%s549 + $0x70] sm:$0xff] %v1722
        %1787 = vst [vmem:[%s549 + $0x78] sm:$0xff] %v1723
        %1788 = vst [vmem:[%s549 + $0x80] sm:$0xff] %v1724
        %1789 = vst [vmem:[%s549 + $0x88] sm:$0xff] %v1725
        %1790 = vst [vmem:[%s549 + $0x90] sm:$0xff] %v1726
        %1791 = vst [vmem:[%s549 + $0x98] sm:$0xff] %v1727
        %1792 = vst [vmem:[%s549 + $0xa0] sm:$0xff] %v1728
        %1793 = vst [vmem:[%s549 + $0xa8] sm:$0xff] %v1729
        %1794 = vst [vmem:[%s549 + $0xb0] sm:$0xff] %v1730
        %1795 = vst [vmem:[%s549 + $0xb8] sm:$0xff] %v1731
        %1796 = vst [vmem:[%s549 + $0xc0] sm:$0xff] %v1732
        %1797 = vst [vmem:[%s549 + $0xc8] sm:$0xff] %v1733
        %1798 = vst [vmem:[%s549 + $0xd0] sm:$0xff] %v1734
        %1799 = vst [vmem:[%s549 + $0xd8] sm:$0xff] %v1735
        %1800 = vst [vmem:[%s549 + $0xe0] sm:$0xff] %v1736
        %1801 = vst [vmem:[%s549 + $0xe8] sm:$0xff] %v1737
        %1802 = vst [vmem:[%s549 + $0xf0] sm:$0xff] %v1738
        %1803 = vst [vmem:[%s549 + $0xf8] sm:$0xff] %v1739
        %1804 = vst [vmem:[%s549 + $0x100] sm:$0xff] %v1740
        %1805 = vst [vmem:[%s549 + $0x108] sm:$0xff] %v1741
        %1806 = vst [vmem:[%s549 + $0x110] sm:$0xff] %v1742
        %1807 = vst [vmem:[%s549 + $0x118] sm:$0xff] %v1743
        %1808 = vst [vmem:[%s549 + $0x120] sm:$0xff] %v1744
        %1809 = vst [vmem:[%s549 + $0x128] sm:$0xff] %v1745
        %1810 = vst [vmem:[%s549 + $0x130] sm:$0xff] %v1746
        %1811 = vst [vmem:[%s549 + $0x138] sm:$0xff] %v1747
        %1812 = vst [vmem:[%s549 + $0x140] sm:$0xff] %v1748
        %1813 = vst [vmem:[%s549 + $0x148] sm:$0xff] %v1749
        %1814 = vst [vmem:[%s549 + $0x150] sm:$0xff] %v1750
        %1815 = vst [vmem:[%s549 + $0x158] sm:$0xff] %v1751
        %1816 = vst [vmem:[%s549 + $0x160] sm:$0xff] %v1752
        %1817 = vst [vmem:[%s549 + $0x168] sm:$0xff] %v1753
        %1818 = vst [vmem:[%s549 + $0x170] sm:$0xff] %v1754
        %1819 = vst [vmem:[%s549 + $0x178] sm:$0xff] %v1755
        %1820 = vst [vmem:[%s549 + $0x180] sm:$0xff] %v1756
        %1821 = vst [vmem:[%s549 + $0x188] sm:$0xff] %v1757
        %1822 = vst [vmem:[%s549 + $0x190] sm:$0xff] %v1758
        %1823 = vst [vmem:[%s549 + $0x198] sm:$0xff] %v1759
        %1824 = vst [vmem:[%s549 + $0x1a0] sm:$0xff] %v1760
        %1825 = vst [vmem:[%s549 + $0x1a8] sm:$0xff] %v1761
        %1826 = vst [vmem:[%s549 + $0x1b0] sm:$0xff] %v1762
        %1827 = vst [vmem:[%s549 + $0x1b8] sm:$0xff] %v1763
        %1828 = vst [vmem:[%s549 + $0x1c0] sm:$0xff] %v1764
        %1829 = vst [vmem:[%s549 + $0x1c8] sm:$0xff] %v1765
        %1830 = vst [vmem:[%s549 + $0x1d0] sm:$0xff] %v1766
        %1831 = vst [vmem:[%s549 + $0x1d8] sm:$0xff] %v1767
        %1832 = vst [vmem:[%s549 + $0x1e0] sm:$0xff] %v1768
        %1833 = vst [vmem:[%s549 + $0x1e8] sm:$0xff] %v1769
        %1834 = vst [vmem:[%s549 + $0x1f0] sm:$0xff] %v1770
        %1835 = vst [vmem:[%s549 + $0x1f8] sm:$0xff] %v1771
        %v1836 = vmax.f32 %v1708, %v1709
        %1837 = vmax.xlane.f32.xlu0 %v1836
        %v1838 = vpop.xlane.xlu0 %1837
        %v1839 = vmax.f32 %v1710, %v1711
        %1840 = vmax.xlane.f32.xlu0 %v1839
        %v1841 = vpop.xlane.xlu0 %1840
        %v1842 = vmax.f32 %v1712, %v1713
        %1843 = vmax.xlane.f32.xlu0 %v1842
        %v1844 = vpop.xlane.xlu0 %1843
        %v1845 = vmax.f32 %v1714, %v1715
        %1846 = vmax.xlane.f32.xlu0 %v1845
        %v1847 = vpop.xlane.xlu0 %1846
        %v1848 = vmax.f32 %v1716, %v1717
        %1849 = vmax.xlane.f32.xlu0 %v1848
        %v1850 = vpop.xlane.xlu0 %1849
        %v1851 = vmax.f32 %v1718, %v1719
        %1852 = vmax.xlane.f32.xlu0 %v1851
        %v1853 = vpop.xlane.xlu0 %1852
        %v1854 = vmax.f32 %v1720, %v1721
        %1855 = vmax.xlane.f32.xlu0 %v1854
        %v1856 = vpop.xlane.xlu0 %1855
        %v1857 = vmax.f32 %v1722, %v1723
        %1858 = vmax.xlane.f32.xlu0 %v1857
        %v1859 = vpop.xlane.xlu0 %1858
        %v1860 = vmax.f32 %v1724, %v1725
        %1861 = vmax.xlane.f32.xlu0 %v1860
        %v1862 = vpop.xlane.xlu0 %1861
        %v1863 = vmax.f32 %v1726, %v1727
        %1864 = vmax.xlane.f32.xlu0 %v1863
        %v1865 = vpop.xlane.xlu0 %1864
        %v1866 = vmax.f32 %v1728, %v1729
        %1867 = vmax.xlane.f32.xlu0 %v1866
        %v1868 = vpop.xlane.xlu0 %1867
        %v1869 = vmax.f32 %v1730, %v1731
        %1870 = vmax.xlane.f32.xlu0 %v1869
        %v1871 = vpop.xlane.xlu0 %1870
        %v1872 = vmax.f32 %v1732, %v1733
        %1873 = vmax.xlane.f32.xlu0 %v1872
        %v1874 = vpop.xlane.xlu0 %1873
        %v1875 = vmax.f32 %v1734, %v1735
        %1876 = vmax.xlane.f32.xlu0 %v1875
        %v1877 = vpop.xlane.xlu0 %1876
        %v1878 = vmax.f32 %v1736, %v1737
        %1879 = vmax.xlane.f32.xlu0 %v1878
        %v1880 = vpop.xlane.xlu0 %1879
        %v1881 = vmax.f32 %v1738, %v1739
        %1882 = vmax.xlane.f32.xlu0 %v1881
        %v1883 = vpop.xlane.xlu0 %1882
        %v1884 = vmax.f32 %v1740, %v1741
        %1885 = vmax.xlane.f32.xlu0 %v1884
        %v1886 = vpop.xlane.xlu0 %1885
        %v1887 = vmax.f32 %v1742, %v1743
        %1888 = vmax.xlane.f32.xlu0 %v1887
        %v1889 = vpop.xlane.xlu0 %1888
        %v1890 = vmax.f32 %v1744, %v1745
        %1891 = vmax.xlane.f32.xlu0 %v1890
        %v1892 = vpop.xlane.xlu0 %1891
        %v1893 = vmax.f32 %v1746, %v1747
        %1894 = vmax.xlane.f32.xlu0 %v1893
        %v1895 = vpop.xlane.xlu0 %1894
        %v1896 = vmax.f32 %v1748, %v1749
        %1897 = vmax.xlane.f32.xlu0 %v1896
        %v1898 = vpop.xlane.xlu0 %1897
        %v1899 = vmax.f32 %v1750, %v1751
        %1900 = vmax.xlane.f32.xlu0 %v1899
        %v1901 = vpop.xlane.xlu0 %1900
        %v1902 = vmax.f32 %v1752, %v1753
        %1903 = vmax.xlane.f32.xlu0 %v1902
        %v1904 = vpop.xlane.xlu0 %1903
        %v1905 = vmax.f32 %v1754, %v1755
        %1906 = vmax.xlane.f32.xlu0 %v1905
        %v1907 = vpop.xlane.xlu0 %1906
        %v1908 = vmax.f32 %v1756, %v1757
        %1909 = vmax.xlane.f32.xlu0 %v1908
        %v1910 = vpop.xlane.xlu0 %1909
        %v1911 = vmax.f32 %v1758, %v1759
        %1912 = vmax.xlane.f32.xlu0 %v1911
        %v1913 = vpop.xlane.xlu0 %1912
        %v1914 = vmax.f32 %v1760, %v1761
        %1915 = vmax.xlane.f32.xlu0 %v1914
        %v1916 = vpop.xlane.xlu0 %1915
        %v1917 = vmax.f32 %v1762, %v1763
        %1918 = vmax.xlane.f32.xlu0 %v1917
        %v1919 = vpop.xlane.xlu0 %1918
        %v1920 = vmax.f32 %v1764, %v1765
        %1921 = vmax.xlane.f32.xlu0 %v1920
        %v1922 = vpop.xlane.xlu0 %1921
        %v1923 = vmax.f32 %v1766, %v1767
        %1924 = vmax.xlane.f32.xlu0 %v1923
        %v1925 = vpop.xlane.xlu0 %1924
        %v1926 = vmax.f32 %v1768, %v1769
        %1927 = vmax.xlane.f32.xlu0 %v1926
        %v1928 = vpop.xlane.xlu0 %1927
        %v1929 = vmax.f32 %v1770, %v1771
        %1930 = vmax.xlane.f32.xlu0 %v1929
        %v1931 = vpop.xlane.xlu0 %1930
        %v1932 = vsub.f32 %v1708, %v1838
        %v1933 = vsub.f32 %v1709, %v1838
        %v1934 = vsub.f32 %v1710, %v1841
        %v1935 = vsub.f32 %v1711, %v1841
        %v1936 = vsub.f32 %v1712, %v1844
        %v1937 = vsub.f32 %v1713, %v1844
        %v1938 = vsub.f32 %v1714, %v1847
        %v1939 = vsub.f32 %v1715, %v1847
        %v1940 = vsub.f32 %v1716, %v1850
        %v1941 = vsub.f32 %v1717, %v1850
        %v1942 = vsub.f32 %v1718, %v1853
        %v1943 = vsub.f32 %v1719, %v1853
        %v1944 = vsub.f32 %v1720, %v1856
        %v1945 = vsub.f32 %v1721, %v1856
        %v1946 = vsub.f32 %v1722, %v1859
        %v1947 = vsub.f32 %v1723, %v1859
        %v1948 = vsub.f32 %v1724, %v1862
        %v1949 = vsub.f32 %v1725, %v1862
        %v1950 = vsub.f32 %v1726, %v1865
        %v1951 = vsub.f32 %v1727, %v1865
        %v1952 = vsub.f32 %v1728, %v1868
        %v1953 = vsub.f32 %v1729, %v1868
        %v1954 = vsub.f32 %v1730, %v1871
        %v1955 = vsub.f32 %v1731, %v1871
        %v1956 = vsub.f32 %v1732, %v1874
        %v1957 = vsub.f32 %v1733, %v1874
        %v1958 = vsub.f32 %v1734, %v1877
        %v1959 = vsub.f32 %v1735, %v1877
        %v1960 = vsub.f32 %v1736, %v1880
        %v1961 = vsub.f32 %v1737, %v1880
        %v1962 = vsub.f32 %v1738, %v1883
        %v1963 = vsub.f32 %v1739, %v1883
        %v1964 = vsub.f32 %v1740, %v1886
        %v1965 = vsub.f32 %v1741, %v1886
        %v1966 = vsub.f32 %v1742, %v1889
        %v1967 = vsub.f32 %v1743, %v1889
        %v1968 = vsub.f32 %v1744, %v1892
        %v1969 = vsub.f32 %v1745, %v1892
        %v1970 = vsub.f32 %v1746, %v1895
        %v1971 = vsub.f32 %v1747, %v1895
        %v1972 = vsub.f32 %v1748, %v1898
        %v1973 = vsub.f32 %v1749, %v1898
        %v1974 = vsub.f32 %v1750, %v1901
        %v1975 = vsub.f32 %v1751, %v1901
        %v1976 = vsub.f32 %v1752, %v1904
        %v1977 = vsub.f32 %v1753, %v1904
        %v1978 = vsub.f32 %v1754, %v1907
        %v1979 = vsub.f32 %v1755, %v1907
        %v1980 = vsub.f32 %v1756, %v1910
        %v1981 = vsub.f32 %v1757, %v1910
        %v1982 = vsub.f32 %v1758, %v1913
        %v1983 = vsub.f32 %v1759, %v1913
        %v1984 = vsub.f32 %v1760, %v1916
        %v1985 = vsub.f32 %v1761, %v1916
        %v1986 = vsub.f32 %v1762, %v1919
        %v1987 = vsub.f32 %v1763, %v1919
        %v1988 = vsub.f32 %v1764, %v1922
        %v1989 = vsub.f32 %v1765, %v1922
        %v1990 = vsub.f32 %v1766, %v1925
        %v1991 = vsub.f32 %v1767, %v1925
        %v1992 = vsub.f32 %v1768, %v1928
        %v1993 = vsub.f32 %v1769, %v1928
        %v1994 = vsub.f32 %v1770, %v1931
        %v1995 = vsub.f32 %v1771, %v1931
        %v1996 = vmul.f32 %v1932, 1.442695
        %v1997 = vpow.pop %v1996
        %v1998 = vmul.f32 %v1933, 1.442695
        %v1999 = vpow.pop %v1998
        %v2000 = vmul.f32 %v1934, 1.442695
        %v2001 = vpow.pop %v2000
        %v2002 = vmul.f32 %v1935, 1.442695
        %v2003 = vpow.pop %v2002
        %v2004 = vmul.f32 %v1936, 1.442695
        %v2005 = vpow.pop %v2004
        %v2006 = vmul.f32 %v1937, 1.442695
        %v2007 = vpow.pop %v2006
        %v2008 = vmul.f32 %v1938, 1.442695
        %v2009 = vpow.pop %v2008
        %v2010 = vmul.f32 %v1939, 1.442695
        %v2011 = vpow.pop %v2010
        %v2012 = vmul.f32 %v1940, 1.442695
        %v2013 = vpow.pop %v2012
        %v2014 = vmul.f32 %v1941, 1.442695
        %v2015 = vpow.pop %v2014
        %v2016 = vmul.f32 %v1942, 1.442695
        %v2017 = vpow.pop %v2016
        %v2018 = vmul.f32 %v1943, 1.442695
        %v2019 = vpow.pop %v2018
        %v2020 = vmul.f32 %v1944, 1.442695
        %v2021 = vpow.pop %v2020
        %v2022 = vmul.f32 %v1945, 1.442695
        %v2023 = vpow.pop %v2022
        %v2024 = vmul.f32 %v1946, 1.442695
        %v2025 = vpow.pop %v2024
        %v2026 = vmul.f32 %v1947, 1.442695
        %v2027 = vpow.pop %v2026
        %v2028 = vmul.f32 %v1948, 1.442695
        %v2029 = vpow.pop %v2028
        %v2030 = vmul.f32 %v1949, 1.442695
        %v2031 = vpow.pop %v2030
        %v2032 = vmul.f32 %v1950, 1.442695
        %v2033 = vpow.pop %v2032
        %v2034 = vmul.f32 %v1951, 1.442695
        %v2035 = vpow.pop %v2034
        %v2036 = vmul.f32 %v1952, 1.442695
        %v2037 = vpow.pop %v2036
        %v2038 = vmul.f32 %v1953, 1.442695
        %v2039 = vpow.pop %v2038
        %v2040 = vmul.f32 %v1954, 1.442695
        %v2041 = vpow.pop %v2040
        %v2042 = vmul.f32 %v1955, 1.442695
        %v2043 = vpow.pop %v2042
        %v2044 = vmul.f32 %v1956, 1.442695
        %v2045 = vpow.pop %v2044
        %v2046 = vmul.f32 %v1957, 1.442695
        %v2047 = vpow.pop %v2046
        %v2048 = vmul.f32 %v1958, 1.442695
        %v2049 = vpow.pop %v2048
        %v2050 = vmul.f32 %v1959, 1.442695
        %v2051 = vpow.pop %v2050
        %v2052 = vmul.f32 %v1960, 1.442695
        %v2053 = vpow.pop %v2052
        %v2054 = vmul.f32 %v1961, 1.442695
        %v2055 = vpow.pop %v2054
        %v2056 = vmul.f32 %v1962, 1.442695
        %v2057 = vpow.pop %v2056
        %v2058 = vmul.f32 %v1963, 1.442695
        %v2059 = vpow.pop %v2058
        %v2060 = vmul.f32 %v1964, 1.442695
        %v2061 = vpow.pop %v2060
        %v2062 = vmul.f32 %v1965, 1.442695
        %v2063 = vpow.pop %v2062
        %v2064 = vmul.f32 %v1966, 1.442695
        %v2065 = vpow.pop %v2064
        %v2066 = vmul.f32 %v1967, 1.442695
        %v2067 = vpow.pop %v2066
        %v2068 = vmul.f32 %v1968, 1.442695
        %v2069 = vpow.pop %v2068
        %v2070 = vmul.f32 %v1969, 1.442695
        %v2071 = vpow.pop %v2070
        %v2072 = vmul.f32 %v1970, 1.442695
        %v2073 = vpow.pop %v2072
        %v2074 = vmul.f32 %v1971, 1.442695
        %v2075 = vpow.pop %v2074
        %v2076 = vmul.f32 %v1972, 1.442695
        %v2077 = vpow.pop %v2076
        %v2078 = vmul.f32 %v1973, 1.442695
        %v2079 = vpow.pop %v2078
        %v2080 = vmul.f32 %v1974, 1.442695
        %v2081 = vpow.pop %v2080
        %v2082 = vmul.f32 %v1975, 1.442695
        %v2083 = vpow.pop %v2082
        %v2084 = vmul.f32 %v1976, 1.442695
        %v2085 = vpow.pop %v2084
        %v2086 = vmul.f32 %v1977, 1.442695
        %v2087 = vpow.pop %v2086
        %v2088 = vmul.f32 %v1978, 1.442695
        %v2089 = vpow.pop %v2088
        %v2090 = vmul.f32 %v1979, 1.442695
        %v2091 = vpow.pop %v2090
        %v2092 = vmul.f32 %v1980, 1.442695
        %v2093 = vpow.pop %v2092
        %v2094 = vmul.f32 %v1981, 1.442695
        %v2095 = vpow.pop %v2094
        %v2096 = vmul.f32 %v1982, 1.442695
        %v2097 = vpow.pop %v2096
        %v2098 = vmul.f32 %v1983, 1.442695
        %v2099 = vpow.pop %v2098
        %v2100 = vmul.f32 %v1984, 1.442695
        %v2101 = vpow.pop %v2100
        %v2102 = vmul.f32 %v1985, 1.442695
        %v2103 = vpow.pop %v2102
        %v2104 = vmul.f32 %v1986, 1.442695
        %v2105 = vpow.pop %v2104
        %v2106 = vmul.f32 %v1987, 1.442695
        %v2107 = vpow.pop %v2106
        %v2108 = vmul.f32 %v1988, 1.442695
        %v2109 = vpow.pop %v2108
        %v2110 = vmul.f32 %v1989, 1.442695
        %v2111 = vpow.pop %v2110
        %v2112 = vmul.f32 %v1990, 1.442695
        %v2113 = vpow.pop %v2112
        %v2114 = vmul.f32 %v1991, 1.442695
        %v2115 = vpow.pop %v2114
        %v2116 = vmul.f32 %v1992, 1.442695
        %v2117 = vpow.pop %v2116
        %v2118 = vmul.f32 %v1993, 1.442695
        %v2119 = vpow.pop %v2118
        %v2120 = vmul.f32 %v1994, 1.442695
        %v2121 = vpow.pop %v2120
        %v2122 = vmul.f32 %v1995, 1.442695
        %v2123 = vpow.pop %v2122
        %v2124 = vadd.f32 %v1997, %v1999
        %2125 = vadd.xlane.f32.xlu0 %v2124
        %v2126 = vpop.xlane.xlu0 %2125
        %v2127 = vadd.f32 %v2001, %v2003
        %2128 = vadd.xlane.f32.xlu0 %v2127
        %v2129 = vpop.xlane.xlu0 %2128
        %v2130 = vadd.f32 %v2005, %v2007
        %2131 = vadd.xlane.f32.xlu0 %v2130
        %v2132 = vpop.xlane.xlu0 %2131
        %v2133 = vadd.f32 %v2009, %v2011
        %2134 = vadd.xlane.f32.xlu0 %v2133
        %v2135 = vpop.xlane.xlu0 %2134
        %v2136 = vadd.f32 %v2013, %v2015
        %2137 = vadd.xlane.f32.xlu0 %v2136
        %v2138 = vpop.xlane.xlu0 %2137
        %v2139 = vadd.f32 %v2017, %v2019
        %2140 = vadd.xlane.f32.xlu0 %v2139
        %v2141 = vpop.xlane.xlu0 %2140
        %v2142 = vadd.f32 %v2021, %v2023
        %2143 = vadd.xlane.f32.xlu0 %v2142
        %v2144 = vpop.xlane.xlu0 %2143
        %v2145 = vadd.f32 %v2025, %v2027
        %2146 = vadd.xlane.f32.xlu0 %v2145
        %v2147 = vpop.xlane.xlu0 %2146
        %v2148 = vadd.f32 %v2029, %v2031
        %2149 = vadd.xlane.f32.xlu0 %v2148
        %v2150 = vpop.xlane.xlu0 %2149
        %v2151 = vadd.f32 %v2033, %v2035
        %2152 = vadd.xlane.f32.xlu0 %v2151
        %v2153 = vpop.xlane.xlu0 %2152
        %v2154 = vadd.f32 %v2037, %v2039
        %2155 = vadd.xlane.f32.xlu0 %v2154
        %v2156 = vpop.xlane.xlu0 %2155
        %v2157 = vadd.f32 %v2041, %v2043
        %2158 = vadd.xlane.f32.xlu0 %v2157
        %v2159 = vpop.xlane.xlu0 %2158
        %v2160 = vadd.f32 %v2045, %v2047
        %2161 = vadd.xlane.f32.xlu0 %v2160
        %v2162 = vpop.xlane.xlu0 %2161
        %v2163 = vadd.f32 %v2049, %v2051
        %2164 = vadd.xlane.f32.xlu0 %v2163
        %v2165 = vpop.xlane.xlu0 %2164
        %v2166 = vadd.f32 %v2053, %v2055
        %2167 = vadd.xlane.f32.xlu0 %v2166
        %v2168 = vpop.xlane.xlu0 %2167
        %v2169 = vadd.f32 %v2057, %v2059
        %2170 = vadd.xlane.f32.xlu0 %v2169
        %v2171 = vpop.xlane.xlu0 %2170
        %v2172 = vadd.f32 %v2061, %v2063
        %2173 = vadd.xlane.f32.xlu0 %v2172
        %v2174 = vpop.xlane.xlu0 %2173
        %v2175 = vadd.f32 %v2065, %v2067
        %2176 = vadd.xlane.f32.xlu0 %v2175
        %v2177 = vpop.xlane.xlu0 %2176
        %v2178 = vadd.f32 %v2069, %v2071
        %2179 = vadd.xlane.f32.xlu0 %v2178
        %v2180 = vpop.xlane.xlu0 %2179
        %v2181 = vadd.f32 %v2073, %v2075
        %2182 = vadd.xlane.f32.xlu0 %v2181
        %v2183 = vpop.xlane.xlu0 %2182
        %v2184 = vadd.f32 %v2077, %v2079
        %2185 = vadd.xlane.f32.xlu0 %v2184
        %v2186 = vpop.xlane.xlu0 %2185
        %v2187 = vadd.f32 %v2081, %v2083
        %2188 = vadd.xlane.f32.xlu0 %v2187
        %v2189 = vpop.xlane.xlu0 %2188
        %v2190 = vadd.f32 %v2085, %v2087
        %2191 = vadd.xlane.f32.xlu0 %v2190
        %v2192 = vpop.xlane.xlu0 %2191
        %v2193 = vadd.f32 %v2089, %v2091
        %2194 = vadd.xlane.f32.xlu0 %v2193
        %v2195 = vpop.xlane.xlu0 %2194
        %v2196 = vadd.f32 %v2093, %v2095
        %2197 = vadd.xlane.f32.xlu0 %v2196
        %v2198 = vpop.xlane.xlu0 %2197
        %v2199 = vadd.f32 %v2097, %v2099
        %2200 = vadd.xlane.f32.xlu0 %v2199
        %v2201 = vpop.xlane.xlu0 %2200
        %v2202 = vadd.f32 %v2101, %v2103
        %2203 = vadd.xlane.f32.xlu0 %v2202
        %v2204 = vpop.xlane.xlu0 %2203
        %v2205 = vadd.f32 %v2105, %v2107
        %2206 = vadd.xlane.f32.xlu0 %v2205
        %v2207 = vpop.xlane.xlu0 %2206
        %v2208 = vadd.f32 %v2109, %v2111
        %2209 = vadd.xlane.f32.xlu0 %v2208
        %v2210 = vpop.xlane.xlu0 %2209
        %v2211 = vadd.f32 %v2113, %v2115
        %2212 = vadd.xlane.f32.xlu0 %v2211
        %v2213 = vpop.xlane.xlu0 %2212
        %v2214 = vadd.f32 %v2117, %v2119
        %2215 = vadd.xlane.f32.xlu0 %v2214
        %v2216 = vpop.xlane.xlu0 %2215
        %v2217 = vadd.f32 %v2121, %v2123
        %2218 = vadd.xlane.f32.xlu0 %v2217
        %v2219 = vpop.xlane.xlu0 %2218
        %v2220 = vrcp.pop %v2126
        %v2221 = vrcp.pop %v2129
        %v2222 = vrcp.pop %v2132
        %v2223 = vrcp.pop %v2135
        %v2224 = vrcp.pop %v2138
        %v2225 = vrcp.pop %v2141
        %v2226 = vrcp.pop %v2144
        %v2227 = vrcp.pop %v2147
        %v2228 = vrcp.pop %v2150
        %v2229 = vrcp.pop %v2153
        %v2230 = vrcp.pop %v2156
        %v2231 = vrcp.pop %v2159
        %v2232 = vrcp.pop %v2162
        %v2233 = vrcp.pop %v2165
        %v2234 = vrcp.pop %v2168
        %v2235 = vrcp.pop %v2171
        %v2236 = vrcp.pop %v2174
        %v2237 = vrcp.pop %v2177
        %v2238 = vrcp.pop %v2180
        %v2239 = vrcp.pop %v2183
        %v2240 = vrcp.pop %v2186
        %v2241 = vrcp.pop %v2189
        %v2242 = vrcp.pop %v2192
        %v2243 = vrcp.pop %v2195
        %v2244 = vrcp.pop %v2198
        %v2245 = vrcp.pop %v2201
        %v2246 = vrcp.pop %v2204
        %v2247 = vrcp.pop %v2207
        %v2248 = vrcp.pop %v2210
        %v2249 = vrcp.pop %v2213
        %v2250 = vrcp.pop %v2216
        %v2251 = vrcp.pop %v2219
        %v2252 = vmul.f32 %v1997, %v2220
        %v2253 = vmul.f32 %v1999, %v2220
        %v2254 = vmul.f32 %v2001, %v2221
        %v2255 = vmul.f32 %v2003, %v2221
        %v2256 = vmul.f32 %v2005, %v2222
        %v2257 = vmul.f32 %v2007, %v2222
        %v2258 = vmul.f32 %v2009, %v2223
        %v2259 = vmul.f32 %v2011, %v2223
        %v2260 = vmul.f32 %v2013, %v2224
        %v2261 = vmul.f32 %v2015, %v2224
        %v2262 = vmul.f32 %v2017, %v2225
        %v2263 = vmul.f32 %v2019, %v2225
        %v2264 = vmul.f32 %v2021, %v2226
        %v2265 = vmul.f32 %v2023, %v2226
        %v2266 = vmul.f32 %v2025, %v2227
        %v2267 = vmul.f32 %v2027, %v2227
        %v2268 = vmul.f32 %v2029, %v2228
        %v2269 = vmul.f32 %v2031, %v2228
        %v2270 = vmul.f32 %v2033, %v2229
        %v2271 = vmul.f32 %v2035, %v2229
        %v2272 = vmul.f32 %v2037, %v2230
        %v2273 = vmul.f32 %v2039, %v2230
        %v2274 = vmul.f32 %v2041, %v2231
        %v2275 = vmul.f32 %v2043, %v2231
        %v2276 = vmul.f32 %v2045, %v2232
        %v2277 = vmul.f32 %v2047, %v2232
        %v2278 = vmul.f32 %v2049, %v2233
        %v2279 = vmul.f32 %v2051, %v2233
        %v2280 = vmul.f32 %v2053, %v2234
        %v2281 = vmul.f32 %v2055, %v2234
        %v2282 = vmul.f32 %v2057, %v2235
        %v2283 = vmul.f32 %v2059, %v2235
        %v2284 = vmul.f32 %v2061, %v2236
        %v2285 = vmul.f32 %v2063, %v2236
        %v2286 = vmul.f32 %v2065, %v2237
        %v2287 = vmul.f32 %v2067, %v2237
        %v2288 = vmul.f32 %v2069, %v2238
        %v2289 = vmul.f32 %v2071, %v2238
        %v2290 = vmul.f32 %v2073, %v2239
        %v2291 = vmul.f32 %v2075, %v2239
        %v2292 = vmul.f32 %v2077, %v2240
        %v2293 = vmul.f32 %v2079, %v2240
        %v2294 = vmul.f32 %v2081, %v2241
        %v2295 = vmul.f32 %v2083, %v2241
        %v2296 = vmul.f32 %v2085, %v2242
        %v2297 = vmul.f32 %v2087, %v2242
        %v2298 = vmul.f32 %v2089, %v2243
        %v2299 = vmul.f32 %v2091, %v2243
        %v2300 = vmul.f32 %v2093, %v2244
        %v2301 = vmul.f32 %v2095, %v2244
        %v2302 = vmul.f32 %v2097, %v2245
        %v2303 = vmul.f32 %v2099, %v2245
        %v2304 = vmul.f32 %v2101, %v2246
        %v2305 = vmul.f32 %v2103, %v2246
        %v2306 = vmul.f32 %v2105, %v2247
        %v2307 = vmul.f32 %v2107, %v2247
        %v2308 = vmul.f32 %v2109, %v2248
        %v2309 = vmul.f32 %v2111, %v2248
        %v2310 = vmul.f32 %v2113, %v2249
        %v2311 = vmul.f32 %v2115, %v2249
        %v2312 = vmul.f32 %v2117, %v2250
        %v2313 = vmul.f32 %v2119, %v2250
        %v2314 = vmul.f32 %v2121, %v2251
        %v2315 = vmul.f32 %v2123, %v2251
        %2316 = vst [vmem:[%s542] sm:$0xff] %v2252
        %2317 = vst [vmem:[%s542 + $0x8] sm:$0xff] %v2253
        %2318 = vst [vmem:[%s542 + $0x10] sm:$0xff] %v2254
        %2319 = vst [vmem:[%s542 + $0x18] sm:$0xff] %v2255
        %2320 = vst [vmem:[%s542 + $0x20] sm:$0xff] %v2256
        %2321 = vst [vmem:[%s542 + $0x28] sm:$0xff] %v2257
        %2322 = vst [vmem:[%s542 + $0x30] sm:$0xff] %v2258
        %2323 = vst [vmem:[%s542 + $0x38] sm:$0xff] %v2259
        %2324 = vst [vmem:[%s542 + $0x40] sm:$0xff] %v2260
        %2325 = vst [vmem:[%s542 + $0x48] sm:$0xff] %v2261
        %2326 = vst [vmem:[%s542 + $0x50] sm:$0xff] %v2262
        %2327 = vst [vmem:[%s542 + $0x58] sm:$0xff] %v2263
        %2328 = vst [vmem:[%s542 + $0x60] sm:$0xff] %v2264
        %2329 = vst [vmem:[%s542 + $0x68] sm:$0xff] %v2265
        %2330 = vst [vmem:[%s542 + $0x70] sm:$0xff] %v2266
        %2331 = vst [vmem:[%s542 + $0x78] sm:$0xff] %v2267
        %2332 = vst [vmem:[%s542 + $0x80] sm:$0xff] %v2268
        %2333 = vst [vmem:[%s542 + $0x88] sm:$0xff] %v2269
        %2334 = vst [vmem:[%s542 + $0x90] sm:$0xff] %v2270
        %2335 = vst [vmem:[%s542 + $0x98] sm:$0xff] %v2271
        %2336 = vst [vmem:[%s542 + $0xa0] sm:$0xff] %v2272
        %2337 = vst [vmem:[%s542 + $0xa8] sm:$0xff] %v2273
        %2338 = vst [vmem:[%s542 + $0xb0] sm:$0xff] %v2274
        %2339 = vst [vmem:[%s542 + $0xb8] sm:$0xff] %v2275
        %2340 = vst [vmem:[%s542 + $0xc0] sm:$0xff] %v2276
        %2341 = vst [vmem:[%s542 + $0xc8] sm:$0xff] %v2277
        %2342 = vst [vmem:[%s542 + $0xd0] sm:$0xff] %v2278
        %2343 = vst [vmem:[%s542 + $0xd8] sm:$0xff] %v2279
        %2344 = vst [vmem:[%s542 + $0xe0] sm:$0xff] %v2280
        %2345 = vst [vmem:[%s542 + $0xe8] sm:$0xff] %v2281
        %2346 = vst [vmem:[%s542 + $0xf0] sm:$0xff] %v2282
        %2347 = vst [vmem:[%s542 + $0xf8] sm:$0xff] %v2283
        %2348 = vst [vmem:[%s542 + $0x100] sm:$0xff] %v2284
        %2349 = vst [vmem:[%s542 + $0x108] sm:$0xff] %v2285
        %2350 = vst [vmem:[%s542 + $0x110] sm:$0xff] %v2286
        %2351 = vst [vmem:[%s542 + $0x118] sm:$0xff] %v2287
        %2352 = vst [vmem:[%s542 + $0x120] sm:$0xff] %v2288
        %2353 = vst [vmem:[%s542 + $0x128] sm:$0xff] %v2289
        %2354 = vst [vmem:[%s542 + $0x130] sm:$0xff] %v2290
        %2355 = vst [vmem:[%s542 + $0x138] sm:$0xff] %v2291
        %2356 = vst [vmem:[%s542 + $0x140] sm:$0xff] %v2292
        %2357 = vst [vmem:[%s542 + $0x148] sm:$0xff] %v2293
        %2358 = vst [vmem:[%s542 + $0x150] sm:$0xff] %v2294
        %2359 = vst [vmem:[%s542 + $0x158] sm:$0xff] %v2295
        %2360 = vst [vmem:[%s542 + $0x160] sm:$0xff] %v2296
        %2361 = vst [vmem:[%s542 + $0x168] sm:$0xff] %v2297
        %2362 = vst [vmem:[%s542 + $0x170] sm:$0xff] %v2298
        %2363 = vst [vmem:[%s542 + $0x178] sm:$0xff] %v2299
        %2364 = vst [vmem:[%s542 + $0x180] sm:$0xff] %v2300
        %2365 = vst [vmem:[%s542 + $0x188] sm:$0xff] %v2301
        %2366 = vst [vmem:[%s542 + $0x190] sm:$0xff] %v2302
        %2367 = vst [vmem:[%s542 + $0x198] sm:$0xff] %v2303
        %2368 = vst [vmem:[%s542 + $0x1a0] sm:$0xff] %v2304
        %2369 = vst [vmem:[%s542 + $0x1a8] sm:$0xff] %v2305
        %2370 = vst [vmem:[%s542 + $0x1b0] sm:$0xff] %v2306
        %2371 = vst [vmem:[%s542 + $0x1b8] sm:$0xff] %v2307
        %2372 = vst [vmem:[%s542 + $0x1c0] sm:$0xff] %v2308
        %2373 = vst [vmem:[%s542 + $0x1c8] sm:$0xff] %v2309
        %2374 = vst [vmem:[%s542 + $0x1d0] sm:$0xff] %v2310
        %2375 = vst [vmem:[%s542 + $0x1d8] sm:$0xff] %v2311
        %2376 = vst [vmem:[%s542 + $0x1e0] sm:$0xff] %v2312
        %2377 = vst [vmem:[%s542 + $0x1e8] sm:$0xff] %v2313
        %2378 = vst [vmem:[%s542 + $0x1f0] sm:$0xff] %v2314
        %2379 = vst [vmem:[%s542 + $0x1f8] sm:$0xff] %v2315
        %2380 = vmatprep.subr.mxu0 0.0
        %2381 = vmatpush1.msra.mxu0 %v721
        %2382 = vmatprep.subr.mxu0 0.0
        %2383 = vmatpush1.msra.mxu0 %v722
        %2384 = vmatprep.subr.mxu0 0.0
        %2385 = vmatpush1.msra.mxu0 %v723
        %2386 = vmatprep.subr.mxu0 0.0
        %2387 = vmatpush1.msra.mxu0 %v724
        %2388 = vmatprep.subr.mxu0 0.0
        %2389 = vmatpush1.msra.mxu0 %v725
        %2390 = vmatprep.subr.mxu0 0.0
        %2391 = vmatpush1.msra.mxu0 %v726
        %2392 = vmatprep.subr.mxu0 0.0
        %2393 = vmatpush1.msra.mxu0 %v727
        %2394 = vmatprep.subr.mxu0 0.0
        %2395 = vmatpush1.msra.mxu0 %v728
        %2396 = vmatprep.subr.mxu0 0.0
        %2397 = vmatpush1.msra.mxu0 %v729
        %2398 = vmatprep.subr.mxu0 0.0
        %2399 = vmatpush1.msra.mxu0 %v730
        %2400 = vmatprep.subr.mxu0 0.0
        %2401 = vmatpush1.msra.mxu0 %v731
        %2402 = vmatprep.subr.mxu0 0.0
        %2403 = vmatpush1.msra.mxu0 %v732
        %2404 = vmatprep.subr.mxu0 0.0
        %2405 = vmatpush1.msra.mxu0 %v733
        %2406 = vmatprep.subr.mxu0 0.0
        %2407 = vmatpush1.msra.mxu0 %v734
        %2408 = vmatprep.subr.mxu0 0.0
        %2409 = vmatpush1.msra.mxu0 %v735
        %2410 = vmatprep.subr.mxu0 0.0
        %2411 = vmatpush1.msra.mxu0 %v736
        %2412 = vmatprep.subr.mxu0 0.0
        %2413 = vmatpush1.msra.mxu0 %v737
        %2414 = vmatprep.subr.mxu0 0.0
        %2415 = vmatpush1.msra.mxu0 %v738
        %2416 = vmatprep.subr.mxu0 0.0
        %2417 = vmatpush1.msra.mxu0 %v739
        %2418 = vmatprep.subr.mxu0 0.0
        %2419 = vmatpush1.msra.mxu0 %v740
        %2420 = vmatprep.subr.mxu0 0.0
        %2421 = vmatpush1.msra.mxu0 %v741
        %2422 = vmatprep.subr.mxu0 0.0
        %2423 = vmatpush1.msra.mxu0 %v742
        %2424 = vmatprep.subr.mxu0 0.0
        %2425 = vmatpush1.msra.mxu0 %v743
        %2426 = vmatprep.subr.mxu0 0.0
        %2427 = vmatpush1.msra.mxu0 %v744
        %2428 = vmatprep.subr.mxu0 0.0
        %2429 = vmatpush1.msra.mxu0 %v745
        %2430 = vmatprep.subr.mxu0 0.0
        %2431 = vmatpush1.msra.mxu0 %v746
        %2432 = vmatprep.subr.mxu0 0.0
        %2433 = vmatpush1.msra.mxu0 %v747
        %2434 = vmatprep.subr.mxu0 0.0
        %2435 = vmatpush1.msra.mxu0 %v748
        %2436 = vmatprep.subr.mxu0 0.0
        %2437 = vmatpush1.msra.mxu0 %v749
        %2438 = vmatprep.subr.mxu0 0.0
        %2439 = vmatpush1.msra.mxu0 %v750
        %2440 = vmatprep.subr.mxu0 0.0
        %2441 = vmatpush1.msra.mxu0 %v751
        %2442 = vmatprep.subr.mxu0 0.0
        %2443 = vmatpush1.msra.mxu0 %v752
        %2444 = vmatprep.mubr.f32.mxu0 %v2253
        %2445 = vmatmul.mubr.f32.gmra.mrb[0].mxu0 %v2252
        %v2446 = vpop.f32.mrb[0].mxu0
        %v2447 = vadd.f32 0.0, %v2446
        %v2448 = vpop.f32.mrb[0].mxu0
        %2449 = vmatprep.mubr.f32.mxu0 %v2255
        %2450 = vmatmul.mubr.f32.gmra.mrb[0].mxu0 %v2254
        %v2451 = vpop.f32.mrb[0].mxu0
        %v2452 = vadd.f32 0.0, %v2451
        %v2453 = vpop.f32.mrb[0].mxu0
        %2454 = vmatprep.mubr.f32.mxu0 %v2257
        %2455 = vmatmul.mubr.f32.gmra.mrb[0].mxu0 %v2256
        %v2456 = vpop.f32.mrb[0].mxu0
        %v2457 = vadd.f32 0.0, %v2456
        %v2458 = vpop.f32.mrb[0].mxu0
        %2459 = vmatprep.mubr.f32.mxu0 %v2259
        %2460 = vmatmul.mubr.f32.gmra.mrb[0].mxu0 %v2258
        %v2461 = vpop.f32.mrb[0].mxu0
        %v2462 = vadd.f32 0.0, %v2461
        %v2463 = vpop.f32.mrb[0].mxu0
        %2464 = vmatprep.mubr.f32.mxu0 %v2261
        %2465 = vmatmul.mubr.f32.gmra.mrb[0].mxu0 %v2260
        %v2466 = vpop.f32.mrb[0].mxu0
        %v2467 = vadd.f32 0.0, %v2466
        %v2468 = vpop.f32.mrb[0].mxu0
        %2469 = vmatprep.mubr.f32.mxu0 %v2263
        %2470 = vmatmul.mubr.f32.gmra.mrb[0].mxu0 %v2262
        %v2471 = vpop.f32.mrb[0].mxu0
        %v2472 = vadd.f32 0.0, %v2471
        %v2473 = vpop.f32.mrb[0].mxu0
        %2474 = vmatprep.mubr.f32.mxu0 %v2265
        %2475 = vmatmul.mubr.f32.gmra.mrb[0].mxu0 %v2264
        %v2476 = vpop.f32.mrb[0].mxu0
        %v2477 = vadd.f32 0.0, %v2476
        %v2478 = vpop.f32.mrb[0].mxu0
        %2479 = vmatprep.mubr.f32.mxu0 %v2267
        %2480 = vmatmul.mubr.f32.gmra.mrb[0].mxu0 %v2266
        %v2481 = vpop.f32.mrb[0].mxu0
        %v2482 = vadd.f32 0.0, %v2481
        %v2483 = vpop.f32.mrb[0].mxu0
        %2484 = vmatprep.mubr.f32.mxu0 %v2269
        %2485 = vmatmul.mubr.f32.gmra.mrb[0].mxu0 %v2268
        %v2486 = vpop.f32.mrb[0].mxu0
        %v2487 = vadd.f32 0.0, %v2486
        %v2488 = vpop.f32.mrb[0].mxu0
        %2489 = vmatprep.mubr.f32.mxu0 %v2271
        %2490 = vmatmul.mubr.f32.gmra.mrb[0].mxu0 %v2270
        %v2491 = vpop.f32.mrb[0].mxu0
        %v2492 = vadd.f32 0.0, %v2491
        %v2493 = vpop.f32.mrb[0].mxu0
        %2494 = vmatprep.mubr.f32.mxu0 %v2273
        %2495 = vmatmul.mubr.f32.gmra.mrb[0].mxu0 %v2272
        %v2496 = vpop.f32.mrb[0].mxu0
        %v2497 = vadd.f32 0.0, %v2496
        %v2498 = vpop.f32.mrb[0].mxu0
        %2499 = vmatprep.mubr.f32.mxu0 %v2275
        %2500 = vmatmul.mubr.f32.gmra.mrb[0].mxu0 %v2274
        %v2501 = vpop.f32.mrb[0].mxu0
        %v2502 = vadd.f32 0.0, %v2501
        %v2503 = vpop.f32.mrb[0].mxu0
        %2504 = vmatprep.mubr.f32.mxu0 %v2277
        %2505 = vmatmul.mubr.f32.gmra.mrb[0].mxu0 %v2276
        %v2506 = vpop.f32.mrb[0].mxu0
        %v2507 = vadd.f32 0.0, %v2506
        %v2508 = vpop.f32.mrb[0].mxu0
        %2509 = vmatprep.mubr.f32.mxu0 %v2279
        %2510 = vmatmul.mubr.f32.gmra.mrb[0].mxu0 %v2278
        %v2511 = vpop.f32.mrb[0].mxu0
        %v2512 = vadd.f32 0.0, %v2511
        %v2513 = vpop.f32.mrb[0].mxu0
        %2514 = vmatprep.mubr.f32.mxu0 %v2281
        %2515 = vmatmul.mubr.f32.gmra.mrb[0].mxu0 %v2280
        %v2516 = vpop.f32.mrb[0].mxu0
        %v2517 = vadd.f32 0.0, %v2516
        %v2518 = vpop.f32.mrb[0].mxu0
        %2519 = vmatprep.mubr.f32.mxu0 %v2283
        %2520 = vmatmul.mubr.f32.gmra.mrb[0].mxu0 %v2282
        %v2521 = vpop.f32.mrb[0].mxu0
        %v2522 = vadd.f32 0.0, %v2521
        %v2523 = vpop.f32.mrb[0].mxu0
        %2524 = vdwg.mxu0
        %2525 = vmatprep.subr.mxu0 0.0
        %2526 = vmatpush1.msra.mxu0 %v753
        %2527 = vmatprep.subr.mxu0 0.0
        %2528 = vmatpush1.msra.mxu0 %v754
        %2529 = vmatprep.subr.mxu0 0.0
        %2530 = vmatpush1.msra.mxu0 %v755
        %2531 = vmatprep.subr.mxu0 0.0
        %2532 = vmatpush1.msra.mxu0 %v756
        %2533 = vmatprep.subr.mxu0 0.0
        %2534 = vmatpush1.msra.mxu0 %v757
        %2535 = vmatprep.subr.mxu0 0.0
        %2536 = vmatpush1.msra.mxu0 %v758
        %2537 = vmatprep.subr.mxu0 0.0
        %2538 = vmatpush1.msra.mxu0 %v759
        %2539 = vmatprep.subr.mxu0 0.0
        %2540 = vmatpush1.msra.mxu0 %v760
        %2541 = vmatprep.subr.mxu0 0.0
        %2542 = vmatpush1.msra.mxu0 %v761
        %2543 = vmatprep.subr.mxu0 0.0
        %2544 = vmatpush1.msra.mxu0 %v762
        %2545 = vmatprep.subr.mxu0 0.0
        %2546 = vmatpush1.msra.mxu0 %v763
        %2547 = vmatprep.subr.mxu0 0.0
        %2548 = vmatpush1.msra.mxu0 %v764
        %2549 = vmatprep.subr.mxu0 0.0
        %2550 = vmatpush1.msra.mxu0 %v765
        %2551 = vmatprep.subr.mxu0 0.0
        %2552 = vmatpush1.msra.mxu0 %v766
        %2553 = vmatprep.subr.mxu0 0.0
        %2554 = vmatpush1.msra.mxu0 %v767
        %2555 = vmatprep.subr.mxu0 0.0
        %2556 = vmatpush1.msra.mxu0 %v768
        %2557 = vmatprep.subr.mxu0 0.0
        %2558 = vmatpush1.msra.mxu0 %v769
        %2559 = vmatprep.subr.mxu0 0.0
        %2560 = vmatpush1.msra.mxu0 %v770
        %2561 = vmatprep.subr.mxu0 0.0
        %2562 = vmatpush1.msra.mxu0 %v771
        %2563 = vmatprep.subr.mxu0 0.0
        %2564 = vmatpush1.msra.mxu0 %v772
        %2565 = vmatprep.subr.mxu0 0.0
        %2566 = vmatpush1.msra.mxu0 %v773
        %2567 = vmatprep.subr.mxu0 0.0
        %2568 = vmatpush1.msra.mxu0 %v774
        %2569 = vmatprep.subr.mxu0 0.0
        %2570 = vmatpush1.msra.mxu0 %v775
        %2571 = vmatprep.subr.mxu0 0.0
        %2572 = vmatpush1.msra.mxu0 %v776
        %2573 = vmatprep.subr.mxu0 0.0
        %2574 = vmatpush1.msra.mxu0 %v777
        %2575 = vmatprep.subr.mxu0 0.0
        %2576 = vmatpush1.msra.mxu0 %v778
        %2577 = vmatprep.subr.mxu0 0.0
        %2578 = vmatpush1.msra.mxu0 %v779
        %2579 = vmatprep.subr.mxu0 0.0
        %2580 = vmatpush1.msra.mxu0 %v780
        %2581 = vmatprep.subr.mxu0 0.0
        %2582 = vmatpush1.msra.mxu0 %v781
        %2583 = vmatprep.subr.mxu0 0.0
        %2584 = vmatpush1.msra.mxu0 %v782
        %2585 = vmatprep.subr.mxu0 0.0
        %2586 = vmatpush1.msra.mxu0 %v783
        %2587 = vmatprep.subr.mxu0 0.0
        %2588 = vmatpush1.msra.mxu0 %v784
        %2589 = vmatprep.mubr.f32.mxu0 %v2285
        %2590 = vmatmul.mubr.f32.gmra.mrb[0].mxu0 %v2284
        %v2591 = vpop.f32.mrb[0].mxu0
        %v2592 = vadd.f32 0.0, %v2591
        %v2593 = vpop.f32.mrb[0].mxu0
        %2594 = vmatprep.mubr.f32.mxu0 %v2287
        %2595 = vmatmul.mubr.f32.gmra.mrb[0].mxu0 %v2286
        %v2596 = vpop.f32.mrb[0].mxu0
        %v2597 = vadd.f32 0.0, %v2596
        %v2598 = vpop.f32.mrb[0].mxu0
        %2599 = vmatprep.mubr.f32.mxu0 %v2289
        %2600 = vmatmul.mubr.f32.gmra.mrb[0].mxu0 %v2288
        %v2601 = vpop.f32.mrb[0].mxu0
        %v2602 = vadd.f32 0.0, %v2601
        %v2603 = vpop.f32.mrb[0].mxu0
        %2604 = vmatprep.mubr.f32.mxu0 %v2291
        %2605 = vmatmul.mubr.f32.gmra.mrb[0].mxu0 %v2290
        %v2606 = vpop.f32.mrb[0].mxu0
        %v2607 = vadd.f32 0.0, %v2606
        %v2608 = vpop.f32.mrb[0].mxu0
        %2609 = vmatprep.mubr.f32.mxu0 %v2293
        %2610 = vmatmul.mubr.f32.gmra.mrb[0].mxu0 %v2292
        %v2611 = vpop.f32.mrb[0].mxu0
        %v2612 = vadd.f32 0.0, %v2611
        %v2613 = vpop.f32.mrb[0].mxu0
        %2614 = vmatprep.mubr.f32.mxu0 %v2295
        %2615 = vmatmul.mubr.f32.gmra.mrb[0].mxu0 %v2294
        %v2616 = vpop.f32.mrb[0].mxu0
        %v2617 = vadd.f32 0.0, %v2616
        %v2618 = vpop.f32.mrb[0].mxu0
        %2619 = vmatprep.mubr.f32.mxu0 %v2297
        %2620 = vmatmul.mubr.f32.gmra.mrb[0].mxu0 %v2296
        %v2621 = vpop.f32.mrb[0].mxu0
        %v2622 = vadd.f32 0.0, %v2621
        %v2623 = vpop.f32.mrb[0].mxu0
        %2624 = vmatprep.mubr.f32.mxu0 %v2299
        %2625 = vmatmul.mubr.f32.gmra.mrb[0].mxu0 %v2298
        %v2626 = vpop.f32.mrb[0].mxu0
        %v2627 = vadd.f32 0.0, %v2626
        %v2628 = vpop.f32.mrb[0].mxu0
        %2629 = vmatprep.mubr.f32.mxu0 %v2301
        %2630 = vmatmul.mubr.f32.gmra.mrb[0].mxu0 %v2300
        %v2631 = vpop.f32.mrb[0].mxu0
        %v2632 = vadd.f32 0.0, %v2631
        %v2633 = vpop.f32.mrb[0].mxu0
        %2634 = vmatprep.mubr.f32.mxu0 %v2303
        %2635 = vmatmul.mubr.f32.gmra.mrb[0].mxu0 %v2302
        %v2636 = vpop.f32.mrb[0].mxu0
        %v2637 = vadd.f32 0.0, %v2636
        %v2638 = vpop.f32.mrb[0].mxu0
        %2639 = vmatprep.mubr.f32.mxu0 %v2305
        %2640 = vmatmul.mubr.f32.gmra.mrb[0].mxu0 %v2304
        %v2641 = vpop.f32.mrb[0].mxu0
        %v2642 = vadd.f32 0.0, %v2641
        %v2643 = vpop.f32.mrb[0].mxu0
        %2644 = vmatprep.mubr.f32.mxu0 %v2307
        %2645 = vmatmul.mubr.f32.gmra.mrb[0].mxu0 %v2306
        %v2646 = vpop.f32.mrb[0].mxu0
        %v2647 = vadd.f32 0.0, %v2646
        %v2648 = vpop.f32.mrb[0].mxu0
        %2649 = vmatprep.mubr.f32.mxu0 %v2309
        %2650 = vmatmul.mubr.f32.gmra.mrb[0].mxu0 %v2308
        %v2651 = vpop.f32.mrb[0].mxu0
        %v2652 = vadd.f32 0.0, %v2651
        %v2653 = vpop.f32.mrb[0].mxu0
        %2654 = vmatprep.mubr.f32.mxu0 %v2311
        %2655 = vmatmul.mubr.f32.gmra.mrb[0].mxu0 %v2310
        %v2656 = vpop.f32.mrb[0].mxu0
        %v2657 = vadd.f32 0.0, %v2656
        %v2658 = vpop.f32.mrb[0].mxu0
        %2659 = vmatprep.mubr.f32.mxu0 %v2313
        %2660 = vmatmul.mubr.f32.gmra.mrb[0].mxu0 %v2312
        %v2661 = vpop.f32.mrb[0].mxu0
        %v2662 = vadd.f32 0.0, %v2661
        %v2663 = vpop.f32.mrb[0].mxu0
        %2664 = vmatprep.mubr.f32.mxu0 %v2315
        %2665 = vmatmul.mubr.f32.gmra.mrb[0].mxu0 %v2314
        %v2666 = vpop.f32.mrb[0].mxu0
        %v2667 = vadd.f32 0.0, %v2666
        %v2668 = vpop.f32.mrb[0].mxu0
        %2669 = vdwg.mxu0
        %2670 = vst.msk [vmem:[%s535] sm:$0xff] %vm785, %v2447
        %2671 = vst.msk [vmem:[%s535 + $0x8] sm:$0xff] %vm785, %v2452
        %2672 = vst.msk [vmem:[%s535 + $0x10] sm:$0xff] %vm785, %v2457
        %2673 = vst.msk [vmem:[%s535 + $0x18] sm:$0xff] %vm785, %v2462
        %2674 = vst.msk [vmem:[%s535 + $0x20] sm:$0xff] %vm785, %v2467
        %2675 = vst.msk [vmem:[%s535 + $0x28] sm:$0xff] %vm785, %v2472
        %2676 = vst.msk [vmem:[%s535 + $0x30] sm:$0xff] %vm785, %v2477
        %2677 = vst.msk [vmem:[%s535 + $0x38] sm:$0xff] %vm785, %v2482
        %2678 = vst.msk [vmem:[%s535 + $0x40] sm:$0xff] %vm785, %v2487
        %2679 = vst.msk [vmem:[%s535 + $0x48] sm:$0xff] %vm785, %v2492
        %2680 = vst.msk [vmem:[%s535 + $0x50] sm:$0xff] %vm785, %v2497
        %2681 = vst.msk [vmem:[%s535 + $0x58] sm:$0xff] %vm785, %v2502
        %2682 = vst.msk [vmem:[%s535 + $0x60] sm:$0xff] %vm785, %v2507
        %2683 = vst.msk [vmem:[%s535 + $0x68] sm:$0xff] %vm785, %v2512
        %2684 = vst.msk [vmem:[%s535 + $0x70] sm:$0xff] %vm785, %v2517
        %2685 = vst.msk [vmem:[%s535 + $0x78] sm:$0xff] %vm785, %v2522
        %2686 = vst.msk [vmem:[%s535 + $0x80] sm:$0xff] %vm785, %v2592
        %2687 = vst.msk [vmem:[%s535 + $0x88] sm:$0xff] %vm785, %v2597
        %2688 = vst.msk [vmem:[%s535 + $0x90] sm:$0xff] %vm785, %v2602
        %2689 = vst.msk [vmem:[%s535 + $0x98] sm:$0xff] %vm785, %v2607
        %2690 = vst.msk [vmem:[%s535 + $0xa0] sm:$0xff] %vm785, %v2612
        %2691 = vst.msk [vmem:[%s535 + $0xa8] sm:$0xff] %vm785, %v2617
        %2692 = vst.msk [vmem:[%s535 + $0xb0] sm:$0xff] %vm785, %v2622
        %2693 = vst.msk [vmem:[%s535 + $0xb8] sm:$0xff] %vm785, %v2627
        %2694 = vst.msk [vmem:[%s535 + $0xc0] sm:$0xff] %vm785, %v2632
        %2695 = vst.msk [vmem:[%s535 + $0xc8] sm:$0xff] %vm785, %v2637
        %2696 = vst.msk [vmem:[%s535 + $0xd0] sm:$0xff] %vm785, %v2642
        %2697 = vst.msk [vmem:[%s535 + $0xd8] sm:$0xff] %vm785, %v2647
        %2698 = vst.msk [vmem:[%s535 + $0xe0] sm:$0xff] %vm785, %v2652
        %2699 = vst.msk [vmem:[%s535 + $0xe8] sm:$0xff] %vm785, %v2657
        %2700 = vst.msk [vmem:[%s535 + $0xf0] sm:$0xff] %vm785, %v2662
        %2701 = vst.msk [vmem:[%s535 + $0xf8] sm:$0xff] %vm785, %v2667
        %s2702 = sand.u32 %s169, 1
        %s2703 = sand.u32 %s169, 1
        %s2704 = smul.addr %s2703, 256
        %s2705 = scalar_lea.vmem [#allocation3], %s2704
        %s2706 = sand.u32 %s199, 1
        %s2707 = scalar_lea.sflag [#allocation5], %s2706
        %s2708 = sand.u32 %s199, 1
        %s2709 = smul.addr %s2708, 512
        %s2710 = scalar_lea.vmem [#allocation4], %s2709
        %s2711 = sand.u32 %s229, 1
        %s2712 = scalar_lea.sflag [#allocation7], %s2711
        %s2713 = sand.u32 %s229, 1
        %s2714 = smul.addr %s2713, 512
        %s2715 = scalar_lea.vmem [#allocation6], %s2714
        // Predicated region
        $region75: #{tpu_custom_call.1} parent=69 // pred_check
          %p2716 = pneg %p179
        $region76: #{tpu_custom_call.1} parent=69 // pred_check_branch
          %2718 = sbr.rel (%p2716) target = $region78
        $region77: #{tpu_custom_call.1} parent=69 // pred_region
          %s2719 = smul.u32 2, %s30
          %s2720 = smul.u32 16, %s31
          %s2721 = smul.addr %s2719, 32
          %s2722 = sadd.s32 %s2720, %s2721
          %s2723 = smul.addr %s29, 64
          %s2724 = sadd.s32 %s2722, %s2723
          %s2725 = smul.addr %s2724, 8
          %s2726 = scalar_lea.vmem %s4, %s2725
          // Predicated region
          $region79: #{tpu_custom_call.1} parent=77 // pred_check
            _
          $region80: #{tpu_custom_call.1} parent=77 // pred_check_branch
            %2728 = sbr.rel (0) target = $region82
          $region81: #{tpu_custom_call.1} parent=77 // pred_region
            // Predicated region
            $region83: #{tpu_custom_call.1} parent=81 // pred_check
              _
            $region84: #{tpu_custom_call.1} parent=81 // pred_check_branch
              %2730 = sbr.rel (0) target = $region86
            $region85: #{tpu_custom_call.1} parent=81 // pred_region
              // Predicated region
              $region98: #{tpu_custom_call.1} parent=85 // pred_check
                _
              $region99: #{tpu_custom_call.1} parent=85 // pred_check_branch
                %2807 = sbr.rel (0) target = $region101
              $region100: #{tpu_custom_call.1} parent=85 // pred_region
                loop: start=0, step=1, limit=1
                $region102: #{tpu_custom_call.1} parent=100 // loop_pre_header
                  _
                $region103: #{tpu_custom_call.1} parent=100 // loop_header
                  %s2809 = sphi 0, %s2813
                  %p2810 = scmp.ge.s32.totalorder %s2809, 1
                  %s2814 = sphi %s2705, %s2705
                  %s2815 = sphi %s2726, %s2726
                $region104: #{tpu_custom_call.1} parent=100 // loop_header_branch
                  %2812 = sbr.rel (%p2810) target = $region108
                $region105: #{tpu_custom_call.1} parent=100 // loop_body
                  %v2816 = vld [vmem:[%s2814] sm:$0xff]
                  %2817 = vst [vmem:[%s2815] sm:$0xff] %v2816
                  %v2818 = vld [vmem:[%s2814 + $0x8] sm:$0xff]
                  %2819 = vst [vmem:[%s2815 + $0x8] sm:$0xff] %v2818
                  %v2820 = vld [vmem:[%s2814 + $0x10] sm:$0xff]
                  %2821 = vst [vmem:[%s2815 + $0x10] sm:$0xff] %v2820
                  %v2822 = vld [vmem:[%s2814 + $0x18] sm:$0xff]
                  %2823 = vst [vmem:[%s2815 + $0x18] sm:$0xff] %v2822
                  %v2824 = vld [vmem:[%s2814 + $0x20] sm:$0xff]
                  %2825 = vst [vmem:[%s2815 + $0x20] sm:$0xff] %v2824
                  %v2826 = vld [vmem:[%s2814 + $0x28] sm:$0xff]
                  %2827 = vst [vmem:[%s2815 + $0x28] sm:$0xff] %v2826
                  %v2828 = vld [vmem:[%s2814 + $0x30] sm:$0xff]
                  %2829 = vst [vmem:[%s2815 + $0x30] sm:$0xff] %v2828
                  %v2830 = vld [vmem:[%s2814 + $0x38] sm:$0xff]
                  %2831 = vst [vmem:[%s2815 + $0x38] sm:$0xff] %v2830
                  %v2832 = vld [vmem:[%s2814 + $0x40] sm:$0xff]
                  %2833 = vst [vmem:[%s2815 + $0x40] sm:$0xff] %v2832
                  %v2834 = vld [vmem:[%s2814 + $0x48] sm:$0xff]
                  %2835 = vst [vmem:[%s2815 + $0x48] sm:$0xff] %v2834
                  %v2836 = vld [vmem:[%s2814 + $0x50] sm:$0xff]
                  %2837 = vst [vmem:[%s2815 + $0x50] sm:$0xff] %v2836
                  %v2838 = vld [vmem:[%s2814 + $0x58] sm:$0xff]
                  %2839 = vst [vmem:[%s2815 + $0x58] sm:$0xff] %v2838
                  %v2840 = vld [vmem:[%s2814 + $0x60] sm:$0xff]
                  %2841 = vst [vmem:[%s2815 + $0x60] sm:$0xff] %v2840
                  %v2842 = vld [vmem:[%s2814 + $0x68] sm:$0xff]
                  %2843 = vst [vmem:[%s2815 + $0x68] sm:$0xff] %v2842
                  %v2844 = vld [vmem:[%s2814 + $0x70] sm:$0xff]
                  %2845 = vst [vmem:[%s2815 + $0x70] sm:$0xff] %v2844
                  %v2846 = vld [vmem:[%s2814 + $0x78] sm:$0xff]
                  %2847 = vst [vmem:[%s2815 + $0x78] sm:$0xff] %v2846
                  %v2848 = vld [vmem:[%s2814 + $0x80] sm:$0xff]
                  %2849 = vst [vmem:[%s2815 + $0x100] sm:$0xff] %v2848
                  %v2850 = vld [vmem:[%s2814 + $0x88] sm:$0xff]
                  %2851 = vst [vmem:[%s2815 + $0x108] sm:$0xff] %v2850
                  %v2852 = vld [vmem:[%s2814 + $0x90] sm:$0xff]
                  %2853 = vst [vmem:[%s2815 + $0x110] sm:$0xff] %v2852
                  %v2854 = vld [vmem:[%s2814 + $0x98] sm:$0xff]
                  %2855 = vst [vmem:[%s2815 + $0x118] sm:$0xff] %v2854
                  %v2856 = vld [vmem:[%s2814 + $0xa0] sm:$0xff]
                  %2857 = vst [vmem:[%s2815 + $0x120] sm:$0xff] %v2856
                  %v2858 = vld [vmem:[%s2814 + $0xa8] sm:$0xff]
                  %2859 = vst [vmem:[%s2815 + $0x128] sm:$0xff] %v2858
                  %v2860 = vld [vmem:[%s2814 + $0xb0] sm:$0xff]
                  %2861 = vst [vmem:[%s2815 + $0x130] sm:$0xff] %v2860
                  %v2862 = vld [vmem:[%s2814 + $0xb8] sm:$0xff]
                  %2863 = vst [vmem:[%s2815 + $0x138] sm:$0xff] %v2862
                  %v2864 = vld [vmem:[%s2814 + $0xc0] sm:$0xff]
                  %2865 = vst [vmem:[%s2815 + $0x140] sm:$0xff] %v2864
                  %v2866 = vld [vmem:[%s2814 + $0xc8] sm:$0xff]
                  %2867 = vst [vmem:[%s2815 + $0x148] sm:$0xff] %v2866
                  %v2868 = vld [vmem:[%s2814 + $0xd0] sm:$0xff]
                  %2869 = vst [vmem:[%s2815 + $0x150] sm:$0xff] %v2868
                  %v2870 = vld [vmem:[%s2814 + $0xd8] sm:$0xff]
                  %2871 = vst [vmem:[%s2815 + $0x158] sm:$0xff] %v2870
                  %v2872 = vld [vmem:[%s2814 + $0xe0] sm:$0xff]
                  %2873 = vst [vmem:[%s2815 + $0x160] sm:$0xff] %v2872
                  %v2874 = vld [vmem:[%s2814 + $0xe8] sm:$0xff]
                  %2875 = vst [vmem:[%s2815 + $0x168] sm:$0xff] %v2874
                  %v2876 = vld [vmem:[%s2814 + $0xf0] sm:$0xff]
                  %2877 = vst [vmem:[%s2815 + $0x170] sm:$0xff] %v2876
                  %v2878 = vld [vmem:[%s2814 + $0xf8] sm:$0xff]
                  %2879 = vst [vmem:[%s2815 + $0x178] sm:$0xff] %v2878
                $region106: #{tpu_custom_call.1} parent=100 // loop_footer
                  %s2813 = sadd.s32 1, %s2809
                $region107: #{tpu_custom_call.1} parent=100 // loop_footer_branch
                  %2808 = sbr.rel target = $region103
                $region108: #{tpu_custom_call.1} parent=100 // loop_exit
                  _
              $region101: #{tpu_custom_call.1} parent=85 // pred_fallthru
                _
              // Predicated region
              $region109: #{tpu_custom_call.1} parent=85 // pred_check
                _
              $region110: #{tpu_custom_call.1} parent=85 // pred_check_branch
                %2881 = sbr.rel target = $region112
              $region111: #{tpu_custom_call.1} parent=85 // pred_region
                _
              $region112: #{tpu_custom_call.1} parent=85 // pred_fallthru
                _
            $region86: #{tpu_custom_call.1} parent=81 // pred_fallthru
              _
            // Predicated region
            $region87: #{tpu_custom_call.1} parent=81 // pred_check
              _
            $region88: #{tpu_custom_call.1} parent=81 // pred_check_branch
              %2732 = sbr.rel target = $region90
            $region89: #{tpu_custom_call.1} parent=81 // pred_region
              loop: start=0, step=1, limit=1
              $region91: #{tpu_custom_call.1} parent=89 // loop_pre_header
                _
              $region92: #{tpu_custom_call.1} parent=89 // loop_header
                %s2735 = sphi 0, %s2739
                %p2736 = scmp.ge.s32.totalorder %s2735, 1
                %s2740 = sphi %s2705, %s2705
                %s2741 = sphi %s2726, %s2726
              $region93: #{tpu_custom_call.1} parent=89 // loop_header_branch
                %2738 = sbr.rel (%p2736) target = $region97
              $region94: #{tpu_custom_call.1} parent=89 // loop_body
                %v2742 = vld [vmem:[%s2740] sm:$0xff]
                %2743 = vst [vmem:[%s2741] sm:$0xff] %v2742
                %v2744 = vld [vmem:[%s2740 + $0x8] sm:$0xff]
                %2745 = vst [vmem:[%s2741 + $0x8] sm:$0xff] %v2744
                %v2746 = vld [vmem:[%s2740 + $0x10] sm:$0xff]
                %2747 = vst [vmem:[%s2741 + $0x10] sm:$0xff] %v2746
                %v2748 = vld [vmem:[%s2740 + $0x18] sm:$0xff]
                %2749 = vst [vmem:[%s2741 + $0x18] sm:$0xff] %v2748
                %v2750 = vld [vmem:[%s2740 + $0x20] sm:$0xff]
                %2751 = vst [vmem:[%s2741 + $0x20] sm:$0xff] %v2750
                %v2752 = vld [vmem:[%s2740 + $0x28] sm:$0xff]
                %2753 = vst [vmem:[%s2741 + $0x28] sm:$0xff] %v2752
                %v2754 = vld [vmem:[%s2740 + $0x30] sm:$0xff]
                %2755 = vst [vmem:[%s2741 + $0x30] sm:$0xff] %v2754
                %v2756 = vld [vmem:[%s2740 + $0x38] sm:$0xff]
                %2757 = vst [vmem:[%s2741 + $0x38] sm:$0xff] %v2756
                %v2758 = vld [vmem:[%s2740 + $0x40] sm:$0xff]
                %2759 = vst [vmem:[%s2741 + $0x40] sm:$0xff] %v2758
                %v2760 = vld [vmem:[%s2740 + $0x48] sm:$0xff]
                %2761 = vst [vmem:[%s2741 + $0x48] sm:$0xff] %v2760
                %v2762 = vld [vmem:[%s2740 + $0x50] sm:$0xff]
                %2763 = vst [vmem:[%s2741 + $0x50] sm:$0xff] %v2762
                %v2764 = vld [vmem:[%s2740 + $0x58] sm:$0xff]
                %2765 = vst [vmem:[%s2741 + $0x58] sm:$0xff] %v2764
                %v2766 = vld [vmem:[%s2740 + $0x60] sm:$0xff]
                %2767 = vst [vmem:[%s2741 + $0x60] sm:$0xff] %v2766
                %v2768 = vld [vmem:[%s2740 + $0x68] sm:$0xff]
                %2769 = vst [vmem:[%s2741 + $0x68] sm:$0xff] %v2768
                %v2770 = vld [vmem:[%s2740 + $0x70] sm:$0xff]
                %2771 = vst [vmem:[%s2741 + $0x70] sm:$0xff] %v2770
                %v2772 = vld [vmem:[%s2740 + $0x78] sm:$0xff]
                %2773 = vst [vmem:[%s2741 + $0x78] sm:$0xff] %v2772
                %v2774 = vld [vmem:[%s2740 + $0x80] sm:$0xff]
                %2775 = vst [vmem:[%s2741 + $0x100] sm:$0xff] %v2774
                %v2776 = vld [vmem:[%s2740 + $0x88] sm:$0xff]
                %2777 = vst [vmem:[%s2741 + $0x108] sm:$0xff] %v2776
                %v2778 = vld [vmem:[%s2740 + $0x90] sm:$0xff]
                %2779 = vst [vmem:[%s2741 + $0x110] sm:$0xff] %v2778
                %v2780 = vld [vmem:[%s2740 + $0x98] sm:$0xff]
                %2781 = vst [vmem:[%s2741 + $0x118] sm:$0xff] %v2780
                %v2782 = vld [vmem:[%s2740 + $0xa0] sm:$0xff]
                %2783 = vst [vmem:[%s2741 + $0x120] sm:$0xff] %v2782
                %v2784 = vld [vmem:[%s2740 + $0xa8] sm:$0xff]
                %2785 = vst [vmem:[%s2741 + $0x128] sm:$0xff] %v2784
                %v2786 = vld [vmem:[%s2740 + $0xb0] sm:$0xff]
                %2787 = vst [vmem:[%s2741 + $0x130] sm:$0xff] %v2786
                %v2788 = vld [vmem:[%s2740 + $0xb8] sm:$0xff]
                %2789 = vst [vmem:[%s2741 + $0x138] sm:$0xff] %v2788
                %v2790 = vld [vmem:[%s2740 + $0xc0] sm:$0xff]
                %2791 = vst [vmem:[%s2741 + $0x140] sm:$0xff] %v2790
                %v2792 = vld [vmem:[%s2740 + $0xc8] sm:$0xff]
                %2793 = vst [vmem:[%s2741 + $0x148] sm:$0xff] %v2792
                %v2794 = vld [vmem:[%s2740 + $0xd0] sm:$0xff]
                %2795 = vst [vmem:[%s2741 + $0x150] sm:$0xff] %v2794
                %v2796 = vld [vmem:[%s2740 + $0xd8] sm:$0xff]
                %2797 = vst [vmem:[%s2741 + $0x158] sm:$0xff] %v2796
                %v2798 = vld [vmem:[%s2740 + $0xe0] sm:$0xff]
                %2799 = vst [vmem:[%s2741 + $0x160] sm:$0xff] %v2798
                %v2800 = vld [vmem:[%s2740 + $0xe8] sm:$0xff]
                %2801 = vst [vmem:[%s2741 + $0x168] sm:$0xff] %v2800
                %v2802 = vld [vmem:[%s2740 + $0xf0] sm:$0xff]
                %2803 = vst [vmem:[%s2741 + $0x170] sm:$0xff] %v2802
                %v2804 = vld [vmem:[%s2740 + $0xf8] sm:$0xff]
                %2805 = vst [vmem:[%s2741 + $0x178] sm:$0xff] %v2804
              $region95: #{tpu_custom_call.1} parent=89 // loop_footer
                %s2739 = sadd.s32 1, %s2735
              $region96: #{tpu_custom_call.1} parent=89 // loop_footer_branch
                %2734 = sbr.rel target = $region92
              $region97: #{tpu_custom_call.1} parent=89 // loop_exit
                _
            $region90: #{tpu_custom_call.1} parent=81 // pred_fallthru
              _
          $region82: #{tpu_custom_call.1} parent=77 // pred_fallthru
            _
          %2882 = vnop
        $region78: #{tpu_custom_call.1} parent=69 // pred_fallthru
          _
        // Predicated region
        $region113: #{tpu_custom_call.1} parent=69 // pred_check
          %p2883 = pneg %p209
        $region114: #{tpu_custom_call.1} parent=69 // pred_check_branch
          %2885 = sbr.rel (%p2883) target = $region116
        $region115: #{tpu_custom_call.1} parent=69 // pred_region
          #allocation9 [shape = 'u32[6]{0}', space=smem, size = 0x18, scoped, tag = 'DMA stride descriptor']
          %s2886 = smul.u32 2, %s30
          %s2887 = smul.u32 16, %s31
          %s2889 = ssub.s32 8192, 8192
          %2890 = vsyncadd %s2707, %s2889
          %s2891 = smul.addr %s2887, 2
          %s2892 = smul.addr %s2886, 64
          %s2893 = sadd.s32 %s2891, %s2892
          %s2894 = smul.addr %s29, 128
          %s2895 = sadd.s32 %s2893, %s2894
          %s2896 = smul.addr %s2895, 128
          %s2897 = scalar_lea.hbm %s5, %s2896
          %s2899 = sshll.u32 1, 14
          %s2900 = sxor.u32 4294967295, %s2899
          %s2903 = sshll.u32 7, 18
          %s2904 = sxor.u32 4294967295, %s2903
          %s2905 = sand.u32 0, %s2904
          %s2907 = sor.u32 %s2905, 0
          %s2909 = sshll.u32 3, 24
          %s2910 = sxor.u32 4294967295, %s2909
          %s2911 = sand.u32 %s2907, %s2910
          %s2913 = sor.u32 %s2911, 0
          %s2914 = sshll.u32 %s2710, 4
          %s2915 = int_to_ptr.vmem [resolvable:$true] %s2914
          %2921 = sst [smem:[#allocation9]] 4096
          %s2922 = scalar_lea.smem [#allocation9], 1
          %2923 = sst [smem:[%s2922]] 8192
          %s2924 = scalar_lea.smem [#allocation9], 2
          %2925 = sst [smem:[%s2924]] 16
          %s2926 = scalar_lea.smem [#allocation9], 3
          %2927 = sst [smem:[%s2926]] 256
          %s2928 = scalar_lea.smem [#allocation9], 4
          %2929 = sst [smem:[%s2928]] 256
          %s2930 = scalar_lea.smem [#allocation9], 5
          %2931 = sst [smem:[%s2930]] 16
          %2933 = dma.general %s2915, 8192, %s2897, %s2707, [#allocation8], [#allocation9], %s2913, 0
        $region116: #{tpu_custom_call.1} parent=69 // pred_fallthru
          _
        // Predicated region
        $region117: #{tpu_custom_call.1} parent=69 // pred_check
          %p2934 = pneg %p239
        $region118: #{tpu_custom_call.1} parent=69 // pred_check_branch
          %2936 = sbr.rel (%p2934) target = $region120
        $region119: #{tpu_custom_call.1} parent=69 // pred_region
          #allocation11 [shape = 'u32[6]{0}', space=smem, size = 0x18, scoped, tag = 'DMA stride descriptor']
          %s2937 = smul.u32 2, %s30
          %s2938 = smul.u32 16, %s31
          %s2940 = ssub.s32 8192, 8192
          %2941 = vsyncadd %s2712, %s2940
          %s2942 = smul.addr %s2938, 2
          %s2943 = smul.addr %s2937, 64
          %s2944 = sadd.s32 %s2942, %s2943
          %s2945 = smul.addr %s29, 128
          %s2946 = sadd.s32 %s2944, %s2945
          %s2947 = smul.addr %s2946, 128
          %s2948 = scalar_lea.hbm %s6, %s2947
          %s2950 = sshll.u32 1, 14
          %s2951 = sxor.u32 4294967295, %s2950
          %s2954 = sshll.u32 7, 18
          %s2955 = sxor.u32 4294967295, %s2954
          %s2956 = sand.u32 0, %s2955
          %s2958 = sor.u32 %s2956, 0
          %s2960 = sshll.u32 3, 24
          %s2961 = sxor.u32 4294967295, %s2960
          %s2962 = sand.u32 %s2958, %s2961
          %s2964 = sor.u32 %s2962, 0
          %s2965 = sshll.u32 %s2715, 4
          %s2966 = int_to_ptr.vmem [resolvable:$true] %s2965
          %2972 = sst [smem:[#allocation11]] 4096
          %s2973 = scalar_lea.smem [#allocation11], 1
          %2974 = sst [smem:[%s2973]] 8192
          %s2975 = scalar_lea.smem [#allocation11], 2
          %2976 = sst [smem:[%s2975]] 16
          %s2977 = scalar_lea.smem [#allocation11], 3
          %2978 = sst [smem:[%s2977]] 256
          %s2979 = scalar_lea.smem [#allocation11], 4
          %2980 = sst [smem:[%s2979]] 256
          %s2981 = scalar_lea.smem [#allocation11], 5
          %2982 = sst [smem:[%s2981]] 16
          %2984 = dma.general %s2966, 8192, %s2948, %s2712, [#allocation10], [#allocation11], %s2964, 0
        $region120: #{tpu_custom_call.1} parent=69 // pred_fallthru
          _
      $region70: #{tpu_custom_call.1} parent=5 // pred_fallthru
        _
      %p2985 = scmp.le.s32.totalorder 2, %s19
      // Predicated region
      $region121: #{tpu_custom_call.1} parent=5 // pred_check
        %p2986 = pneg %p2985
      $region122: #{tpu_custom_call.1} parent=5 // pred_check_branch
        %2988 = sbr.rel (%p2986) target = $region124
      $region123: #{tpu_custom_call.1} parent=5 // pred_region
        %s2989 = ssub.s32 %s19, 2
        // Predicated region
        $region125: #{tpu_custom_call.1} parent=123 // pred_check
          %p2990 = pneg %p185
        $region126: #{tpu_custom_call.1} parent=123 // pred_check_branch
          %2992 = sbr.rel (%p2990) target = $region128
        $region127: #{tpu_custom_call.1} parent=123 // pred_region
          %s2993 = sand.u32 %s170, 1
          %s2994 = sand.u32 %s170, 1
          %s2995 = smul.addr %s2994, 256
          %s2996 = scalar_lea.vmem [#allocation3], %s2995
        $region128: #{tpu_custom_call.1} parent=123 // pred_fallthru
          _
        // Predicated region
        $region129: #{tpu_custom_call.1} parent=123 // pred_check
          %p2997 = pneg %p215
        $region130: #{tpu_custom_call.1} parent=123 // pred_check_branch
          %2999 = sbr.rel (%p2997) target = $region132
        $region131: #{tpu_custom_call.1} parent=123 // pred_region
          %s3000 = sand.u32 %s200, 1
          %s3001 = scalar_lea.sflag [#allocation5], %s3000
          %s3002 = sand.u32 %s200, 1
          %s3003 = smul.addr %s3002, 512
          %s3004 = scalar_lea.vmem [#allocation4], %s3003
          %3005 = dma.done %s3001, 8192
        $region132: #{tpu_custom_call.1} parent=123 // pred_fallthru
          _
        // Predicated region
        $region133: #{tpu_custom_call.1} parent=123 // pred_check
          %p3006 = pneg %p245
        $region134: #{tpu_custom_call.1} parent=123 // pred_check_branch
          %3008 = sbr.rel (%p3006) target = $region136
        $region135: #{tpu_custom_call.1} parent=123 // pred_region
          %s3009 = sand.u32 %s230, 1
          %s3010 = scalar_lea.sflag [#allocation7], %s3009
          %s3011 = sand.u32 %s230, 1
          %s3012 = smul.addr %s3011, 512
          %s3013 = scalar_lea.vmem [#allocation6], %s3012
          %3014 = dma.done %s3010, 8192
        $region136: #{tpu_custom_call.1} parent=123 // pred_fallthru
          _
      $region124: #{tpu_custom_call.1} parent=5 // pred_fallthru
        _
    $region6: #{tpu_custom_call.1} parent=1 // loop_footer
      %s23 = sadd.s32 1, %s19
    $region7: #{tpu_custom_call.1} parent=1 // loop_footer_branch
      %18 = sbr.rel target = $region3
    $region8: #{tpu_custom_call.1} parent=1 // loop_exit
      _
    %3015 = vsyncpa [#allocation5], 1
    %s3016 = scalar_lea.sflag [#allocation5], 1
    %3017 = vsyncpa %s3016, 1
    %3018 = vsyncpa [#allocation7], 1
    %s3019 = scalar_lea.sflag [#allocation7], 1
    %3020 = vsyncpa %s3019, 1

</llo_original>
